<compile_context>
chip_gen: v6e
topology: v6e:2x2x1
jax: 0.10.0
libtpu: 0.0.40
codegen_flags: <defaults>
</compile_context>

<pallas_src>
from functools import partial

import jax
import jax.numpy as jnp
from jax.experimental import pallas as pl
from jax.experimental.pallas import tpu as pltpu

# ---- model hyper-parameters (from the PyTorch module) ----------------------
IN_DIM = 784          # 28*28 MNIST
HID = 400
LATENT = 2
LORA_R = 4
LORA_ALPHA = 1.0
LORA_SCALE = LORA_ALPHA / LORA_R
BN_EPS = 1e-5


# ---------------------------------------------------------------------------
# Pallas kernel: one grid step == one independent microbatch (one BN group).
# Weights are VMEM-resident across steps (constant index_map).
# ---------------------------------------------------------------------------
def _lora_vae_kernel(
    # streamed per step
    x_ref, eps_ref,
    # resident across steps
    w_enc_ref, w_heads_ref, w_d1_ref, w_d2_ref, vecs_ref,
    # outputs (streamed per step)
    xrec_ref, hd_ref,
):
    f32 = jnp.float32
    bf16 = jnp.bfloat16

    # ---- packed per-feature vectors (one resident (8, 784) f32 slab) -------
    b_enc  = vecs_ref[0:1, 0:HID]
    g_bn1  = vecs_ref[1:2, 0:HID]
    be_bn1 = vecs_ref[2:3, 0:HID]
    b_d1   = vecs_ref[3:4, 0:HID]
    g_bn2  = vecs_ref[4:5, 0:HID]
    be_bn2 = vecs_ref[5:6, 0:HID]
    b_d2   = vecs_ref[6:7, 0:IN_DIM]
    b_hd   = vecs_ref[7:8, 0:2 * LATENT]

    # ---- encoder Linear(784, 400): bf16 MXU, f32 accumulation --------------
    x = x_ref[...].astype(bf16)                       # cast in-kernel (free)
    h = jnp.dot(x, w_enc_ref[...], preferred_element_type=f32) + b_enc

    # ---- BatchNorm1d(400), training mode, + ReLU ---------------------------
    mean1 = jnp.mean(h, axis=0, keepdims=True)
    hc = h - mean1                                    # reused for var + normalize
    var1 = jnp.mean(hc * hc, axis=0, keepdims=True)   # biased variance
    scale1 = g_bn1 * jax.lax.rsqrt(var1 + BN_EPS)     # (1, HID) row once
    h = jnp.maximum(scale1 * hc + be_bn1, 0.0)        # single FMA + ReLU

    # ---- fused mu | log_sigma heads: one (400, 2*latent) bf16 matmul -------
    hd = jnp.dot(h.astype(bf16), w_heads_ref[...], preferred_element_type=f32) + b_hd
    mu = hd[:, 0:LATENT]
    ls = hd[:, LATENT:2 * LATENT]

    # ---- reparameterize: z = mu + eps * exp(0.5 * log_sigma) ---------------
    z = mu + eps_ref[...] * jnp.exp(0.5 * ls)

    # ---- decoder Linear(latent, 400), LoRA pre-folded: K=2 -> VPU outer ----
    d1 = (z[:, 0:1] * w_d1_ref[0:1, :]
          + z[:, 1:2] * w_d1_ref[1:2, :]
          + b_d1)

    # ---- BatchNorm1d(400) + ReLU --------------------------------------------
    mean2 = jnp.mean(d1, axis=0, keepdims=True)
    dc = d1 - mean2
    var2 = jnp.mean(dc * dc, axis=0, keepdims=True)
    scale2 = g_bn2 * jax.lax.rsqrt(var2 + BN_EPS)
    d1 = jnp.maximum(scale2 * dc + be_bn2, 0.0)

    # ---- decoder Linear(400, 784), LoRA pre-folded, + exact sigmoid --------
    d2 = jnp.dot(d1.astype(bf16), w_d2_ref[...], preferred_element_type=f32) + b_d2
    xrec_ref[...] = 1.0 / (1.0 + jnp.exp(-d2))

    hd_ref[...] = hd


# ---------------------------------------------------------------------------
# Host-side parameter preprocessing (once per weight update):
#   - fold LoRA updates into the frozen decoder weights,
#   - fuse mu / log_sigma head weights and biases,
#   - pack all per-feature vectors into one (8, 784) f32 slab (one DMA),
#   - ship the MXU weight operands as bf16.
# ---------------------------------------------------------------------------
def prepare_params(p):
    f32, bf16 = jnp.float32, jnp.bfloat16

    w_d1_eff = p["w_d1"] + LORA_SCALE * (p["a_d1"] @ p["bb_d1"])   # (2, 400)
    w_d2_eff = p["w_d2"] + LORA_SCALE * (p["a_d2"] @ p["bb_d2"])   # (400, 784)
    w_heads = jnp.concatenate([p["w_mu"], p["w_ls"]], axis=1)      # (400, 4)
    b_heads = jnp.concatenate([p["b_mu"], p["b_ls"]], axis=1)      # (1, 4)

    def row(v):  # pad a (1, n) vector to (1, IN_DIM)
        return jnp.pad(v.astype(f32), ((0, 0), (0, IN_DIM - v.shape[1])))

    vecs = jnp.concatenate(
        [row(p["b_enc"]), row(p["g_bn1"]), row(p["be_bn1"]),
         row(p["b_d1"]), row(p["g_bn2"]), row(p["be_bn2"]),
         row(p["b_d2"]), row(b_heads)],
        axis=0,
    )  # (8, 784) f32

    return {
        "w_enc": p["w_enc"].astype(bf16),    # (784, 400) bf16 (MXU operand)
        "w_heads": w_heads.astype(bf16),     # (400, 4)   bf16 (MXU operand)
        "w_d1": w_d1_eff.astype(f32),        # (2, 400)   f32  (VPU outer product)
        "w_d2": w_d2_eff.astype(bf16),       # (400, 784) bf16 (MXU operand)
        "vecs": vecs,                        # (8, 784)   f32
    }


# ---------------------------------------------------------------------------
# Wrapper: grid over independent microbatch groups of `tile_b` rows.
# Each group gets training-mode BatchNorm statistics over its own rows,
# i.e. it behaves exactly like one forward() call of the PyTorch module.
# Set tile_b == batch for a single BN group over the whole batch.
# ---------------------------------------------------------------------------
@partial(jax.jit, static_argnames=("tile_b",))
def lora_vae_decoder_forward(x_img, eps, packed, tile_b=8):
    """x_img: (B, 1, 28, 28) f32; eps: (B, LATENT) f32 N(0,1) noise."""
    B = x_img.shape[0]
    if B % tile_b != 0:
        raise ValueError(f"batch {B} must be a multiple of tile_b {tile_b}")
    if tile_b % 8 != 0 and tile_b != B:
        raise ValueError("tile_b must be a multiple of 8 (or the full batch)")
    num_groups = B // tile_b

    x = x_img.reshape(B, IN_DIM)             # flatten only; bf16 cast is in-kernel
    eps = eps.astype(jnp.float32)

    stream = lambda g: (g, 0)                # per-step block (activations / outputs)
    resident = lambda g: (0, 0)              # constant block -> fetched once, stays in VMEM

    in_specs = [
        pl.BlockSpec((tile_b, IN_DIM), stream),       # x
        pl.BlockSpec((tile_b, LATENT), stream),       # eps
        pl.BlockSpec((IN_DIM, HID), resident),        # w_enc
        pl.BlockSpec((HID, 2 * LATENT), resident),    # w_heads
        pl.BlockSpec((LATENT, HID), resident),        # w_d1 (LoRA folded)
        pl.BlockSpec((HID, IN_DIM), resident),        # w_d2 (LoRA folded)
        pl.BlockSpec((8, IN_DIM), resident),          # packed vectors
    ]
    out_shape = (
        jax.ShapeDtypeStruct((B, IN_DIM), jnp.float32),       # x_recon
        jax.ShapeDtypeStruct((B, 2 * LATENT), jnp.float32),   # [mu | log_sigma]
    )
    out_specs = (
        pl.BlockSpec((tile_b, IN_DIM), stream),
        pl.BlockSpec((tile_b, 2 * LATENT), stream),
    )

    xrec, hd = pl.pallas_call(
        _lora_vae_kernel,
        grid=(num_groups,),
        in_specs=in_specs,
        out_specs=out_specs,
        out_shape=out_shape,
        compiler_params=pltpu.CompilerParams(
            # microbatch axis is embarrassingly parallel -> use both TCs on v7x
            dimension_semantics=("parallel",),
        ),
    )(x, eps, packed["w_enc"], packed["w_heads"], packed["w_d1"],
      packed["w_d2"], packed["vecs"])

    return xrec, hd[:, :LATENT], hd[:, LATENT:]


# ---------------------------------------------------------------------------
# Deterministic parameter init (shapes from the PyTorch __init__),
# already transposed to (in, out); biases / BN params as (1, dim).
# ---------------------------------------------------------------------------
def _init_params(key):
    ks = jax.random.split(key, 13)

    def nrm(k, shape, scale):
        return scale * jax.random.normal(k, shape, dtype=jnp.float32)

    return {
        # encoder Linear(784, 400)
        "w_enc": nrm(ks[0], (IN_DIM, HID), 0.02),
        "b_enc": nrm(ks[1], (1, HID), 0.02),
        # BatchNorm1d(400) affine
        "g_bn1": jnp.ones((1, HID), jnp.float32),
        "be_bn1": jnp.zeros((1, HID), jnp.float32),
        # enc_mu / enc_log_sigma : Linear(400, latent)
        "w_mu": nrm(ks[2], (HID, LATENT), 0.05),
        "b_mu": nrm(ks[3], (1, LATENT), 0.05),
        "w_ls": nrm(ks[4], (HID, LATENT), 0.05),
        "b_ls": nrm(ks[5], (1, LATENT), 0.05),
        # decoder LoRA Linear(latent, 400): frozen W + lora A (in,r), B (r,out)
        "w_d1": nrm(ks[6], (LATENT, HID), 0.05),
        "b_d1": nrm(ks[7], (1, HID), 0.02),
        "a_d1": nrm(ks[8], (LATENT, LORA_R), 0.1),
        "bb_d1": nrm(ks[9], (LORA_R, HID), 0.1),
        # second BatchNorm1d(400) affine
        "g_bn2": jnp.ones((1, HID), jnp.float32),
        "be_bn2": jnp.zeros((1, HID), jnp.float32),
        # decoder LoRA Linear(400, 784)
        "w_d2": nrm(ks[10], (HID, IN_DIM), 0.02),
        "b_d2": jnp.zeros((1, IN_DIM), jnp.float32),
        "a_d2": nrm(ks[11], (HID, LORA_R), 0.05),
        # non-zero so the LoRA-2 fold is exercised by the check
        "bb_d2": nrm(ks[12], (LORA_R, IN_DIM), 0.05),
    }


# ---------------------------------------------------------------------------
# Pure-JAX reference built from the RAW (unfolded, unpacked) parameters,
# per independent BN group, with the same bf16-operand / f32-accumulate
# matmul numerics as the kernel (HIGHEST precision so differences are only
# accumulation order / transcendental ULPs).
# ---------------------------------------------------------------------------
def _reference(x_img, eps, p, tile_b):
    f32, bf16 = jnp.float32, jnp.bfloat16
    hi = jax.lax.Precision.HIGHEST
    q = lambda a: a.astype(bf16).astype(f32)   # bf16-quantize, compute in f32
    B = x_img.shape[0]

    w_enc = q(p["w_enc"])
    w_heads = q(jnp.concatenate([p["w_mu"], p["w_ls"]], axis=1))
    b_hd = jnp.concatenate([p["b_mu"], p["b_ls"]], axis=1)
    w_d1_eff = p["w_d1"] + LORA_SCALE * (p["a_d1"] @ p["bb_d1"])
    w_d2_eff = q(p["w_d2"] + LORA_SCALE * (p["a_d2"] @ p["bb_d2"]))

    x_all = x_img.reshape(B, IN_DIM)
    outs = []
    for g in range(B // tile_b):
        sl = slice(g * tile_b, (g + 1) * tile_b)
        x = q(x_all[sl])
        h = jnp.dot(x, w_enc, precision=hi) + p["b_enc"]
        m1 = h.mean(0, keepdims=True); hc = h - m1
        v1 = (hc * hc).mean(0, keepdims=True)
        h = jnp.maximum(p["g_bn1"] * jax.lax.rsqrt(v1 + BN_EPS) * hc + p["be_bn1"], 0.0)

        hd = jnp.dot(q(h), w_heads, precision=hi) + b_hd
        mu, ls = hd[:, :LATENT], hd[:, LATENT:]
        z = mu + eps[sl] * jnp.exp(0.5 * ls)

        d1 = jnp.dot(z, w_d1_eff, precision=hi) + p["b_d1"]
        m2 = d1.mean(0, keepdims=True); dc = d1 - m2
        v2 = (dc * dc).mean(0, keepdims=True)
        d1 = jnp.maximum(p["g_bn2"] * jax.lax.rsqrt(v2 + BN_EPS) * dc + p["be_bn2"], 0.0)

        d2 = jnp.dot(q(d1), w_d2_eff, precision=hi) + p["b_d2"]
        outs.append((1.0 / (1.0 + jnp.exp(-d2)), mu, ls))

    xr = jnp.concatenate([o[0] for o in outs], axis=0)
    mu = jnp.concatenate([o[1] for o in outs], axis=0)
    ls = jnp.concatenate([o[2] for o in outs], axis=0)
    return xr, mu, ls


if __name__ == "__main__":
    key = jax.random.PRNGKey(0)
    k_param, k_x, k_eps = jax.random.split(key, 3)

    TILE_B = 8       # one BN group / one "module forward" per grid step
    NUM_GROUPS = 4   # microbatches amortizing the resident-weight DMA
    B = TILE_B * NUM_GROUPS

    x_img = jax.random.normal(k_x, (B, 1, 28, 28), dtype=jnp.float32)  # NCHW like PyTorch
    eps = jax.random.normal(k_eps, (B, LATENT), dtype=jnp.float32)     # reparameterize noise
    params = _init_params(k_param)
    packed = prepare_params(params)

    x_recon, mu, log_sigma = lora_vae_decoder_forward(x_img, eps, packed, tile_b=TILE_B)
    jax.block_until_ready((x_recon, mu, log_sigma))

    # correctness check against a pure-JAX reference with matching numerics
    r_recon, r_mu, r_ls = _reference(x_img, eps, params, TILE_B)
    assert x_recon.shape == (B, IN_DIM)
    assert mu.shape == (B, LATENT) and log_sigma.shape == (B, LATENT)
    assert jnp.allclose(mu, r_mu, atol=1e-3, rtol=1e-3)
    assert jnp.allclose(log_sigma, r_ls, atol=1e-3, rtol=1e-3)
    assert jnp.allclose(x_recon, r_recon, atol=1e-3)

    print("KERNEL_OK")
</pallas_src>

<mosaic_0001>
module attributes {stable_mosaic.version = 11 : i64} {
  func.func @_lora_vae_kernel(%arg0: i32, %arg1: memref<8x784xf32, #tpu.memory_space<vmem>>, %arg2: memref<8x2xf32, #tpu.memory_space<vmem>>, %arg3: memref<784x400xbf16, #tpu.memory_space<vmem>>, %arg4: memref<400x4xbf16, #tpu.memory_space<vmem>>, %arg5: memref<2x400xf32, #tpu.memory_space<vmem>>, %arg6: memref<400x784xbf16, #tpu.memory_space<vmem>>, %arg7: memref<8x784xf32, #tpu.memory_space<vmem>>, %arg8: memref<8x784xf32, #tpu.memory_space<vmem>>, %arg9: memref<8x4xf32, #tpu.memory_space<vmem>>) attributes {dimension_semantics = [#tpu.dimension_semantics<parallel>], iteration_bounds = array<i64: 4>, scalar_prefetch = 0 : i64, scratch_operands = 0 : i64, tpu.core_type = #tpu.core_type<tc>, window_params = [{transform_indices = @transform_0, window_bounds = array<i64: 8, 784>}, {transform_indices = @transform_1, window_bounds = array<i64: 8, 2>}, {pipeline_mode = #tpu.pipeline_mode<synchronous>, transform_indices = @transform_2, window_bounds = array<i64: 784, 400>}, {pipeline_mode = #tpu.pipeline_mode<synchronous>, transform_indices = @transform_3, window_bounds = array<i64: 400, 4>}, {pipeline_mode = #tpu.pipeline_mode<synchronous>, transform_indices = @transform_4, window_bounds = array<i64: 2, 400>}, {pipeline_mode = #tpu.pipeline_mode<synchronous>, transform_indices = @transform_5, window_bounds = array<i64: 400, 784>}, {pipeline_mode = #tpu.pipeline_mode<synchronous>, transform_indices = @transform_6, window_bounds = array<i64: 8, 784>}, {transform_indices = @transform_7, window_bounds = array<i64: 8, 784>}, {transform_indices = @transform_8, window_bounds = array<i64: 8, 4>}]} {
    %c0 = arith.constant 0 : index
    %c0_0 = arith.constant 0 : index
    %0 = vector.load %arg7[%c0, %c0_0] : memref<8x784xf32, #tpu.memory_space<vmem>>, vector<1x400xf32>
    %c1 = arith.constant 1 : index
    %c0_1 = arith.constant 0 : index
    %1 = vector.load %arg7[%c1, %c0_1] : memref<8x784xf32, #tpu.memory_space<vmem>>, vector<1x400xf32>
    %c2 = arith.constant 2 : index
    %c0_2 = arith.constant 0 : index
    %2 = vector.load %arg7[%c2, %c0_2] : memref<8x784xf32, #tpu.memory_space<vmem>>, vector<1x400xf32>
    %c3 = arith.constant 3 : index
    %c0_3 = arith.constant 0 : index
    %3 = vector.load %arg7[%c3, %c0_3] : memref<8x784xf32, #tpu.memory_space<vmem>>, vector<1x400xf32>
    %c4 = arith.constant 4 : index
    %c0_4 = arith.constant 0 : index
    %4 = vector.load %arg7[%c4, %c0_4] : memref<8x784xf32, #tpu.memory_space<vmem>>, vector<1x400xf32>
    %c5 = arith.constant 5 : index
    %c0_5 = arith.constant 0 : index
    %5 = vector.load %arg7[%c5, %c0_5] : memref<8x784xf32, #tpu.memory_space<vmem>>, vector<1x400xf32>
    %c6 = arith.constant 6 : index
    %c0_6 = arith.constant 0 : index
    %6 = vector.load %arg7[%c6, %c0_6] : memref<8x784xf32, #tpu.memory_space<vmem>>, vector<1x784xf32>
    %c7 = arith.constant 7 : index
    %c0_7 = arith.constant 0 : index
    %7 = vector.load %arg7[%c7, %c0_7] : memref<8x784xf32, #tpu.memory_space<vmem>>, vector<1x4xf32>
    %c0_8 = arith.constant 0 : index
    %c0_9 = arith.constant 0 : index
    %8 = vector.load %arg1[%c0_8, %c0_9] : memref<8x784xf32, #tpu.memory_space<vmem>>, vector<8x784xf32>
    %9 = arith.truncf %8 : vector<8x784xf32> to vector<8x784xbf16>
    %c0_10 = arith.constant 0 : index
    %c0_11 = arith.constant 0 : index
    %10 = vector.load %arg3[%c0_10, %c0_11] : memref<784x400xbf16, #tpu.memory_space<vmem>>, vector<784x400xbf16>
    %cst = arith.constant dense<0.000000e+00> : vector<8x400xf32>
    %11 = tpu.matmul %9, %10, %cst {dimension_numbers = #tpu.dot_dimension_numbers<[1], [0], [0], [1], [0, 0, 1, 1], [], []>} : vector<8x784xbf16>, vector<784x400xbf16>, vector<8x400xf32> -> vector<8x400xf32>
    %12 = vector.broadcast %0 : vector<1x400xf32> to vector<8x400xf32>
    %13 = arith.addf %11, %12 : vector<8x400xf32>
    %cst_12 = arith.constant dense<0.000000e+00> : vector<400xf32>
    %14 = vector.multi_reduction <add>, %13, %cst_12 [0] : vector<8x400xf32> to vector<400xf32>
    %15 = vector.shape_cast %14 : vector<400xf32> to vector<1x400xf32>
    %cst_13 = arith.constant 8.000000e+00 : f32
    %16 = vector.broadcast %cst_13 : f32 to vector<1x400xf32>
    %17 = arith.divf %15, %16 : vector<1x400xf32>
    %18 = vector.broadcast %17 : vector<1x400xf32> to vector<8x400xf32>
    %19 = arith.subf %13, %18 : vector<8x400xf32>
    %20 = arith.mulf %19, %19 : vector<8x400xf32>
    %cst_14 = arith.constant dense<0.000000e+00> : vector<400xf32>
    %21 = vector.multi_reduction <add>, %20, %cst_14 [0] : vector<8x400xf32> to vector<400xf32>
    %22 = vector.shape_cast %21 : vector<400xf32> to vector<1x400xf32>
    %cst_15 = arith.constant 8.000000e+00 : f32
    %23 = vector.broadcast %cst_15 : f32 to vector<1x400xf32>
    %24 = arith.divf %22, %23 : vector<1x400xf32>
    %cst_16 = arith.constant 9.99999974E-6 : f32
    %25 = vector.broadcast %cst_16 : f32 to vector<1x400xf32>
    %26 = arith.addf %24, %25 : vector<1x400xf32>
    %27 = math.rsqrt %26 : vector<1x400xf32>
    %28 = arith.mulf %1, %27 : vector<1x400xf32>
    %29 = vector.broadcast %28 : vector<1x400xf32> to vector<8x400xf32>
    %30 = arith.mulf %29, %19 : vector<8x400xf32>
    %31 = vector.broadcast %2 : vector<1x400xf32> to vector<8x400xf32>
    %32 = arith.addf %30, %31 : vector<8x400xf32>
    %cst_17 = arith.constant 0.000000e+00 : f32
    %33 = vector.broadcast %cst_17 : f32 to vector<8x400xf32>
    %34 = arith.maximumf %32, %33 : vector<8x400xf32>
    %35 = arith.truncf %34 : vector<8x400xf32> to vector<8x400xbf16>
    %c0_18 = arith.constant 0 : index
    %c0_19 = arith.constant 0 : index
    %36 = vector.load %arg4[%c0_18, %c0_19] : memref<400x4xbf16, #tpu.memory_space<vmem>>, vector<400x4xbf16>
    %cst_20 = arith.constant dense<0.000000e+00> : vector<8x4xf32>
    %37 = tpu.matmul %35, %36, %cst_20 {dimension_numbers = #tpu.dot_dimension_numbers<[1], [0], [0], [1], [0, 0, 1, 1], [], []>} : vector<8x400xbf16>, vector<400x4xbf16>, vector<8x4xf32> -> vector<8x4xf32>
    %38 = vector.broadcast %7 : vector<1x4xf32> to vector<8x4xf32>
    %39 = arith.addf %37, %38 : vector<8x4xf32>
    %40 = vector.extract_strided_slice %39 {offsets = [0, 0], sizes = [8, 2], strides = [1, 1]} : vector<8x4xf32> to vector<8x2xf32>
    %41 = vector.extract_strided_slice %39 {offsets = [0, 2], sizes = [8, 2], strides = [1, 1]} : vector<8x4xf32> to vector<8x2xf32>
    %c0_21 = arith.constant 0 : index
    %c0_22 = arith.constant 0 : index
    %42 = vector.load %arg2[%c0_21, %c0_22] : memref<8x2xf32, #tpu.memory_space<vmem>>, vector<8x2xf32>
    %cst_23 = arith.constant 5.000000e-01 : f32
    %43 = vector.broadcast %cst_23 : f32 to vector<8x2xf32>
    %44 = arith.mulf %43, %41 : vector<8x2xf32>
    %45 = math.exp %44 : vector<8x2xf32>
    %46 = arith.mulf %42, %45 : vector<8x2xf32>
    %47 = arith.addf %40, %46 : vector<8x2xf32>
    %48 = vector.extract_strided_slice %47 {offsets = [0, 0], sizes = [8, 1], strides = [1, 1]} : vector<8x2xf32> to vector<8x1xf32>
    %c0_24 = arith.constant 0 : index
    %c0_25 = arith.constant 0 : index
    %49 = vector.load %arg5[%c0_24, %c0_25] : memref<2x400xf32, #tpu.memory_space<vmem>>, vector<1x400xf32>
    %50 = vector.broadcast %48 : vector<8x1xf32> to vector<8x400xf32>
    %51 = vector.broadcast %49 : vector<1x400xf32> to vector<8x400xf32>
    %52 = arith.mulf %50, %51 : vector<8x400xf32>
    %53 = vector.extract_strided_slice %47 {offsets = [0, 1], sizes = [8, 1], strides = [1, 1]} : vector<8x2xf32> to vector<8x1xf32>
    %c1_26 = arith.constant 1 : index
    %c0_27 = arith.constant 0 : index
    %54 = vector.load %arg5[%c1_26, %c0_27] : memref<2x400xf32, #tpu.memory_space<vmem>>, vector<1x400xf32>
    %55 = vector.broadcast %53 : vector<8x1xf32> to vector<8x400xf32>
    %56 = vector.broadcast %54 : vector<1x400xf32> to vector<8x400xf32>
    %57 = arith.mulf %55, %56 : vector<8x400xf32>
    %58 = arith.addf %52, %57 : vector<8x400xf32>
    %59 = vector.broadcast %3 : vector<1x400xf32> to vector<8x400xf32>
    %60 = arith.addf %58, %59 : vector<8x400xf32>
    %cst_28 = arith.constant dense<0.000000e+00> : vector<400xf32>
    %61 = vector.multi_reduction <add>, %60, %cst_28 [0] : vector<8x400xf32> to vector<400xf32>
    %62 = vector.shape_cast %61 : vector<400xf32> to vector<1x400xf32>
    %cst_29 = arith.constant 8.000000e+00 : f32
    %63 = vector.broadcast %cst_29 : f32 to vector<1x400xf32>
    %64 = arith.divf %62, %63 : vector<1x400xf32>
    %65 = vector.broadcast %64 : vector<1x400xf32> to vector<8x400xf32>
    %66 = arith.subf %60, %65 : vector<8x400xf32>
    %67 = arith.mulf %66, %66 : vector<8x400xf32>
    %cst_30 = arith.constant dense<0.000000e+00> : vector<400xf32>
    %68 = vector.multi_reduction <add>, %67, %cst_30 [0] : vector<8x400xf32> to vector<400xf32>
    %69 = vector.shape_cast %68 : vector<400xf32> to vector<1x400xf32>
    %cst_31 = arith.constant 8.000000e+00 : f32
    %70 = vector.broadcast %cst_31 : f32 to vector<1x400xf32>
    %71 = arith.divf %69, %70 : vector<1x400xf32>
    %cst_32 = arith.constant 9.99999974E-6 : f32
    %72 = vector.broadcast %cst_32 : f32 to vector<1x400xf32>
    %73 = arith.addf %71, %72 : vector<1x400xf32>
    %74 = math.rsqrt %73 : vector<1x400xf32>
    %75 = arith.mulf %4, %74 : vector<1x400xf32>
    %76 = vector.broadcast %75 : vector<1x400xf32> to vector<8x400xf32>
    %77 = arith.mulf %76, %66 : vector<8x400xf32>
    %78 = vector.broadcast %5 : vector<1x400xf32> to vector<8x400xf32>
    %79 = arith.addf %77, %78 : vector<8x400xf32>
    %cst_33 = arith.constant 0.000000e+00 : f32
    %80 = vector.broadcast %cst_33 : f32 to vector<8x400xf32>
    %81 = arith.maximumf %79, %80 : vector<8x400xf32>
    %82 = arith.truncf %81 : vector<8x400xf32> to vector<8x400xbf16>
    %c0_34 = arith.constant 0 : index
    %c0_35 = arith.constant 0 : index
    %83 = vector.load %arg6[%c0_34, %c0_35] : memref<400x784xbf16, #tpu.memory_space<vmem>>, vector<400x784xbf16>
    %cst_36 = arith.constant dense<0.000000e+00> : vector<8x784xf32>
    %84 = tpu.matmul %82, %83, %cst_36 {dimension_numbers = #tpu.dot_dimension_numbers<[1], [0], [0], [1], [0, 0, 1, 1], [], []>} : vector<8x400xbf16>, vector<400x784xbf16>, vector<8x784xf32> -> vector<8x784xf32>
    %85 = vector.broadcast %6 : vector<1x784xf32> to vector<8x784xf32>
    %86 = arith.addf %84, %85 : vector<8x784xf32>
    %cst_37 = arith.constant 0.000000e+00 : f32
    %87 = vector.broadcast %cst_37 : f32 to vector<8x784xf32>
    %88 = arith.subf %87, %86 : vector<8x784xf32>
    %89 = math.exp %88 : vector<8x784xf32>
    %cst_38 = arith.constant 1.000000e+00 : f32
    %90 = vector.broadcast %cst_38 : f32 to vector<8x784xf32>
    %91 = arith.addf %90, %89 : vector<8x784xf32>
    %cst_39 = arith.constant 1.000000e+00 : f32
    %92 = vector.broadcast %cst_39 : f32 to vector<8x784xf32>
    %93 = arith.divf %92, %91 : vector<8x784xf32>
    %c0_40 = arith.constant 0 : index
    %c0_41 = arith.constant 0 : index
    %94 = vector.load %arg8[%c0_40, %c0_41] : memref<8x784xf32, #tpu.memory_space<vmem>>, vector<8x784xf32>
    tpu.vector_store %arg8[%c0_40, %c0_41], %93 {strides = array<i32>} : memref<8x784xf32, #tpu.memory_space<vmem>>, vector<8x784xf32>,
    %c0_42 = arith.constant 0 : index
    %c0_43 = arith.constant 0 : index
    %95 = vector.load %arg9[%c0_42, %c0_43] : memref<8x4xf32, #tpu.memory_space<vmem>>, vector<8x4xf32>
    tpu.vector_store %arg9[%c0_42, %c0_43], %39 {strides = array<i32>} : memref<8x4xf32, #tpu.memory_space<vmem>>, vector<8x4xf32>,
    return
  }
  func.func @transform_0(%arg0: i32) -> (i32, i32) {
    %c0_i32 = arith.constant 0 : i32
    %c0_i32_0 = arith.constant 0 : i32
    return %arg0, %c0_i32 : i32, i32
  }
  func.func @transform_1(%arg0: i32) -> (i32, i32) {
    %c0_i32 = arith.constant 0 : i32
    %c0_i32_0 = arith.constant 0 : i32
    return %arg0, %c0_i32 : i32, i32
  }
  func.func @transform_2(%arg0: i32) -> (i32, i32) {
    %c0_i32 = arith.constant 0 : i32
    %c0_i32_0 = arith.constant 0 : i32
    %c0_i32_1 = arith.constant 0 : i32
    return %c0_i32, %c0_i32_0 : i32, i32
  }
  func.func @transform_3(%arg0: i32) -> (i32, i32) {
    %c0_i32 = arith.constant 0 : i32
    %c0_i32_0 = arith.constant 0 : i32
    %c0_i32_1 = arith.constant 0 : i32
    return %c0_i32, %c0_i32_0 : i32, i32
  }
  func.func @transform_4(%arg0: i32) -> (i32, i32) {
    %c0_i32 = arith.constant 0 : i32
    %c0_i32_0 = arith.constant 0 : i32
    %c0_i32_1 = arith.constant 0 : i32
    return %c0_i32, %c0_i32_0 : i32, i32
  }
  func.func @transform_5(%arg0: i32) -> (i32, i32) {
    %c0_i32 = arith.constant 0 : i32
    %c0_i32_0 = arith.constant 0 : i32
    %c0_i32_1 = arith.constant 0 : i32
    return %c0_i32, %c0_i32_0 : i32, i32
  }
  func.func @transform_6(%arg0: i32) -> (i32, i32) {
    %c0_i32 = arith.constant 0 : i32
    %c0_i32_0 = arith.constant 0 : i32
    %c0_i32_1 = arith.constant 0 : i32
    return %c0_i32, %c0_i32_0 : i32, i32
  }
  func.func @transform_7(%arg0: i32) -> (i32, i32) {
    %c0_i32 = arith.constant 0 : i32
    %c0_i32_0 = arith.constant 0 : i32
    return %arg0, %c0_i32 : i32, i32
  }
  func.func @transform_8(%arg0: i32) -> (i32, i32) {
    %c0_i32 = arith.constant 0 : i32
    %c0_i32_0 = arith.constant 0 : i32
    return %arg0, %c0_i32 : i32, i32
  }
}

</mosaic_0001>

<llo_original>
// kernel: lora_vae_decoder_forward.1
$region0: #{lora_vae_decoder_forward.1}
  #allocation0 [shape = 'u32[]', space=smem, size = 0x4, offset = 0x4, fixed_abs, tag = 'smem constant byte address 0x4 - core index']
  #allocation1 [shape = 'u32[144,128]{1,0:T(1,128)}', space=vmem, size = 0x12000, scoped, tag = 'internal scratch']
  %s0 = inlined_call_operand.vmem [shape: f32[32,784], index: 0, kind: input, shape index: {}]
  %s1 = inlined_call_operand.vmem [shape: f32[32,2], index: 1, kind: input, shape index: {}]
  %s2 = inlined_call_operand.vmem [shape: bf16[784,400], index: 2, kind: input, shape index: {}]
  %s3 = inlined_call_operand.vmem [shape: bf16[400,4], index: 3, kind: input, shape index: {}]
  %s4 = inlined_call_operand.vmem [shape: f32[2,400], index: 4, kind: input, shape index: {}]
  %s5 = inlined_call_operand.vmem [shape: bf16[400,784], index: 5, kind: input, shape index: {}]
  %s6 = inlined_call_operand.vmem [shape: f32[8,784], index: 6, kind: input, shape index: {}]
  %s7 = inlined_call_operand.hbm [shape: f32[32,784], index: 7, kind: output, shape index: {0}]
  %s8 = inlined_call_operand.vmem [shape: f32[32,4], index: 8, kind: output, shape index: {1}]
  %9 = xla_tuple %s7, %s8
  %s10 = sld [smem:[#allocation0]]
  $region69: #{lora_vae_decoder_forward.1} parent=0
    _
  %s12 = ssub.s32 1, %s10
  %s13 = scalar_select 0, %s12, %s10
  $region1: #{lora_vae_decoder_forward.1} parent=0
    #allocation2 [shape = 'u8[57344]{0}', space=vmem, size = 0xe000, scoped, tag = 'output window, operand 0']
    #allocation3 [shape = 's32[2]{0}', space=sflag, size = 0x8, scoped, tag = 'scoped memory for lora_vae_decoder_forward.1']
    %14 = vsyncpa [#allocation3], 0
    %s15 = scalar_lea.sflag [#allocation3], 1
    %16 = vsyncpa %s15, 0
    loop: start=0, step=1, limit=6
    $region2: #{lora_vae_decoder_forward.1} parent=1 // loop_pre_header
      _
    $region3: #{lora_vae_decoder_forward.1} parent=1 // loop_header
      %s18 = sphi 0, %s22
      %p19 = scmp.ge.s32.totalorder %s18, 6
      %s28 = sphi 0, %s30
      %s31 = sphi 0, %s28
      %s32 = sphi 0, %s31
      %s48 = sphi 0, %s32
      %s54 = sphi 0, %s56
      %s57 = sphi 0, %s54
      %s58 = sphi 0, %s57
      %s74 = sphi 0, %s58
      %s78 = sphi 0, %s78
      %s80 = sphi 0, %s78
      %s81 = sphi 0, %s80
      %s95 = sphi 0, %s81
      %s99 = sphi 0, %s99
      %s101 = sphi 0, %s99
      %s102 = sphi 0, %s101
      %s116 = sphi 0, %s102
      %s120 = sphi 0, %s120
      %s122 = sphi 0, %s120
      %s123 = sphi 0, %s122
      %s137 = sphi 0, %s123
      %s141 = sphi 0, %s141
      %s143 = sphi 0, %s141
      %s144 = sphi 0, %s143
      %s158 = sphi 0, %s144
      %s162 = sphi 0, %s162
      %s164 = sphi 0, %s162
      %s165 = sphi 0, %s164
      %s179 = sphi 0, %s165
      %s185 = sphi 0, %s187
      %s188 = sphi 0, %s185
      %s189 = sphi 0, %s188
      %s205 = sphi 0, %s189
      %s211 = sphi 0, %s213
      %s214 = sphi 0, %s211
      %s215 = sphi 0, %s214
      %s231 = sphi 0, %s215
    $region4: #{lora_vae_decoder_forward.1} parent=1 // loop_header_branch
      %21 = sbr.rel (%p19) target = $region8
    $region5: #{lora_vae_decoder_forward.1} parent=1 // loop_body
      %s23 = ssub.s32 %s18, 1
      %s24 = ssub.s32 %s18, 2
      %s25 = sadd.s32 %s18, 1
      %s26 = ssub.s32 %s18, %s25
      %p27 = scmp.eq.s32.totalorder %s26, 0
      %s29 = sadd.s32 %s28, 1
      %s30 = scalar_select %p27, %s28, %s29
      %p33 = pneg %p27
      %p34 = scmp.eq.s32.totalorder %s18, 3
      %p35 = por %p33, %p34
      %p36 = scmp.ne.s32.totalorder %s28, %s31
      %p37 = scmp.eq.s32.totalorder %s18, 0
      %p38 = por %p36, %p37
      %p39 = scmp.ne.s32.totalorder %s28, %s31
      %p40 = scmp.eq.s32.totalorder %s23, 3
      %p41 = por %p39, %p40
      %p42 = scmp.ne.s32.totalorder %s31, %s32
      %p43 = scmp.eq.s32.totalorder %s23, 0
      %p44 = por %p42, %p43
      %p45 = scmp.ne.s32.totalorder %s31, %s32
      %p46 = scmp.eq.s32.totalorder %s24, 3
      %p47 = por %p45, %p46
      %p49 = scmp.ne.s32.totalorder %s32, %s48
      %p50 = scmp.eq.s32.totalorder %s24, 0
      %p51 = por %p49, %p50
      %s52 = ssub.s32 %s18, %s25
      %p53 = scmp.eq.s32.totalorder %s52, 0
      %s55 = sadd.s32 %s54, 1
      %s56 = scalar_select %p53, %s54, %s55
      %p59 = pneg %p53
      %p60 = scmp.eq.s32.totalorder %s18, 3
      %p61 = por %p59, %p60
      %p62 = scmp.ne.s32.totalorder %s54, %s57
      %p63 = scmp.eq.s32.totalorder %s18, 0
      %p64 = por %p62, %p63
      %p65 = scmp.ne.s32.totalorder %s54, %s57
      %p66 = scmp.eq.s32.totalorder %s23, 3
      %p67 = por %p65, %p66
      %p68 = scmp.ne.s32.totalorder %s57, %s58
      %p69 = scmp.eq.s32.totalorder %s23, 0
      %p70 = por %p68, %p69
      %p71 = scmp.ne.s32.totalorder %s57, %s58
      %p72 = scmp.eq.s32.totalorder %s24, 3
      %p73 = por %p71, %p72
      %p75 = scmp.ne.s32.totalorder %s58, %s74
      %p76 = scmp.eq.s32.totalorder %s24, 0
      %p77 = por %p75, %p76
      %s79 = sadd.s32 %s78, 1
      %p82 = scmp.eq.s32.totalorder %s18, 3
      %p83 = scmp.ne.s32.totalorder %s78, %s80
      %p84 = scmp.eq.s32.totalorder %s18, 0
      %p85 = por %p83, %p84
      %p86 = scmp.ne.s32.totalorder %s78, %s80
      %p87 = scmp.eq.s32.totalorder %s23, 3
      %p88 = por %p86, %p87
      %p89 = scmp.ne.s32.totalorder %s80, %s81
      %p90 = scmp.eq.s32.totalorder %s23, 0
      %p91 = por %p89, %p90
      %p92 = scmp.ne.s32.totalorder %s80, %s81
      %p93 = scmp.eq.s32.totalorder %s24, 3
      %p94 = por %p92, %p93
      %p96 = scmp.ne.s32.totalorder %s81, %s95
      %p97 = scmp.eq.s32.totalorder %s24, 0
      %p98 = por %p96, %p97
      %s100 = sadd.s32 %s99, 1
      %p103 = scmp.eq.s32.totalorder %s18, 3
      %p104 = scmp.ne.s32.totalorder %s99, %s101
      %p105 = scmp.eq.s32.totalorder %s18, 0
      %p106 = por %p104, %p105
      %p107 = scmp.ne.s32.totalorder %s99, %s101
      %p108 = scmp.eq.s32.totalorder %s23, 3
      %p109 = por %p107, %p108
      %p110 = scmp.ne.s32.totalorder %s101, %s102
      %p111 = scmp.eq.s32.totalorder %s23, 0
      %p112 = por %p110, %p111
      %p113 = scmp.ne.s32.totalorder %s101, %s102
      %p114 = scmp.eq.s32.totalorder %s24, 3
      %p115 = por %p113, %p114
      %p117 = scmp.ne.s32.totalorder %s102, %s116
      %p118 = scmp.eq.s32.totalorder %s24, 0
      %p119 = por %p117, %p118
      %s121 = sadd.s32 %s120, 1
      %p124 = scmp.eq.s32.totalorder %s18, 3
      %p125 = scmp.ne.s32.totalorder %s120, %s122
      %p126 = scmp.eq.s32.totalorder %s18, 0
      %p127 = por %p125, %p126
      %p128 = scmp.ne.s32.totalorder %s120, %s122
      %p129 = scmp.eq.s32.totalorder %s23, 3
      %p130 = por %p128, %p129
      %p131 = scmp.ne.s32.totalorder %s122, %s123
      %p132 = scmp.eq.s32.totalorder %s23, 0
      %p133 = por %p131, %p132
      %p134 = scmp.ne.s32.totalorder %s122, %s123
      %p135 = scmp.eq.s32.totalorder %s24, 3
      %p136 = por %p134, %p135
      %p138 = scmp.ne.s32.totalorder %s123, %s137
      %p139 = scmp.eq.s32.totalorder %s24, 0
      %p140 = por %p138, %p139
      %s142 = sadd.s32 %s141, 1
      %p145 = scmp.eq.s32.totalorder %s18, 3
      %p146 = scmp.ne.s32.totalorder %s141, %s143
      %p147 = scmp.eq.s32.totalorder %s18, 0
      %p148 = por %p146, %p147
      %p149 = scmp.ne.s32.totalorder %s141, %s143
      %p150 = scmp.eq.s32.totalorder %s23, 3
      %p151 = por %p149, %p150
      %p152 = scmp.ne.s32.totalorder %s143, %s144
      %p153 = scmp.eq.s32.totalorder %s23, 0
      %p154 = por %p152, %p153
      %p155 = scmp.ne.s32.totalorder %s143, %s144
      %p156 = scmp.eq.s32.totalorder %s24, 3
      %p157 = por %p155, %p156
      %p159 = scmp.ne.s32.totalorder %s144, %s158
      %p160 = scmp.eq.s32.totalorder %s24, 0
      %p161 = por %p159, %p160
      %s163 = sadd.s32 %s162, 1
      %p166 = scmp.eq.s32.totalorder %s18, 3
      %p167 = scmp.ne.s32.totalorder %s162, %s164
      %p168 = scmp.eq.s32.totalorder %s18, 0
      %p169 = por %p167, %p168
      %p170 = scmp.ne.s32.totalorder %s162, %s164
      %p171 = scmp.eq.s32.totalorder %s23, 3
      %p172 = por %p170, %p171
      %p173 = scmp.ne.s32.totalorder %s164, %s165
      %p174 = scmp.eq.s32.totalorder %s23, 0
      %p175 = por %p173, %p174
      %p176 = scmp.ne.s32.totalorder %s164, %s165
      %p177 = scmp.eq.s32.totalorder %s24, 3
      %p178 = por %p176, %p177
      %p180 = scmp.ne.s32.totalorder %s165, %s179
      %p181 = scmp.eq.s32.totalorder %s24, 0
      %p182 = por %p180, %p181
      %s183 = ssub.s32 %s18, %s25
      %p184 = scmp.eq.s32.totalorder %s183, 0
      %s186 = sadd.s32 %s185, 1
      %s187 = scalar_select %p184, %s185, %s186
      %p190 = pneg %p184
      %p191 = scmp.eq.s32.totalorder %s18, 3
      %p192 = por %p190, %p191
      %p193 = scmp.ne.s32.totalorder %s185, %s188
      %p194 = scmp.eq.s32.totalorder %s18, 0
      %p195 = por %p193, %p194
      %p196 = scmp.ne.s32.totalorder %s185, %s188
      %p197 = scmp.eq.s32.totalorder %s23, 3
      %p198 = por %p196, %p197
      %p199 = scmp.ne.s32.totalorder %s188, %s189
      %p200 = scmp.eq.s32.totalorder %s23, 0
      %p201 = por %p199, %p200
      %p202 = scmp.ne.s32.totalorder %s188, %s189
      %p203 = scmp.eq.s32.totalorder %s24, 3
      %p204 = por %p202, %p203
      %p206 = scmp.ne.s32.totalorder %s189, %s205
      %p207 = scmp.eq.s32.totalorder %s24, 0
      %p208 = por %p206, %p207
      %s209 = ssub.s32 %s18, %s25
      %p210 = scmp.eq.s32.totalorder %s209, 0
      %s212 = sadd.s32 %s211, 1
      %s213 = scalar_select %p210, %s211, %s212
      %p216 = pneg %p210
      %p217 = scmp.eq.s32.totalorder %s18, 3
      %p218 = por %p216, %p217
      %p219 = scmp.ne.s32.totalorder %s211, %s214
      %p220 = scmp.eq.s32.totalorder %s18, 0
      %p221 = por %p219, %p220
      %p222 = scmp.ne.s32.totalorder %s211, %s214
      %p223 = scmp.eq.s32.totalorder %s23, 3
      %p224 = por %p222, %p223
      %p225 = scmp.ne.s32.totalorder %s214, %s215
      %p226 = scmp.eq.s32.totalorder %s23, 0
      %p227 = por %p225, %p226
      %p228 = scmp.ne.s32.totalorder %s214, %s215
      %p229 = scmp.eq.s32.totalorder %s24, 3
      %p230 = por %p228, %p229
      %p232 = scmp.ne.s32.totalorder %s215, %s231
      %p233 = scmp.eq.s32.totalorder %s24, 0
      %p234 = por %p232, %p233
      %p235 = scmp.le.s32.totalorder 1, %s18
      %p236 = scmp.lt.s32.totalorder %s18, 5
      %p237 = pnand %p235, %p236
      %p238 = pneg %p237
      // Predicated region
      $region9: #{lora_vae_decoder_forward.1} parent=5 // pred_check
        _
      $region10: #{lora_vae_decoder_forward.1} parent=5 // pred_check_branch
        %240 = sbr.rel (%p237) target = $region12
      $region11: #{lora_vae_decoder_forward.1} parent=5 // pred_region
        %s241 = ssub.s32 %s18, 1
        // Predicated region
        $region13: #{lora_vae_decoder_forward.1} parent=11 // pred_check
          %p242 = pneg %p91
        $region14: #{lora_vae_decoder_forward.1} parent=11 // pred_check_branch
          %244 = sbr.rel (%p242) target = $region16
        $region15: #{lora_vae_decoder_forward.1} parent=11 // pred_region
          _
        $region16: #{lora_vae_decoder_forward.1} parent=11 // pred_fallthru
          _
        // Predicated region
        $region17: #{lora_vae_decoder_forward.1} parent=11 // pred_check
          %p245 = pneg %p112
        $region18: #{lora_vae_decoder_forward.1} parent=11 // pred_check_branch
          %247 = sbr.rel (%p245) target = $region20
        $region19: #{lora_vae_decoder_forward.1} parent=11 // pred_region
          _
        $region20: #{lora_vae_decoder_forward.1} parent=11 // pred_fallthru
          _
        // Predicated region
        $region21: #{lora_vae_decoder_forward.1} parent=11 // pred_check
          %p248 = pneg %p133
        $region22: #{lora_vae_decoder_forward.1} parent=11 // pred_check_branch
          %250 = sbr.rel (%p248) target = $region24
        $region23: #{lora_vae_decoder_forward.1} parent=11 // pred_region
          _
        $region24: #{lora_vae_decoder_forward.1} parent=11 // pred_fallthru
          _
        // Predicated region
        $region25: #{lora_vae_decoder_forward.1} parent=11 // pred_check
          %p251 = pneg %p154
        $region26: #{lora_vae_decoder_forward.1} parent=11 // pred_check_branch
          %253 = sbr.rel (%p251) target = $region28
        $region27: #{lora_vae_decoder_forward.1} parent=11 // pred_region
          _
        $region28: #{lora_vae_decoder_forward.1} parent=11 // pred_fallthru
          _
        // Predicated region
        $region29: #{lora_vae_decoder_forward.1} parent=11 // pred_check
          %p254 = pneg %p175
        $region30: #{lora_vae_decoder_forward.1} parent=11 // pred_check_branch
          %256 = sbr.rel (%p254) target = $region32
        $region31: #{lora_vae_decoder_forward.1} parent=11 // pred_region
          _
        $region32: #{lora_vae_decoder_forward.1} parent=11 // pred_fallthru
          _
      $region12: #{lora_vae_decoder_forward.1} parent=5 // pred_fallthru
        _
      %p257 = scmp.lt.s32.totalorder %s18, 4
      // Predicated region
      $region33: #{lora_vae_decoder_forward.1} parent=5 // pred_check
        %p258 = pneg %p257
      $region34: #{lora_vae_decoder_forward.1} parent=5 // pred_check_branch
        %260 = sbr.rel (%p258) target = $region36
      $region35: #{lora_vae_decoder_forward.1} parent=5 // pred_region
        // Predicated region
        $region37: #{lora_vae_decoder_forward.1} parent=35 // pred_check
          %p261 = pneg %p38
        $region38: #{lora_vae_decoder_forward.1} parent=35 // pred_check_branch
          %263 = sbr.rel (%p261) target = $region40
        $region39: #{lora_vae_decoder_forward.1} parent=35 // pred_region
          %p264 = scmp.lt.s32.totalorder %s18, 3
          %s265 = scalar_select %p264, %s18, 3
          %s266 = smul.addr %s265, 7
          %s267 = smul.addr %s266, 8
          %s268 = scalar_lea.vmem %s0, %s267
        $region40: #{lora_vae_decoder_forward.1} parent=35 // pred_fallthru
          _
        // Predicated region
        $region41: #{lora_vae_decoder_forward.1} parent=35 // pred_check
          %p269 = pneg %p64
        $region42: #{lora_vae_decoder_forward.1} parent=35 // pred_check_branch
          %271 = sbr.rel (%p269) target = $region44
        $region43: #{lora_vae_decoder_forward.1} parent=35 // pred_region
          %p272 = scmp.lt.s32.totalorder %s18, 3
          %s273 = scalar_select %p272, %s18, 3
          %s274 = smul.addr %s273, 8
          %s275 = scalar_lea.vmem %s1, %s274
        $region44: #{lora_vae_decoder_forward.1} parent=35 // pred_fallthru
          _
      $region36: #{lora_vae_decoder_forward.1} parent=5 // pred_fallthru
        _
      %p276 = scmp.le.s32.totalorder 1, %s18
      %p277 = scmp.lt.s32.totalorder %s18, 5
      %p278 = pnand %p276, %p277
      %p279 = pneg %p278
      // Predicated region
      $region45: #{lora_vae_decoder_forward.1} parent=5 // pred_check
        _
      $region46: #{lora_vae_decoder_forward.1} parent=5 // pred_check_branch
        %281 = sbr.rel (%p278) target = $region48
      $region47: #{lora_vae_decoder_forward.1} parent=5 // pred_region
        %s282 = ssub.s32 %s18, 1
        %p283 = scmp.lt.s32.totalorder %s23, 3
        %s284 = scalar_select %p283, %s23, 3
        %s285 = smul.addr %s284, 7
        %s286 = smul.addr %s285, 8
        %s287 = scalar_lea.vmem %s0, %s286
        %p288 = pneg %p44
        %p289 = pneg %p41
        %p290 = scmp.lt.s32.totalorder %s23, 3
        %s291 = scalar_select %p290, %s23, 3
        %s292 = smul.addr %s291, 8
        %s293 = scalar_lea.vmem %s1, %s292
        %p294 = pneg %p70
        %p295 = pneg %p67
        %p296 = pneg %p91
        %p297 = pneg %p88
        %p298 = pneg %p112
        %p299 = pneg %p109
        %p300 = pneg %p133
        %p301 = pneg %p130
        %p302 = pneg %p154
        %p303 = pneg %p151
        %p304 = pneg %p175
        %p305 = pneg %p172
        %p306 = pneg %p201
        %p307 = pneg %p198
        %s308 = sand.u32 %s188, 1
        %s309 = scalar_lea.sflag [#allocation3], %s308
        %s310 = sand.u32 %s188, 1
        %s311 = smul.addr %s310, 56
        %s312 = scalar_lea.vmem [#allocation2], %s311
        %p313 = pneg %p227
        %p314 = pneg %p224
        %p315 = scmp.lt.s32.totalorder %s23, 3
        %s316 = scalar_select %p315, %s23, 3
        %s317 = smul.addr %s316, 8
        %s318 = scalar_lea.vmem %s8, %s317
        %p319 = scmp.lt.s32.totalorder %s23, 3
        %s320 = scalar_select %p319, %s23, 3
        %s321 = smul.addr %s320, 7
        %s322 = smul.addr %s321, 8
        %s323 = scalar_lea.vmem %s0, %s322
        %p324 = scmp.lt.s32.totalorder %s23, 3
        %s325 = scalar_select %p324, %s23, 3
        %s326 = smul.addr %s325, 8
        %s327 = scalar_lea.vmem %s1, %s326
        %p328 = scmp.lt.s32.totalorder %s23, 3
        %s329 = scalar_select %p328, %s23, 3
        %s330 = smul.addr %s329, 8
        %s331 = scalar_lea.vmem %s8, %s330
        %v333 = vld [vmem:[%s6] ss:$8 sm:$0xf]
        %s334 = scalar_lea.vmem %s6, 1
        %v335 = vld [vmem:[%s334] ss:$8 sm:$0xf]
        %s336 = scalar_lea.vmem %s6, 2
        %v337 = vld [vmem:[%s336] ss:$8 sm:$0xf]
        %s338 = scalar_lea.vmem %s6, 3
        %v339 = vld [vmem:[%s338] ss:$8 sm:$0xf]
        %s340 = scalar_lea.vmem %s6, 4
        %v341 = vld [vmem:[%s340] ss:$8 sm:$0xf]
        %s342 = scalar_lea.vmem %s6, 5
        %v343 = vld [vmem:[%s342] ss:$8 sm:$0xf]
        %s344 = scalar_lea.vmem %s6, 6
        %v345 = vld [vmem:[%s344] ss:$8 sm:$0xf]
        %v346 = vld [vmem:[%s344] ss:$8 sm:$0x70]
        %v347 = vor.u32 %v345, %v346
        %v348 = vld [vmem:[%s6 + $0x7] ss:$0 sm:$0xff]
        %v349 = vld [vmem:[%s323] sm:$0xff]
        %v350 = vld [vmem:[%s323 + $0x8] sm:$0xff]
        %v351 = vld [vmem:[%s323 + $0x10] sm:$0xff]
        %v352 = vld [vmem:[%s323 + $0x18] sm:$0xff]
        %v353 = vld [vmem:[%s323 + $0x20] sm:$0xff]
        %v354 = vld [vmem:[%s323 + $0x28] sm:$0xff]
        %v355 = vld [vmem:[%s323 + $0x30] sm:$0xff]
        %v356 = vpack.c.bf16 %v349, %v349
        %v357 = vpack.c.bf16 %v350, %v350
        %v358 = vpack.c.bf16 %v351, %v351
        %v359 = vpack.c.bf16 %v352, %v352
        %v360 = vpack.c.bf16 %v353, %v353
        %v361 = vpack.c.bf16 %v354, %v354
        %v362 = vpack.c.bf16 %v355, %v355
        %v363 = vld [vmem:[%s2] sm:$0xff]
        %v364 = vld [vmem:[%s2 + $0x8] sm:$0xff]
        %v365 = vld [vmem:[%s2 + $0x10] sm:$0xff]
        %v366 = vld [vmem:[%s2 + $0x18] sm:$0xff]
        %v367 = vld [vmem:[%s2 + $0x20] sm:$0xff]
        %v368 = vld [vmem:[%s2 + $0x28] sm:$0xff]
        %v369 = vld [vmem:[%s2 + $0x30] sm:$0xff]
        %v370 = vld [vmem:[%s2 + $0x38] sm:$0xff]
        %v371 = vld [vmem:[%s2 + $0x40] sm:$0xff]
        %v372 = vld [vmem:[%s2 + $0x48] sm:$0xff]
        %v373 = vld [vmem:[%s2 + $0x50] sm:$0xff]
        %v374 = vld [vmem:[%s2 + $0x58] sm:$0xff]
        %v375 = vld [vmem:[%s2 + $0x60] sm:$0xff]
        %v376 = vld [vmem:[%s2 + $0x68] sm:$0xff]
        %v377 = vld [vmem:[%s2 + $0x70] sm:$0xff]
        %v378 = vld [vmem:[%s2 + $0x78] sm:$0xff]
        %v379 = vld [vmem:[%s2 + $0x80] sm:$0xff]
        %v380 = vld [vmem:[%s2 + $0x88] sm:$0xff]
        %v381 = vld [vmem:[%s2 + $0x90] sm:$0xff]
        %v382 = vld [vmem:[%s2 + $0x98] sm:$0xff]
        %v383 = vld [vmem:[%s2 + $0xa0] sm:$0xff]
        %v384 = vld [vmem:[%s2 + $0xa8] sm:$0xff]
        %v385 = vld [vmem:[%s2 + $0xb0] sm:$0xff]
        %v386 = vld [vmem:[%s2 + $0xb8] sm:$0xff]
        %v387 = vld [vmem:[%s2 + $0xc0] sm:$0xff]
        %v388 = vld [vmem:[%s2 + $0xc8] sm:$0xff]
        %v389 = vld [vmem:[%s2 + $0xd0] sm:$0xff]
        %v390 = vld [vmem:[%s2 + $0xd8] sm:$0xff]
        %v391 = vld [vmem:[%s2 + $0xe0] sm:$0xff]
        %v392 = vld [vmem:[%s2 + $0xe8] sm:$0xff]
        %v393 = vld [vmem:[%s2 + $0xf0] sm:$0xff]
        %v394 = vld [vmem:[%s2 + $0xf8] sm:$0xff]
        %v395 = vld [vmem:[%s2 + $0x100] sm:$0xff]
        %v396 = vld [vmem:[%s2 + $0x108] sm:$0xff]
        %v397 = vld [vmem:[%s2 + $0x110] sm:$0xff]
        %v398 = vld [vmem:[%s2 + $0x118] sm:$0xff]
        %v399 = vld [vmem:[%s2 + $0x120] sm:$0xff]
        %v400 = vld [vmem:[%s2 + $0x128] sm:$0xff]
        %v401 = vld [vmem:[%s2 + $0x130] sm:$0xff]
        %v402 = vld [vmem:[%s2 + $0x138] sm:$0xff]
        %v403 = vld [vmem:[%s2 + $0x140] sm:$0xff]
        %v404 = vld [vmem:[%s2 + $0x148] sm:$0xff]
        %v405 = vld [vmem:[%s2 + $0x150] sm:$0xff]
        %v406 = vld [vmem:[%s2 + $0x158] sm:$0xff]
        %v407 = vld [vmem:[%s2 + $0x160] sm:$0xff]
        %v408 = vld [vmem:[%s2 + $0x168] sm:$0xff]
        %v409 = vld [vmem:[%s2 + $0x170] sm:$0xff]
        %v410 = vld [vmem:[%s2 + $0x178] sm:$0xff]
        %v411 = vld [vmem:[%s2 + $0x180] sm:$0xff]
        %v412 = vld [vmem:[%s2 + $0x188] sm:$0xff]
        %v413 = vld [vmem:[%s2 + $0x190] sm:$0xff]
        %v414 = vld [vmem:[%s2 + $0x198] sm:$0xff]
        %v415 = vld [vmem:[%s2 + $0x1a0] sm:$0xff]
        %v416 = vld [vmem:[%s2 + $0x1a8] sm:$0xff]
        %v417 = vld [vmem:[%s2 + $0x1b0] sm:$0xff]
        %v418 = vld [vmem:[%s2 + $0x1b8] sm:$0xff]
        %v419 = vld [vmem:[%s2 + $0x1c0] sm:$0xff]
        %v420 = vld [vmem:[%s2 + $0x1c8] sm:$0xff]
        %v421 = vld [vmem:[%s2 + $0x1d0] sm:$0xff]
        %v422 = vld [vmem:[%s2 + $0x1d8] sm:$0xff]
        %v423 = vld [vmem:[%s2 + $0x1e0] sm:$0xff]
        %v424 = vld [vmem:[%s2 + $0x1e8] sm:$0xff]
        %v425 = vld [vmem:[%s2 + $0x1f0] sm:$0xff]
        %v426 = vld [vmem:[%s2 + $0x1f8] sm:$0xff]
        %v427 = vld [vmem:[%s2 + $0x200] sm:$0xff]
        %v428 = vld [vmem:[%s2 + $0x208] sm:$0xff]
        %v429 = vld [vmem:[%s2 + $0x210] sm:$0xff]
        %v430 = vld [vmem:[%s2 + $0x218] sm:$0xff]
        %v431 = vld [vmem:[%s2 + $0x220] sm:$0xff]
        %v432 = vld [vmem:[%s2 + $0x228] sm:$0xff]
        %v433 = vld [vmem:[%s2 + $0x230] sm:$0xff]
        %v434 = vld [vmem:[%s2 + $0x238] sm:$0xff]
        %v435 = vld [vmem:[%s2 + $0x240] sm:$0xff]
        %v436 = vld [vmem:[%s2 + $0x248] sm:$0xff]
        %v437 = vld [vmem:[%s2 + $0x250] sm:$0xff]
        %v438 = vld [vmem:[%s2 + $0x258] sm:$0xff]
        %v439 = vld [vmem:[%s2 + $0x260] sm:$0xff]
        %v440 = vld [vmem:[%s2 + $0x268] sm:$0xff]
        %v441 = vld [vmem:[%s2 + $0x270] sm:$0xff]
        %v442 = vld [vmem:[%s2 + $0x278] sm:$0xff]
        %v443 = vld [vmem:[%s2 + $0x280] sm:$0xff]
        %v444 = vld [vmem:[%s2 + $0x288] sm:$0xff]
        %v445 = vld [vmem:[%s2 + $0x290] sm:$0xff]
        %v446 = vld [vmem:[%s2 + $0x298] sm:$0xff]
        %v447 = vld [vmem:[%s2 + $0x2a0] sm:$0xff]
        %v448 = vld [vmem:[%s2 + $0x2a8] sm:$0xff]
        %v449 = vld [vmem:[%s2 + $0x2b0] sm:$0xff]
        %v450 = vld [vmem:[%s2 + $0x2b8] sm:$0xff]
        %v451 = vld [vmem:[%s2 + $0x2c0] sm:$0xff]
        %v452 = vld [vmem:[%s2 + $0x2c8] sm:$0xff]
        %v453 = vld [vmem:[%s2 + $0x2d0] sm:$0xff]
        %v454 = vld [vmem:[%s2 + $0x2d8] sm:$0xff]
        %v455 = vld [vmem:[%s2 + $0x2e0] sm:$0xff]
        %v456 = vld [vmem:[%s2 + $0x2e8] sm:$0xff]
        %v457 = vld [vmem:[%s2 + $0x2f0] sm:$0xff]
        %v458 = vld [vmem:[%s2 + $0x2f8] sm:$0xff]
        %v459 = vld [vmem:[%s2 + $0x300] sm:$0xff]
        %v460 = vld [vmem:[%s2 + $0x308] sm:$0xff]
        %v461 = vld [vmem:[%s2 + $0x310] sm:$0xff]
        %v462 = vld [vmem:[%s2 + $0x318] sm:$0xff]
        %v463 = vld [vmem:[%s2 + $0x320] sm:$0xff]
        %v464 = vld [vmem:[%s2 + $0x328] sm:$0xff]
        %v465 = vld [vmem:[%s2 + $0x330] sm:$0xff]
        %v466 = vld [vmem:[%s2 + $0x338] sm:$0xff]
        %v467 = vld [vmem:[%s2 + $0x340] sm:$0xff]
        %v468 = vld [vmem:[%s2 + $0x348] sm:$0xff]
        %v469 = vld [vmem:[%s2 + $0x350] sm:$0xff]
        %v470 = vld [vmem:[%s2 + $0x358] sm:$0xff]
        %v471 = vld [vmem:[%s2 + $0x360] sm:$0xff]
        %v472 = vld [vmem:[%s2 + $0x368] sm:$0xff]
        %v473 = vld [vmem:[%s2 + $0x370] sm:$0xff]
        %v474 = vld [vmem:[%s2 + $0x378] sm:$0xff]
        %v475 = vld [vmem:[%s2 + $0x380] sm:$0xff]
        %v476 = vld [vmem:[%s2 + $0x388] sm:$0xff]
        %v477 = vld [vmem:[%s2 + $0x390] sm:$0xff]
        %v478 = vld [vmem:[%s2 + $0x398] sm:$0xff]
        %v479 = vld [vmem:[%s2 + $0x3a0] sm:$0xff]
        %v480 = vld [vmem:[%s2 + $0x3a8] sm:$0xff]
        %v481 = vld [vmem:[%s2 + $0x3b0] sm:$0xff]
        %v482 = vld [vmem:[%s2 + $0x3b8] sm:$0xff]
        %v483 = vld [vmem:[%s2 + $0x3c0] sm:$0xff]
        %v484 = vld [vmem:[%s2 + $0x3c8] sm:$0xff]
        %v485 = vld [vmem:[%s2 + $0x3d0] sm:$0xff]
        %v486 = vld [vmem:[%s2 + $0x3d8] sm:$0xff]
        %v487 = vld [vmem:[%s2 + $0x3e0] sm:$0xff]
        %v488 = vld [vmem:[%s2 + $0x3e8] sm:$0xff]
        %v489 = vld [vmem:[%s2 + $0x3f0] sm:$0xff]
        %v490 = vld [vmem:[%s2 + $0x3f8] sm:$0xff]
        %v491 = vld [vmem:[%s2 + $0x400] sm:$0xff]
        %v492 = vld [vmem:[%s2 + $0x408] sm:$0xff]
        %v493 = vld [vmem:[%s2 + $0x410] sm:$0xff]
        %v494 = vld [vmem:[%s2 + $0x418] sm:$0xff]
        %v495 = vld [vmem:[%s2 + $0x420] sm:$0xff]
        %v496 = vld [vmem:[%s2 + $0x428] sm:$0xff]
        %v497 = vld [vmem:[%s2 + $0x430] sm:$0xff]
        %v498 = vld [vmem:[%s2 + $0x438] sm:$0xff]
        %v499 = vld [vmem:[%s2 + $0x440] sm:$0xff]
        %v500 = vld [vmem:[%s2 + $0x448] sm:$0xff]
        %v501 = vld [vmem:[%s2 + $0x450] sm:$0xff]
        %v502 = vld [vmem:[%s2 + $0x458] sm:$0xff]
        %v503 = vld [vmem:[%s2 + $0x460] sm:$0xff]
        %v504 = vld [vmem:[%s2 + $0x468] sm:$0xff]
        %v505 = vld [vmem:[%s2 + $0x470] sm:$0xff]
        %v506 = vld [vmem:[%s2 + $0x478] sm:$0xff]
        %v507 = vld [vmem:[%s2 + $0x480] sm:$0xff]
        %v508 = vld [vmem:[%s2 + $0x488] sm:$0xff]
        %v509 = vld [vmem:[%s2 + $0x490] sm:$0xff]
        %v510 = vld [vmem:[%s2 + $0x498] sm:$0xff]
        %v511 = vld [vmem:[%s2 + $0x4a0] sm:$0xff]
        %v512 = vld [vmem:[%s2 + $0x4a8] sm:$0xff]
        %v513 = vld [vmem:[%s2 + $0x4b0] sm:$0xff]
        %v514 = vld [vmem:[%s2 + $0x4b8] sm:$0xff]
        %v515 = vld [vmem:[%s2 + $0x4c0] sm:$0xff]
        %v516 = vld [vmem:[%s2 + $0x4c8] sm:$0xff]
        %v517 = vld [vmem:[%s2 + $0x4d0] sm:$0xff]
        %v518 = vld [vmem:[%s2 + $0x4d8] sm:$0xff]
        %v519 = vld [vmem:[%s2 + $0x4e0] sm:$0xff]
        %v520 = vld [vmem:[%s2 + $0x4e8] sm:$0xff]
        %v521 = vld [vmem:[%s2 + $0x4f0] sm:$0xff]
        %v522 = vld [vmem:[%s2 + $0x4f8] sm:$0xff]
        %v523 = vld [vmem:[%s2 + $0x500] sm:$0xff]
        %v524 = vld [vmem:[%s2 + $0x508] sm:$0xff]
        %v525 = vld [vmem:[%s2 + $0x510] sm:$0xff]
        %v526 = vld [vmem:[%s2 + $0x518] sm:$0xff]
        %v527 = vld [vmem:[%s2 + $0x520] sm:$0xff]
        %v528 = vld [vmem:[%s2 + $0x528] sm:$0xff]
        %v529 = vld [vmem:[%s2 + $0x530] sm:$0xff]
        %v530 = vld [vmem:[%s2 + $0x538] sm:$0xff]
        %v531 = vld [vmem:[%s2 + $0x540] sm:$0xff]
        %v532 = vld [vmem:[%s2 + $0x548] sm:$0xff]
        %v533 = vld [vmem:[%s2 + $0x550] sm:$0xff]
        %v534 = vld [vmem:[%s2 + $0x558] sm:$0xff]
        %v535 = vld [vmem:[%s2 + $0x560] sm:$0xff]
        %v536 = vld [vmem:[%s2 + $0x568] sm:$0xff]
        %v537 = vld [vmem:[%s2 + $0x570] sm:$0xff]
        %v538 = vld [vmem:[%s2 + $0x578] sm:$0xff]
        %v539 = vld [vmem:[%s2 + $0x580] sm:$0xff]
        %v540 = vld [vmem:[%s2 + $0x588] sm:$0xff]
        %v541 = vld [vmem:[%s2 + $0x590] sm:$0xff]
        %v542 = vld [vmem:[%s2 + $0x598] sm:$0xff]
        %v543 = vld [vmem:[%s2 + $0x5a0] sm:$0xff]
        %v544 = vld [vmem:[%s2 + $0x5a8] sm:$0xff]
        %v545 = vld [vmem:[%s2 + $0x5b0] sm:$0xff]
        %v546 = vld [vmem:[%s2 + $0x5b8] sm:$0xff]
        %v547 = vld [vmem:[%s2 + $0x5c0] sm:$0xff]
        %v548 = vld [vmem:[%s2 + $0x5c8] sm:$0xff]
        %v549 = vld [vmem:[%s2 + $0x5d0] sm:$0xff]
        %v550 = vld [vmem:[%s2 + $0x5d8] sm:$0xff]
        %v551 = vld [vmem:[%s2 + $0x5e0] sm:$0xff]
        %v552 = vld [vmem:[%s2 + $0x5e8] sm:$0xff]
        %v553 = vld [vmem:[%s2 + $0x5f0] sm:$0xff]
        %v554 = vld [vmem:[%s2 + $0x5f8] sm:$0xff]
        %v555 = vld [vmem:[%s2 + $0x600] sm:$0xff]
        %v556 = vld [vmem:[%s2 + $0x608] sm:$0xff]
        %v557 = vld [vmem:[%s2 + $0x610] sm:$0xff]
        %v558 = vld [vmem:[%s2 + $0x618] sm:$0xff]
        %v560 = vlaneseq
        %v561 = vshrl.u32 %v560, 7
        %v562 = vsub.s32 0, %v561
        %v563 = vrot.slane %v333, %v562
        %v564 = vlaneseq
        %v565 = vshrl.u32 %v564, 7
        %v566 = vsub.s32 1, %v565
        %v567 = vrot.slane %v333, %v566
        %v568 = vlaneseq
        %v569 = vshrl.u32 %v568, 7
        %v570 = vsub.s32 2, %v569
        %v571 = vrot.slane %v333, %v570
        %v572 = vlaneseq
        %v573 = vshrl.u32 %v572, 7
        %v574 = vsub.s32 3, %v573
        %v575 = vrot.slane %v333, %v574
        %v776 = vunpack.c.l.b16 %v363
        %v777 = vunpack.c.h.b16 %v363
        %v778 = vunpack.c.l.b16 %v364
        %v779 = vunpack.c.h.b16 %v364
        %v780 = vunpack.c.l.b16 %v365
        %v781 = vunpack.c.h.b16 %v365
        %v782 = vunpack.c.l.b16 %v366
        %v783 = vunpack.c.h.b16 %v366
        %v784 = vunpack.c.l.b16 %v367
        %v785 = vunpack.c.h.b16 %v367
        %v786 = vunpack.c.l.b16 %v368
        %v787 = vunpack.c.h.b16 %v368
        %v788 = vunpack.c.l.b16 %v369
        %v789 = vunpack.c.h.b16 %v369
        %v790 = vunpack.c.l.b16 %v370
        %v791 = vunpack.c.h.b16 %v370
        %v792 = vunpack.c.l.b16 %v371
        %v793 = vunpack.c.h.b16 %v371
        %v794 = vunpack.c.l.b16 %v372
        %v795 = vunpack.c.h.b16 %v372
        %v796 = vunpack.c.l.b16 %v373
        %v797 = vunpack.c.h.b16 %v373
        %v798 = vunpack.c.l.b16 %v374
        %v799 = vunpack.c.h.b16 %v374
        %v800 = vunpack.c.l.b16 %v375
        %v801 = vunpack.c.h.b16 %v375
        %v802 = vunpack.c.l.b16 %v376
        %v803 = vunpack.c.h.b16 %v376
        %v804 = vunpack.c.l.b16 %v377
        %v805 = vunpack.c.h.b16 %v377
        %v806 = vunpack.c.l.b16 %v378
        %v807 = vunpack.c.h.b16 %v378
        %v808 = vunpack.c.l.b16 %v379
        %v809 = vunpack.c.h.b16 %v379
        %v810 = vunpack.c.l.b16 %v380
        %v811 = vunpack.c.h.b16 %v380
        %v812 = vunpack.c.l.b16 %v381
        %v813 = vunpack.c.h.b16 %v381
        %v814 = vunpack.c.l.b16 %v382
        %v815 = vunpack.c.h.b16 %v382
        %v816 = vunpack.c.l.b16 %v383
        %v817 = vunpack.c.h.b16 %v383
        %v818 = vunpack.c.l.b16 %v384
        %v819 = vunpack.c.h.b16 %v384
        %v820 = vunpack.c.l.b16 %v385
        %v821 = vunpack.c.h.b16 %v385
        %v822 = vunpack.c.l.b16 %v386
        %v823 = vunpack.c.h.b16 %v386
        %v824 = vunpack.c.l.b16 %v387
        %v825 = vunpack.c.h.b16 %v387
        %v826 = vunpack.c.l.b16 %v388
        %v827 = vunpack.c.h.b16 %v388
        %v828 = vunpack.c.l.b16 %v389
        %v829 = vunpack.c.h.b16 %v389
        %v830 = vunpack.c.l.b16 %v390
        %v831 = vunpack.c.h.b16 %v390
        %v832 = vunpack.c.l.b16 %v391
        %v833 = vunpack.c.h.b16 %v391
        %v834 = vunpack.c.l.b16 %v392
        %v835 = vunpack.c.h.b16 %v392
        %v836 = vunpack.c.l.b16 %v393
        %v837 = vunpack.c.h.b16 %v393
        %v838 = vunpack.c.l.b16 %v394
        %v839 = vunpack.c.h.b16 %v394
        %v840 = vunpack.c.l.b16 %v395
        %v841 = vunpack.c.h.b16 %v395
        %v842 = vunpack.c.l.b16 %v396
        %v843 = vunpack.c.h.b16 %v396
        %v844 = vunpack.c.l.b16 %v397
        %v845 = vunpack.c.h.b16 %v397
        %v846 = vunpack.c.l.b16 %v398
        %v847 = vunpack.c.h.b16 %v398
        %v848 = vunpack.c.l.b16 %v399
        %v849 = vunpack.c.h.b16 %v399
        %v850 = vunpack.c.l.b16 %v400
        %v851 = vunpack.c.h.b16 %v400
        %v852 = vunpack.c.l.b16 %v401
        %v853 = vunpack.c.h.b16 %v401
        %v854 = vunpack.c.l.b16 %v402
        %v855 = vunpack.c.h.b16 %v402
        %v856 = vunpack.c.l.b16 %v403
        %v857 = vunpack.c.h.b16 %v403
        %v858 = vunpack.c.l.b16 %v404
        %v859 = vunpack.c.h.b16 %v404
        %v860 = vunpack.c.l.b16 %v405
        %v861 = vunpack.c.h.b16 %v405
        %v862 = vunpack.c.l.b16 %v406
        %v863 = vunpack.c.h.b16 %v406
        %v864 = vunpack.c.l.b16 %v407
        %v865 = vunpack.c.h.b16 %v407
        %v866 = vunpack.c.l.b16 %v408
        %v867 = vunpack.c.h.b16 %v408
        %v868 = vunpack.c.l.b16 %v409
        %v869 = vunpack.c.h.b16 %v409
        %v870 = vunpack.c.l.b16 %v410
        %v871 = vunpack.c.h.b16 %v410
        %v872 = vunpack.c.l.b16 %v411
        %v873 = vunpack.c.h.b16 %v411
        %v874 = vunpack.c.l.b16 %v412
        %v875 = vunpack.c.h.b16 %v412
        %v876 = vunpack.c.l.b16 %v413
        %v877 = vunpack.c.h.b16 %v413
        %v878 = vunpack.c.l.b16 %v414
        %v879 = vunpack.c.h.b16 %v414
        %v880 = vunpack.c.l.b16 %v415
        %v881 = vunpack.c.h.b16 %v415
        %v882 = vunpack.c.l.b16 %v416
        %v883 = vunpack.c.h.b16 %v416
        %v884 = vunpack.c.l.b16 %v417
        %v885 = vunpack.c.h.b16 %v417
        %v886 = vunpack.c.l.b16 %v418
        %v887 = vunpack.c.h.b16 %v418
        %v888 = vunpack.c.l.b16 %v419
        %v889 = vunpack.c.h.b16 %v419
        %v890 = vunpack.c.l.b16 %v420
        %v891 = vunpack.c.h.b16 %v420
        %v892 = vunpack.c.l.b16 %v421
        %v893 = vunpack.c.h.b16 %v421
        %v894 = vunpack.c.l.b16 %v422
        %v895 = vunpack.c.h.b16 %v422
        %v896 = vunpack.c.l.b16 %v423
        %v897 = vunpack.c.h.b16 %v423
        %v898 = vunpack.c.l.b16 %v424
        %v899 = vunpack.c.h.b16 %v424
        %v900 = vunpack.c.l.b16 %v425
        %v901 = vunpack.c.h.b16 %v425
        %v902 = vunpack.c.l.b16 %v426
        %v903 = vunpack.c.h.b16 %v426
        %v904 = vunpack.c.l.b16 %v427
        %v905 = vunpack.c.h.b16 %v427
        %v906 = vunpack.c.l.b16 %v428
        %v907 = vunpack.c.h.b16 %v428
        %v908 = vunpack.c.l.b16 %v429
        %v909 = vunpack.c.h.b16 %v429
        %v910 = vunpack.c.l.b16 %v430
        %v911 = vunpack.c.h.b16 %v430
        %v912 = vunpack.c.l.b16 %v431
        %v913 = vunpack.c.h.b16 %v431
        %v914 = vunpack.c.l.b16 %v432
        %v915 = vunpack.c.h.b16 %v432
        %v916 = vunpack.c.l.b16 %v433
        %v917 = vunpack.c.h.b16 %v433
        %v918 = vunpack.c.l.b16 %v434
        %v919 = vunpack.c.h.b16 %v434
        %v920 = vunpack.c.l.b16 %v435
        %v921 = vunpack.c.h.b16 %v435
        %v922 = vunpack.c.l.b16 %v436
        %v923 = vunpack.c.h.b16 %v436
        %v924 = vunpack.c.l.b16 %v437
        %v925 = vunpack.c.h.b16 %v437
        %v926 = vunpack.c.l.b16 %v438
        %v927 = vunpack.c.h.b16 %v438
        %v928 = vunpack.c.l.b16 %v439
        %v929 = vunpack.c.h.b16 %v439
        %v930 = vunpack.c.l.b16 %v440
        %v931 = vunpack.c.h.b16 %v440
        %v932 = vunpack.c.l.b16 %v441
        %v933 = vunpack.c.h.b16 %v441
        %v934 = vunpack.c.l.b16 %v442
        %v935 = vunpack.c.h.b16 %v442
        %v936 = vunpack.c.l.b16 %v443
        %v937 = vunpack.c.h.b16 %v443
        %v938 = vunpack.c.l.b16 %v444
        %v939 = vunpack.c.h.b16 %v444
        %v940 = vunpack.c.l.b16 %v445
        %v941 = vunpack.c.h.b16 %v445
        %v942 = vunpack.c.l.b16 %v446
        %v943 = vunpack.c.h.b16 %v446
        %v944 = vunpack.c.l.b16 %v447
        %v945 = vunpack.c.h.b16 %v447
        %v946 = vunpack.c.l.b16 %v448
        %v947 = vunpack.c.h.b16 %v448
        %v948 = vunpack.c.l.b16 %v449
        %v949 = vunpack.c.h.b16 %v449
        %v950 = vunpack.c.l.b16 %v450
        %v951 = vunpack.c.h.b16 %v450
        %v952 = vunpack.c.l.b16 %v451
        %v953 = vunpack.c.h.b16 %v451
        %v954 = vunpack.c.l.b16 %v452
        %v955 = vunpack.c.h.b16 %v452
        %v956 = vunpack.c.l.b16 %v453
        %v957 = vunpack.c.h.b16 %v453
        %v958 = vunpack.c.l.b16 %v454
        %v959 = vunpack.c.h.b16 %v454
        %v960 = vunpack.c.l.b16 %v455
        %v961 = vunpack.c.h.b16 %v455
        %v962 = vunpack.c.l.b16 %v456
        %v963 = vunpack.c.h.b16 %v456
        %v964 = vunpack.c.l.b16 %v457
        %v965 = vunpack.c.h.b16 %v457
        %v966 = vunpack.c.l.b16 %v458
        %v967 = vunpack.c.h.b16 %v458
        %v968 = vunpack.c.l.b16 %v459
        %v969 = vunpack.c.h.b16 %v459
        %v970 = vunpack.c.l.b16 %v460
        %v971 = vunpack.c.h.b16 %v460
        %v972 = vunpack.c.l.b16 %v461
        %v973 = vunpack.c.h.b16 %v461
        %v974 = vunpack.c.l.b16 %v462
        %v975 = vunpack.c.h.b16 %v462
        %v976 = vunpack.c.l.b16 %v463
        %v977 = vunpack.c.h.b16 %v463
        %v978 = vunpack.c.l.b16 %v464
        %v979 = vunpack.c.h.b16 %v464
        %v980 = vunpack.c.l.b16 %v465
        %v981 = vunpack.c.h.b16 %v465
        %v982 = vunpack.c.l.b16 %v466
        %v983 = vunpack.c.h.b16 %v466
        %v984 = vunpack.c.l.b16 %v467
        %v985 = vunpack.c.h.b16 %v467
        %v986 = vunpack.c.l.b16 %v468
        %v987 = vunpack.c.h.b16 %v468
        %v988 = vunpack.c.l.b16 %v469
        %v989 = vunpack.c.h.b16 %v469
        %v990 = vunpack.c.l.b16 %v470
        %v991 = vunpack.c.h.b16 %v470
        %v992 = vunpack.c.l.b16 %v471
        %v993 = vunpack.c.h.b16 %v471
        %v994 = vunpack.c.l.b16 %v472
        %v995 = vunpack.c.h.b16 %v472
        %v996 = vunpack.c.l.b16 %v473
        %v997 = vunpack.c.h.b16 %v473
        %v998 = vunpack.c.l.b16 %v474
        %v999 = vunpack.c.h.b16 %v474
        %v1000 = vunpack.c.l.b16 %v475
        %v1001 = vunpack.c.h.b16 %v475
        %v1002 = vunpack.c.l.b16 %v476
        %v1003 = vunpack.c.h.b16 %v476
        %v1004 = vunpack.c.l.b16 %v477
        %v1005 = vunpack.c.h.b16 %v477
        %v1006 = vunpack.c.l.b16 %v478
        %v1007 = vunpack.c.h.b16 %v478
        %v1008 = vunpack.c.l.b16 %v479
        %v1009 = vunpack.c.h.b16 %v479
        %v1010 = vunpack.c.l.b16 %v480
        %v1011 = vunpack.c.h.b16 %v480
        %v1012 = vunpack.c.l.b16 %v481
        %v1013 = vunpack.c.h.b16 %v481
        %v1014 = vunpack.c.l.b16 %v482
        %v1015 = vunpack.c.h.b16 %v482
        %v1016 = vunpack.c.l.b16 %v483
        %v1017 = vunpack.c.h.b16 %v483
        %v1018 = vunpack.c.l.b16 %v484
        %v1019 = vunpack.c.h.b16 %v484
        %v1020 = vunpack.c.l.b16 %v485
        %v1021 = vunpack.c.h.b16 %v485
        %v1022 = vunpack.c.l.b16 %v486
        %v1023 = vunpack.c.h.b16 %v486
        %v1024 = vunpack.c.l.b16 %v487
        %v1025 = vunpack.c.h.b16 %v487
        %v1026 = vunpack.c.l.b16 %v488
        %v1027 = vunpack.c.h.b16 %v488
        %v1028 = vunpack.c.l.b16 %v489
        %v1029 = vunpack.c.h.b16 %v489
        %v1030 = vunpack.c.l.b16 %v490
        %v1031 = vunpack.c.h.b16 %v490
        %v1032 = vunpack.c.l.b16 %v491
        %v1033 = vunpack.c.h.b16 %v491
        %v1034 = vunpack.c.l.b16 %v492
        %v1035 = vunpack.c.h.b16 %v492
        %v1036 = vunpack.c.l.b16 %v493
        %v1037 = vunpack.c.h.b16 %v493
        %v1038 = vunpack.c.l.b16 %v494
        %v1039 = vunpack.c.h.b16 %v494
        %v1040 = vunpack.c.l.b16 %v495
        %v1041 = vunpack.c.h.b16 %v495
        %v1042 = vunpack.c.l.b16 %v496
        %v1043 = vunpack.c.h.b16 %v496
        %v1044 = vunpack.c.l.b16 %v497
        %v1045 = vunpack.c.h.b16 %v497
        %v1046 = vunpack.c.l.b16 %v498
        %v1047 = vunpack.c.h.b16 %v498
        %v1048 = vunpack.c.l.b16 %v499
        %v1049 = vunpack.c.h.b16 %v499
        %v1050 = vunpack.c.l.b16 %v500
        %v1051 = vunpack.c.h.b16 %v500
        %v1052 = vunpack.c.l.b16 %v501
        %v1053 = vunpack.c.h.b16 %v501
        %v1054 = vunpack.c.l.b16 %v502
        %v1055 = vunpack.c.h.b16 %v502
        %v1056 = vunpack.c.l.b16 %v503
        %v1057 = vunpack.c.h.b16 %v503
        %v1058 = vunpack.c.l.b16 %v504
        %v1059 = vunpack.c.h.b16 %v504
        %v1060 = vunpack.c.l.b16 %v505
        %v1061 = vunpack.c.h.b16 %v505
        %v1062 = vunpack.c.l.b16 %v506
        %v1063 = vunpack.c.h.b16 %v506
        %v1064 = vunpack.c.l.b16 %v507
        %v1065 = vunpack.c.h.b16 %v507
        %v1066 = vunpack.c.l.b16 %v508
        %v1067 = vunpack.c.h.b16 %v508
        %v1068 = vunpack.c.l.b16 %v509
        %v1069 = vunpack.c.h.b16 %v509
        %v1070 = vunpack.c.l.b16 %v510
        %v1071 = vunpack.c.h.b16 %v510
        %v1072 = vunpack.c.l.b16 %v511
        %v1073 = vunpack.c.h.b16 %v511
        %v1074 = vunpack.c.l.b16 %v512
        %v1075 = vunpack.c.h.b16 %v512
        %v1076 = vunpack.c.l.b16 %v513
        %v1077 = vunpack.c.h.b16 %v513
        %v1078 = vunpack.c.l.b16 %v514
        %v1079 = vunpack.c.h.b16 %v514
        %v1080 = vunpack.c.l.b16 %v515
        %v1081 = vunpack.c.h.b16 %v515
        %v1082 = vunpack.c.l.b16 %v516
        %v1083 = vunpack.c.h.b16 %v516
        %v1084 = vunpack.c.l.b16 %v517
        %v1085 = vunpack.c.h.b16 %v517
        %v1086 = vunpack.c.l.b16 %v518
        %v1087 = vunpack.c.h.b16 %v518
        %v1088 = vunpack.c.l.b16 %v519
        %v1089 = vunpack.c.h.b16 %v519
        %v1090 = vunpack.c.l.b16 %v520
        %v1091 = vunpack.c.h.b16 %v520
        %v1092 = vunpack.c.l.b16 %v521
        %v1093 = vunpack.c.h.b16 %v521
        %v1094 = vunpack.c.l.b16 %v522
        %v1095 = vunpack.c.h.b16 %v522
        %v1096 = vunpack.c.l.b16 %v523
        %v1097 = vunpack.c.h.b16 %v523
        %v1098 = vunpack.c.l.b16 %v524
        %v1099 = vunpack.c.h.b16 %v524
        %v1100 = vunpack.c.l.b16 %v525
        %v1101 = vunpack.c.h.b16 %v525
        %v1102 = vunpack.c.l.b16 %v526
        %v1103 = vunpack.c.h.b16 %v526
        %v1104 = vunpack.c.l.b16 %v527
        %v1105 = vunpack.c.h.b16 %v527
        %v1106 = vunpack.c.l.b16 %v528
        %v1107 = vunpack.c.h.b16 %v528
        %v1108 = vunpack.c.l.b16 %v529
        %v1109 = vunpack.c.h.b16 %v529
        %v1110 = vunpack.c.l.b16 %v530
        %v1111 = vunpack.c.h.b16 %v530
        %v1112 = vunpack.c.l.b16 %v531
        %v1113 = vunpack.c.h.b16 %v531
        %v1114 = vunpack.c.l.b16 %v532
        %v1115 = vunpack.c.h.b16 %v532
        %v1116 = vunpack.c.l.b16 %v533
        %v1117 = vunpack.c.h.b16 %v533
        %v1118 = vunpack.c.l.b16 %v534
        %v1119 = vunpack.c.h.b16 %v534
        %v1120 = vunpack.c.l.b16 %v535
        %v1121 = vunpack.c.h.b16 %v535
        %v1122 = vunpack.c.l.b16 %v536
        %v1123 = vunpack.c.h.b16 %v536
        %v1124 = vunpack.c.l.b16 %v537
        %v1125 = vunpack.c.h.b16 %v537
        %v1126 = vunpack.c.l.b16 %v538
        %v1127 = vunpack.c.h.b16 %v538
        %v1128 = vunpack.c.l.b16 %v539
        %v1129 = vunpack.c.h.b16 %v539
        %v1130 = vunpack.c.l.b16 %v540
        %v1131 = vunpack.c.h.b16 %v540
        %v1132 = vunpack.c.l.b16 %v541
        %v1133 = vunpack.c.h.b16 %v541
        %v1134 = vunpack.c.l.b16 %v542
        %v1135 = vunpack.c.h.b16 %v542
        %v1136 = vunpack.c.l.b16 %v543
        %v1137 = vunpack.c.h.b16 %v543
        %v1138 = vunpack.c.l.b16 %v544
        %v1139 = vunpack.c.h.b16 %v544
        %v1140 = vunpack.c.l.b16 %v545
        %v1141 = vunpack.c.h.b16 %v545
        %v1142 = vunpack.c.l.b16 %v546
        %v1143 = vunpack.c.h.b16 %v546
        %v1144 = vunpack.c.l.b16 %v547
        %v1145 = vunpack.c.h.b16 %v547
        %v1146 = vunpack.c.l.b16 %v548
        %v1147 = vunpack.c.h.b16 %v548
        %v1148 = vunpack.c.l.b16 %v549
        %v1149 = vunpack.c.h.b16 %v549
        %v1150 = vunpack.c.l.b16 %v550
        %v1151 = vunpack.c.h.b16 %v550
        %v1152 = vunpack.c.l.b16 %v551
        %v1153 = vunpack.c.h.b16 %v551
        %v1154 = vunpack.c.l.b16 %v552
        %v1155 = vunpack.c.h.b16 %v552
        %v1156 = vunpack.c.l.b16 %v553
        %v1157 = vunpack.c.h.b16 %v553
        %v1158 = vunpack.c.l.b16 %v554
        %v1159 = vunpack.c.h.b16 %v554
        %v1160 = vunpack.c.l.b16 %v555
        %v1161 = vunpack.c.h.b16 %v555
        %v1162 = vunpack.c.l.b16 %v556
        %v1163 = vunpack.c.h.b16 %v556
        %v1164 = vunpack.c.l.b16 %v557
        %v1165 = vunpack.c.h.b16 %v557
        %v1166 = vunpack.c.l.b16 %v558
        %v1167 = vunpack.c.h.b16 %v558
        %v1168 = vpack.c.b16 %v780, %v776
        %v1169 = vpack.c.b16 %v781, %v777
        %v1170 = vpack.c.b16 %v782, %v778
        %v1171 = vpack.c.b16 %v783, %v779
        %v1172 = vpack.c.b16 %v788, %v784
        %v1173 = vpack.c.b16 %v789, %v785
        %v1174 = vpack.c.b16 %v790, %v786
        %v1175 = vpack.c.b16 %v791, %v787
        %v1176 = vpack.c.b16 %v796, %v792
        %v1177 = vpack.c.b16 %v797, %v793
        %v1178 = vpack.c.b16 %v798, %v794
        %v1179 = vpack.c.b16 %v799, %v795
        %v1180 = vpack.c.b16 %v804, %v800
        %v1181 = vpack.c.b16 %v805, %v801
        %v1182 = vpack.c.b16 %v806, %v802
        %v1183 = vpack.c.b16 %v807, %v803
        %v1184 = vpack.c.b16 %v812, %v808
        %v1185 = vpack.c.b16 %v813, %v809
        %v1186 = vpack.c.b16 %v814, %v810
        %v1187 = vpack.c.b16 %v815, %v811
        %v1188 = vpack.c.b16 %v820, %v816
        %v1189 = vpack.c.b16 %v821, %v817
        %v1190 = vpack.c.b16 %v822, %v818
        %v1191 = vpack.c.b16 %v823, %v819
        %v1192 = vpack.c.b16 %v828, %v824
        %v1193 = vpack.c.b16 %v829, %v825
        %v1194 = vpack.c.b16 %v830, %v826
        %v1195 = vpack.c.b16 %v831, %v827
        %v1196 = vpack.c.b16 %v836, %v832
        %v1197 = vpack.c.b16 %v837, %v833
        %v1198 = vpack.c.b16 %v838, %v834
        %v1199 = vpack.c.b16 %v839, %v835
        %v1200 = vpack.c.b16 %v844, %v840
        %v1201 = vpack.c.b16 %v845, %v841
        %v1202 = vpack.c.b16 %v846, %v842
        %v1203 = vpack.c.b16 %v847, %v843
        %v1204 = vpack.c.b16 %v852, %v848
        %v1205 = vpack.c.b16 %v853, %v849
        %v1206 = vpack.c.b16 %v854, %v850
        %v1207 = vpack.c.b16 %v855, %v851
        %v1208 = vpack.c.b16 %v860, %v856
        %v1209 = vpack.c.b16 %v861, %v857
        %v1210 = vpack.c.b16 %v862, %v858
        %v1211 = vpack.c.b16 %v863, %v859
        %v1212 = vpack.c.b16 %v868, %v864
        %v1213 = vpack.c.b16 %v869, %v865
        %v1214 = vpack.c.b16 %v870, %v866
        %v1215 = vpack.c.b16 %v871, %v867
        %v1216 = vpack.c.b16 %v876, %v872
        %v1217 = vpack.c.b16 %v877, %v873
        %v1218 = vpack.c.b16 %v878, %v874
        %v1219 = vpack.c.b16 %v879, %v875
        %v1220 = vpack.c.b16 %v884, %v880
        %v1221 = vpack.c.b16 %v885, %v881
        %v1222 = vpack.c.b16 %v886, %v882
        %v1223 = vpack.c.b16 %v887, %v883
        %v1224 = vpack.c.b16 %v892, %v888
        %v1225 = vpack.c.b16 %v893, %v889
        %v1226 = vpack.c.b16 %v894, %v890
        %v1227 = vpack.c.b16 %v895, %v891
        %v1228 = vpack.c.b16 %v900, %v896
        %v1229 = vpack.c.b16 %v901, %v897
        %v1230 = vpack.c.b16 %v902, %v898
        %v1231 = vpack.c.b16 %v903, %v899
        %v1232 = vpack.c.b16 %v908, %v904
        %v1233 = vpack.c.b16 %v909, %v905
        %v1234 = vpack.c.b16 %v910, %v906
        %v1235 = vpack.c.b16 %v911, %v907
        %v1236 = vpack.c.b16 %v916, %v912
        %v1237 = vpack.c.b16 %v917, %v913
        %v1238 = vpack.c.b16 %v918, %v914
        %v1239 = vpack.c.b16 %v919, %v915
        %v1240 = vpack.c.b16 %v924, %v920
        %v1241 = vpack.c.b16 %v925, %v921
        %v1242 = vpack.c.b16 %v926, %v922
        %v1243 = vpack.c.b16 %v927, %v923
        %v1244 = vpack.c.b16 %v932, %v928
        %v1245 = vpack.c.b16 %v933, %v929
        %v1246 = vpack.c.b16 %v934, %v930
        %v1247 = vpack.c.b16 %v935, %v931
        %v1248 = vpack.c.b16 %v940, %v936
        %v1249 = vpack.c.b16 %v941, %v937
        %v1250 = vpack.c.b16 %v942, %v938
        %v1251 = vpack.c.b16 %v943, %v939
        %v1252 = vpack.c.b16 %v948, %v944
        %v1253 = vpack.c.b16 %v949, %v945
        %v1254 = vpack.c.b16 %v950, %v946
        %v1255 = vpack.c.b16 %v951, %v947
        %v1256 = vpack.c.b16 %v956, %v952
        %v1257 = vpack.c.b16 %v957, %v953
        %v1258 = vpack.c.b16 %v958, %v954
        %v1259 = vpack.c.b16 %v959, %v955
        %v1260 = vpack.c.b16 %v964, %v960
        %v1261 = vpack.c.b16 %v965, %v961
        %v1262 = vpack.c.b16 %v966, %v962
        %v1263 = vpack.c.b16 %v967, %v963
        %v1264 = vpack.c.b16 %v972, %v968
        %v1265 = vpack.c.b16 %v973, %v969
        %v1266 = vpack.c.b16 %v974, %v970
        %v1267 = vpack.c.b16 %v975, %v971
        %v1268 = vpack.c.b16 %v980, %v976
        %v1269 = vpack.c.b16 %v981, %v977
        %v1270 = vpack.c.b16 %v982, %v978
        %v1271 = vpack.c.b16 %v983, %v979
        %v1272 = vpack.c.b16 %v988, %v984
        %v1273 = vpack.c.b16 %v989, %v985
        %v1274 = vpack.c.b16 %v990, %v986
        %v1275 = vpack.c.b16 %v991, %v987
        %v1276 = vpack.c.b16 %v996, %v992
        %v1277 = vpack.c.b16 %v997, %v993
        %v1278 = vpack.c.b16 %v998, %v994
        %v1279 = vpack.c.b16 %v999, %v995
        %v1280 = vpack.c.b16 %v1004, %v1000
        %v1281 = vpack.c.b16 %v1005, %v1001
        %v1282 = vpack.c.b16 %v1006, %v1002
        %v1283 = vpack.c.b16 %v1007, %v1003
        %v1284 = vpack.c.b16 %v1012, %v1008
        %v1285 = vpack.c.b16 %v1013, %v1009
        %v1286 = vpack.c.b16 %v1014, %v1010
        %v1287 = vpack.c.b16 %v1015, %v1011
        %v1288 = vpack.c.b16 %v1020, %v1016
        %v1289 = vpack.c.b16 %v1021, %v1017
        %v1290 = vpack.c.b16 %v1022, %v1018
        %v1291 = vpack.c.b16 %v1023, %v1019
        %v1292 = vpack.c.b16 %v1028, %v1024
        %v1293 = vpack.c.b16 %v1029, %v1025
        %v1294 = vpack.c.b16 %v1030, %v1026
        %v1295 = vpack.c.b16 %v1031, %v1027
        %v1296 = vpack.c.b16 %v1036, %v1032
        %v1297 = vpack.c.b16 %v1037, %v1033
        %v1298 = vpack.c.b16 %v1038, %v1034
        %v1299 = vpack.c.b16 %v1039, %v1035
        %v1300 = vpack.c.b16 %v1044, %v1040
        %v1301 = vpack.c.b16 %v1045, %v1041
        %v1302 = vpack.c.b16 %v1046, %v1042
        %v1303 = vpack.c.b16 %v1047, %v1043
        %v1304 = vpack.c.b16 %v1052, %v1048
        %v1305 = vpack.c.b16 %v1053, %v1049
        %v1306 = vpack.c.b16 %v1054, %v1050
        %v1307 = vpack.c.b16 %v1055, %v1051
        %v1308 = vpack.c.b16 %v1060, %v1056
        %v1309 = vpack.c.b16 %v1061, %v1057
        %v1310 = vpack.c.b16 %v1062, %v1058
        %v1311 = vpack.c.b16 %v1063, %v1059
        %v1312 = vpack.c.b16 %v1068, %v1064
        %v1313 = vpack.c.b16 %v1069, %v1065
        %v1314 = vpack.c.b16 %v1070, %v1066
        %v1315 = vpack.c.b16 %v1071, %v1067
        %v1316 = vpack.c.b16 %v1076, %v1072
        %v1317 = vpack.c.b16 %v1077, %v1073
        %v1318 = vpack.c.b16 %v1078, %v1074
        %v1319 = vpack.c.b16 %v1079, %v1075
        %v1320 = vpack.c.b16 %v1084, %v1080
        %v1321 = vpack.c.b16 %v1085, %v1081
        %v1322 = vpack.c.b16 %v1086, %v1082
        %v1323 = vpack.c.b16 %v1087, %v1083
        %v1324 = vpack.c.b16 %v1092, %v1088
        %v1325 = vpack.c.b16 %v1093, %v1089
        %v1326 = vpack.c.b16 %v1094, %v1090
        %v1327 = vpack.c.b16 %v1095, %v1091
        %v1328 = vpack.c.b16 %v1100, %v1096
        %v1329 = vpack.c.b16 %v1101, %v1097
        %v1330 = vpack.c.b16 %v1102, %v1098
        %v1331 = vpack.c.b16 %v1103, %v1099
        %v1332 = vpack.c.b16 %v1108, %v1104
        %v1333 = vpack.c.b16 %v1109, %v1105
        %v1334 = vpack.c.b16 %v1110, %v1106
        %v1335 = vpack.c.b16 %v1111, %v1107
        %v1336 = vpack.c.b16 %v1116, %v1112
        %v1337 = vpack.c.b16 %v1117, %v1113
        %v1338 = vpack.c.b16 %v1118, %v1114
        %v1339 = vpack.c.b16 %v1119, %v1115
        %v1340 = vpack.c.b16 %v1124, %v1120
        %v1341 = vpack.c.b16 %v1125, %v1121
        %v1342 = vpack.c.b16 %v1126, %v1122
        %v1343 = vpack.c.b16 %v1127, %v1123
        %v1344 = vpack.c.b16 %v1132, %v1128
        %v1345 = vpack.c.b16 %v1133, %v1129
        %v1346 = vpack.c.b16 %v1134, %v1130
        %v1347 = vpack.c.b16 %v1135, %v1131
        %v1348 = vpack.c.b16 %v1140, %v1136
        %v1349 = vpack.c.b16 %v1141, %v1137
        %v1350 = vpack.c.b16 %v1142, %v1138
        %v1351 = vpack.c.b16 %v1143, %v1139
        %v1352 = vpack.c.b16 %v1148, %v1144
        %v1353 = vpack.c.b16 %v1149, %v1145
        %v1354 = vpack.c.b16 %v1150, %v1146
        %v1355 = vpack.c.b16 %v1151, %v1147
        %v1356 = vpack.c.b16 %v1156, %v1152
        %v1357 = vpack.c.b16 %v1157, %v1153
        %v1358 = vpack.c.b16 %v1158, %v1154
        %v1359 = vpack.c.b16 %v1159, %v1155
        %v1360 = vpack.c.b16 %v1164, %v1160
        %v1361 = vpack.c.b16 %v1165, %v1161
        %v1362 = vpack.c.b16 %v1166, %v1162
        %v1363 = vpack.c.b16 %v1167, %v1163
        %vm1560 = vcmask 130048
        %v1562 = vsel %vm1560, %v362, 0
        %1564 = vmatprep.subr.bf16.mxu0 %v1197
        %1565 = vmatpush1.bf16.msra.mxu0 %v1196
        %1566 = vmatprep.subr.bf16.mxu0 %v1193
        %1567 = vmatpush1.bf16.msra.mxu0 %v1192
        %1568 = vmatprep.subr.bf16.mxu0 %v1189
        %1569 = vmatpush1.bf16.msra.mxu0 %v1188
        %1570 = vmatprep.subr.bf16.mxu0 %v1185
        %1571 = vmatpush1.bf16.msra.mxu0 %v1184
        %1572 = vmatprep.subr.bf16.mxu0 %v1181
        %1573 = vmatpush1.bf16.msra.mxu0 %v1180
        %1574 = vmatprep.subr.bf16.mxu0 %v1177
        %1575 = vmatpush1.bf16.msra.mxu0 %v1176
        %1576 = vmatprep.subr.bf16.mxu0 %v1173
        %1577 = vmatpush1.bf16.msra.mxu0 %v1172
        %1578 = vmatprep.subr.bf16.mxu0 %v1169
        %1579 = vmatpush1.bf16.msra.mxu0 %v1168
        %1580 = vmatprep.subr.bf16.mxu0 %v1229
        %1581 = vmatpush2.bf16.msra.mxu0 %v1228
        %1582 = vmatprep.subr.bf16.mxu0 %v1225
        %1583 = vmatpush2.bf16.msra.mxu0 %v1224
        %1584 = vmatprep.subr.bf16.mxu0 %v1221
        %1585 = vmatpush2.bf16.msra.mxu0 %v1220
        %1586 = vmatprep.subr.bf16.mxu0 %v1217
        %1587 = vmatpush2.bf16.msra.mxu0 %v1216
        %1588 = vmatprep.subr.bf16.mxu0 %v1213
        %1589 = vmatpush2.bf16.msra.mxu0 %v1212
        %1590 = vmatprep.subr.bf16.mxu0 %v1209
        %1591 = vmatpush2.bf16.msra.mxu0 %v1208
        %1592 = vmatprep.subr.bf16.mxu0 %v1205
        %1593 = vmatpush2.bf16.msra.mxu0 %v1204
        %1594 = vmatprep.subr.bf16.mxu0 %v1201
        %1595 = vmatpush2.bf16.msra.mxu0 %v1200
        %1596 = vmatprep.mubr.bf16.mxu0 %v357
        %1597 = vmatmul.mubr.bf16.gmra.mxu0 %v356
        %v1598 = vpop.f32.mrf.mxu0
        %v1599 = vadd.f32 %v563, %v1598
        %v1600 = vpop.f32.mrf.mxu0
        %v1601 = vadd.f32 %v567, %v1600
        %v1602 = vpop.f32.mrf.mxu0
        %v1603 = vpop.f32.mrf.mxu0
        %1604 = vdwg.mxu0
        %1605 = vmatprep.subr.bf16.mxu0 %v1261
        %1606 = vmatpush1.bf16.msra.mxu0 %v1260
        %1607 = vmatprep.subr.bf16.mxu0 %v1257
        %1608 = vmatpush1.bf16.msra.mxu0 %v1256
        %1609 = vmatprep.subr.bf16.mxu0 %v1253
        %1610 = vmatpush1.bf16.msra.mxu0 %v1252
        %1611 = vmatprep.subr.bf16.mxu0 %v1249
        %1612 = vmatpush1.bf16.msra.mxu0 %v1248
        %1613 = vmatprep.subr.bf16.mxu0 %v1245
        %1614 = vmatpush1.bf16.msra.mxu0 %v1244
        %1615 = vmatprep.subr.bf16.mxu0 %v1241
        %1616 = vmatpush1.bf16.msra.mxu0 %v1240
        %1617 = vmatprep.subr.bf16.mxu0 %v1237
        %1618 = vmatpush1.bf16.msra.mxu0 %v1236
        %1619 = vmatprep.subr.bf16.mxu0 %v1233
        %1620 = vmatpush1.bf16.msra.mxu0 %v1232
        %1621 = vmatprep.subr.bf16.mxu0 %v1293
        %1622 = vmatpush2.bf16.msra.mxu0 %v1292
        %1623 = vmatprep.subr.bf16.mxu0 %v1289
        %1624 = vmatpush2.bf16.msra.mxu0 %v1288
        %1625 = vmatprep.subr.bf16.mxu0 %v1285
        %1626 = vmatpush2.bf16.msra.mxu0 %v1284
        %1627 = vmatprep.subr.bf16.mxu0 %v1281
        %1628 = vmatpush2.bf16.msra.mxu0 %v1280
        %1629 = vmatprep.subr.bf16.mxu0 %v1277
        %1630 = vmatpush2.bf16.msra.mxu0 %v1276
        %1631 = vmatprep.subr.bf16.mxu0 %v1273
        %1632 = vmatpush2.bf16.msra.mxu0 %v1272
        %1633 = vmatprep.subr.bf16.mxu0 %v1269
        %1634 = vmatpush2.bf16.msra.mxu0 %v1268
        %1635 = vmatprep.subr.bf16.mxu0 %v1265
        %1636 = vmatpush2.bf16.msra.mxu0 %v1264
        %1637 = vmatprep.mubr.bf16.mxu0 %v359
        %1638 = vmatmul.mubr.bf16.gmra.mxu0 %v358
        %v1639 = vpop.f32.mrf.mxu0
        %v1640 = vadd.f32 %v1599, %v1639
        %v1641 = vpop.f32.mrf.mxu0
        %v1642 = vadd.f32 %v1601, %v1641
        %v1643 = vpop.f32.mrf.mxu0
        %v1644 = vpop.f32.mrf.mxu0
        %1645 = vdwg.mxu0
        %1646 = vmatprep.subr.bf16.mxu0 %v1325
        %1647 = vmatpush1.bf16.msra.mxu0 %v1324
        %1648 = vmatprep.subr.bf16.mxu0 %v1321
        %1649 = vmatpush1.bf16.msra.mxu0 %v1320
        %1650 = vmatprep.subr.bf16.mxu0 %v1317
        %1651 = vmatpush1.bf16.msra.mxu0 %v1316
        %1652 = vmatprep.subr.bf16.mxu0 %v1313
        %1653 = vmatpush1.bf16.msra.mxu0 %v1312
        %1654 = vmatprep.subr.bf16.mxu0 %v1309
        %1655 = vmatpush1.bf16.msra.mxu0 %v1308
        %1656 = vmatprep.subr.bf16.mxu0 %v1305
        %1657 = vmatpush1.bf16.msra.mxu0 %v1304
        %1658 = vmatprep.subr.bf16.mxu0 %v1301
        %1659 = vmatpush1.bf16.msra.mxu0 %v1300
        %1660 = vmatprep.subr.bf16.mxu0 %v1297
        %1661 = vmatpush1.bf16.msra.mxu0 %v1296
        %1662 = vmatprep.subr.bf16.mxu0 %v1357
        %1663 = vmatpush2.bf16.msra.mxu0 %v1356
        %1664 = vmatprep.subr.bf16.mxu0 %v1353
        %1665 = vmatpush2.bf16.msra.mxu0 %v1352
        %1666 = vmatprep.subr.bf16.mxu0 %v1349
        %1667 = vmatpush2.bf16.msra.mxu0 %v1348
        %1668 = vmatprep.subr.bf16.mxu0 %v1345
        %1669 = vmatpush2.bf16.msra.mxu0 %v1344
        %1670 = vmatprep.subr.bf16.mxu0 %v1341
        %1671 = vmatpush2.bf16.msra.mxu0 %v1340
        %1672 = vmatprep.subr.bf16.mxu0 %v1337
        %1673 = vmatpush2.bf16.msra.mxu0 %v1336
        %1674 = vmatprep.subr.bf16.mxu0 %v1333
        %1675 = vmatpush2.bf16.msra.mxu0 %v1332
        %1676 = vmatprep.subr.bf16.mxu0 %v1329
        %1677 = vmatpush2.bf16.msra.mxu0 %v1328
        %1678 = vmatprep.mubr.bf16.mxu0 %v361
        %1679 = vmatmul.mubr.bf16.gmra.mxu0 %v360
        %v1680 = vpop.f32.mrf.mxu0
        %v1681 = vadd.f32 %v1640, %v1680
        %v1682 = vpop.f32.mrf.mxu0
        %v1683 = vadd.f32 %v1642, %v1682
        %v1684 = vpop.f32.mrf.mxu0
        %v1685 = vpop.f32.mrf.mxu0
        %1686 = vdwg.mxu0
        %1687 = vmatprep.subr.bf16.mxu0 0
        %1688 = vmatpush1.bf16.msra.mxu0 0
        %1689 = vmatprep.subr.bf16.mxu0 0
        %1690 = vmatpush1.bf16.msra.mxu0 0
        %1691 = vmatprep.subr.bf16.mxu0 0
        %1692 = vmatpush1.bf16.msra.mxu0 0
        %1693 = vmatprep.subr.bf16.mxu0 0
        %1694 = vmatpush1.bf16.msra.mxu0 0
        %1695 = vmatprep.subr.bf16.mxu0 0
        %1696 = vmatpush1.bf16.msra.mxu0 0
        %1697 = vmatprep.subr.bf16.mxu0 0
        %1698 = vmatpush1.bf16.msra.mxu0 0
        %1699 = vmatprep.subr.bf16.mxu0 0
        %1700 = vmatpush1.bf16.msra.mxu0 0
        %1701 = vmatprep.subr.bf16.mxu0 %v1361
        %1702 = vmatpush1.bf16.msra.mxu0 %v1360
        %1703 = vmatprep.subr.bf16.mxu0 0
        %1704 = vmatpush2.bf16.msra.mxu0 0
        %1705 = vmatprep.subr.bf16.mxu0 0
        %1706 = vmatpush2.bf16.msra.mxu0 0
        %1707 = vmatprep.subr.bf16.mxu0 0
        %1708 = vmatpush2.bf16.msra.mxu0 0
        %1709 = vmatprep.subr.bf16.mxu0 0
        %1710 = vmatpush2.bf16.msra.mxu0 0
        %1711 = vmatprep.subr.bf16.mxu0 0
        %1712 = vmatpush2.bf16.msra.mxu0 0
        %1713 = vmatprep.subr.bf16.mxu0 0
        %1714 = vmatpush2.bf16.msra.mxu0 0
        %1715 = vmatprep.subr.bf16.mxu0 0
        %1716 = vmatpush2.bf16.msra.mxu0 0
        %1717 = vmatprep.subr.bf16.mxu0 0
        %1718 = vmatpush2.bf16.msra.mxu0 0
        %1719 = vmatprep.mubr.bf16.mxu0 0
        %1720 = vmatmul.mubr.bf16.gmra.mxu0 %v1562
        %v1721 = vpop.f32.mrf.mxu0
        %v1722 = vadd.f32 %v1681, %v1721
        %v1723 = vpop.f32.mrf.mxu0
        %v1724 = vadd.f32 %v1683, %v1723
        %v1725 = vpop.f32.mrf.mxu0
        %v1726 = vpop.f32.mrf.mxu0
        %1727 = vdwg.mxu0
        %1728 = vmatprep.subr.bf16.mxu0 %v1199
        %1729 = vmatpush1.bf16.msra.mxu0 %v1198
        %1730 = vmatprep.subr.bf16.mxu0 %v1195
        %1731 = vmatpush1.bf16.msra.mxu0 %v1194
        %1732 = vmatprep.subr.bf16.mxu0 %v1191
        %1733 = vmatpush1.bf16.msra.mxu0 %v1190
        %1734 = vmatprep.subr.bf16.mxu0 %v1187
        %1735 = vmatpush1.bf16.msra.mxu0 %v1186
        %1736 = vmatprep.subr.bf16.mxu0 %v1183
        %1737 = vmatpush1.bf16.msra.mxu0 %v1182
        %1738 = vmatprep.subr.bf16.mxu0 %v1179
        %1739 = vmatpush1.bf16.msra.mxu0 %v1178
        %1740 = vmatprep.subr.bf16.mxu0 %v1175
        %1741 = vmatpush1.bf16.msra.mxu0 %v1174
        %1742 = vmatprep.subr.bf16.mxu0 %v1171
        %1743 = vmatpush1.bf16.msra.mxu0 %v1170
        %1744 = vmatprep.subr.bf16.mxu0 %v1231
        %1745 = vmatpush2.bf16.msra.mxu0 %v1230
        %1746 = vmatprep.subr.bf16.mxu0 %v1227
        %1747 = vmatpush2.bf16.msra.mxu0 %v1226
        %1748 = vmatprep.subr.bf16.mxu0 %v1223
        %1749 = vmatpush2.bf16.msra.mxu0 %v1222
        %1750 = vmatprep.subr.bf16.mxu0 %v1219
        %1751 = vmatpush2.bf16.msra.mxu0 %v1218
        %1752 = vmatprep.subr.bf16.mxu0 %v1215
        %1753 = vmatpush2.bf16.msra.mxu0 %v1214
        %1754 = vmatprep.subr.bf16.mxu0 %v1211
        %1755 = vmatpush2.bf16.msra.mxu0 %v1210
        %1756 = vmatprep.subr.bf16.mxu0 %v1207
        %1757 = vmatpush2.bf16.msra.mxu0 %v1206
        %1758 = vmatprep.subr.bf16.mxu0 %v1203
        %1759 = vmatpush2.bf16.msra.mxu0 %v1202
        %1760 = vmatprep.mubr.bf16.mxu0 %v357
        %1761 = vmatmul.mubr.bf16.gmra.mxu0 %v356
        %v1762 = vpop.f32.mrf.mxu0
        %v1763 = vadd.f32 %v571, %v1762
        %v1764 = vpop.f32.mrf.mxu0
        %v1765 = vadd.f32 %v575, %v1764
        %v1766 = vpop.f32.mrf.mxu0
        %v1767 = vpop.f32.mrf.mxu0
        %1768 = vdwg.mxu0
        %1769 = vmatprep.subr.bf16.mxu0 %v1263
        %1770 = vmatpush1.bf16.msra.mxu0 %v1262
        %1771 = vmatprep.subr.bf16.mxu0 %v1259
        %1772 = vmatpush1.bf16.msra.mxu0 %v1258
        %1773 = vmatprep.subr.bf16.mxu0 %v1255
        %1774 = vmatpush1.bf16.msra.mxu0 %v1254
        %1775 = vmatprep.subr.bf16.mxu0 %v1251
        %1776 = vmatpush1.bf16.msra.mxu0 %v1250
        %1777 = vmatprep.subr.bf16.mxu0 %v1247
        %1778 = vmatpush1.bf16.msra.mxu0 %v1246
        %1779 = vmatprep.subr.bf16.mxu0 %v1243
        %1780 = vmatpush1.bf16.msra.mxu0 %v1242
        %1781 = vmatprep.subr.bf16.mxu0 %v1239
        %1782 = vmatpush1.bf16.msra.mxu0 %v1238
        %1783 = vmatprep.subr.bf16.mxu0 %v1235
        %1784 = vmatpush1.bf16.msra.mxu0 %v1234
        %1785 = vmatprep.subr.bf16.mxu0 %v1295
        %1786 = vmatpush2.bf16.msra.mxu0 %v1294
        %1787 = vmatprep.subr.bf16.mxu0 %v1291
        %1788 = vmatpush2.bf16.msra.mxu0 %v1290
        %1789 = vmatprep.subr.bf16.mxu0 %v1287
        %1790 = vmatpush2.bf16.msra.mxu0 %v1286
        %1791 = vmatprep.subr.bf16.mxu0 %v1283
        %1792 = vmatpush2.bf16.msra.mxu0 %v1282
        %1793 = vmatprep.subr.bf16.mxu0 %v1279
        %1794 = vmatpush2.bf16.msra.mxu0 %v1278
        %1795 = vmatprep.subr.bf16.mxu0 %v1275
        %1796 = vmatpush2.bf16.msra.mxu0 %v1274
        %1797 = vmatprep.subr.bf16.mxu0 %v1271
        %1798 = vmatpush2.bf16.msra.mxu0 %v1270
        %1799 = vmatprep.subr.bf16.mxu0 %v1267
        %1800 = vmatpush2.bf16.msra.mxu0 %v1266
        %1801 = vmatprep.mubr.bf16.mxu0 %v359
        %1802 = vmatmul.mubr.bf16.gmra.mxu0 %v358
        %v1803 = vpop.f32.mrf.mxu0
        %v1804 = vadd.f32 %v1763, %v1803
        %v1805 = vpop.f32.mrf.mxu0
        %v1806 = vadd.f32 %v1765, %v1805
        %v1807 = vpop.f32.mrf.mxu0
        %v1808 = vpop.f32.mrf.mxu0
        %1809 = vdwg.mxu0
        %1810 = vmatprep.subr.bf16.mxu0 %v1327
        %1811 = vmatpush1.bf16.msra.mxu0 %v1326
        %1812 = vmatprep.subr.bf16.mxu0 %v1323
        %1813 = vmatpush1.bf16.msra.mxu0 %v1322
        %1814 = vmatprep.subr.bf16.mxu0 %v1319
        %1815 = vmatpush1.bf16.msra.mxu0 %v1318
        %1816 = vmatprep.subr.bf16.mxu0 %v1315
        %1817 = vmatpush1.bf16.msra.mxu0 %v1314
        %1818 = vmatprep.subr.bf16.mxu0 %v1311
        %1819 = vmatpush1.bf16.msra.mxu0 %v1310
        %1820 = vmatprep.subr.bf16.mxu0 %v1307
        %1821 = vmatpush1.bf16.msra.mxu0 %v1306
        %1822 = vmatprep.subr.bf16.mxu0 %v1303
        %1823 = vmatpush1.bf16.msra.mxu0 %v1302
        %1824 = vmatprep.subr.bf16.mxu0 %v1299
        %1825 = vmatpush1.bf16.msra.mxu0 %v1298
        %1826 = vmatprep.subr.bf16.mxu0 %v1359
        %1827 = vmatpush2.bf16.msra.mxu0 %v1358
        %1828 = vmatprep.subr.bf16.mxu0 %v1355
        %1829 = vmatpush2.bf16.msra.mxu0 %v1354
        %1830 = vmatprep.subr.bf16.mxu0 %v1351
        %1831 = vmatpush2.bf16.msra.mxu0 %v1350
        %1832 = vmatprep.subr.bf16.mxu0 %v1347
        %1833 = vmatpush2.bf16.msra.mxu0 %v1346
        %1834 = vmatprep.subr.bf16.mxu0 %v1343
        %1835 = vmatpush2.bf16.msra.mxu0 %v1342
        %1836 = vmatprep.subr.bf16.mxu0 %v1339
        %1837 = vmatpush2.bf16.msra.mxu0 %v1338
        %1838 = vmatprep.subr.bf16.mxu0 %v1335
        %1839 = vmatpush2.bf16.msra.mxu0 %v1334
        %1840 = vmatprep.subr.bf16.mxu0 %v1331
        %1841 = vmatpush2.bf16.msra.mxu0 %v1330
        %1842 = vmatprep.mubr.bf16.mxu0 %v361
        %1843 = vmatmul.mubr.bf16.gmra.mxu0 %v360
        %v1844 = vpop.f32.mrf.mxu0
        %v1845 = vadd.f32 %v1804, %v1844
        %v1846 = vpop.f32.mrf.mxu0
        %v1847 = vadd.f32 %v1806, %v1846
        %v1848 = vpop.f32.mrf.mxu0
        %v1849 = vpop.f32.mrf.mxu0
        %1850 = vdwg.mxu0
        %1851 = vmatprep.subr.bf16.mxu0 0
        %1852 = vmatpush1.bf16.msra.mxu0 0
        %1853 = vmatprep.subr.bf16.mxu0 0
        %1854 = vmatpush1.bf16.msra.mxu0 0
        %1855 = vmatprep.subr.bf16.mxu0 0
        %1856 = vmatpush1.bf16.msra.mxu0 0
        %1857 = vmatprep.subr.bf16.mxu0 0
        %1858 = vmatpush1.bf16.msra.mxu0 0
        %1859 = vmatprep.subr.bf16.mxu0 0
        %1860 = vmatpush1.bf16.msra.mxu0 0
        %1861 = vmatprep.subr.bf16.mxu0 0
        %1862 = vmatpush1.bf16.msra.mxu0 0
        %1863 = vmatprep.subr.bf16.mxu0 0
        %1864 = vmatpush1.bf16.msra.mxu0 0
        %1865 = vmatprep.subr.bf16.mxu0 %v1363
        %1866 = vmatpush1.bf16.msra.mxu0 %v1362
        %1867 = vmatprep.subr.bf16.mxu0 0
        %1868 = vmatpush2.bf16.msra.mxu0 0
        %1869 = vmatprep.subr.bf16.mxu0 0
        %1870 = vmatpush2.bf16.msra.mxu0 0
        %1871 = vmatprep.subr.bf16.mxu0 0
        %1872 = vmatpush2.bf16.msra.mxu0 0
        %1873 = vmatprep.subr.bf16.mxu0 0
        %1874 = vmatpush2.bf16.msra.mxu0 0
        %1875 = vmatprep.subr.bf16.mxu0 0
        %1876 = vmatpush2.bf16.msra.mxu0 0
        %1877 = vmatprep.subr.bf16.mxu0 0
        %1878 = vmatpush2.bf16.msra.mxu0 0
        %1879 = vmatprep.subr.bf16.mxu0 0
        %1880 = vmatpush2.bf16.msra.mxu0 0
        %1881 = vmatprep.subr.bf16.mxu0 0
        %1882 = vmatpush2.bf16.msra.mxu0 0
        %1883 = vmatprep.mubr.bf16.mxu0 0
        %1884 = vmatmul.mubr.bf16.gmra.mxu0 %v1562
        %v1885 = vpop.f32.mrf.mxu0
        %v1886 = vadd.f32 %v1845, %v1885
        %v1887 = vpop.f32.mrf.mxu0
        %v1888 = vadd.f32 %v1847, %v1887
        %v1889 = vpop.f32.mrf.mxu0
        %v1890 = vpop.f32.mrf.mxu0
        %1891 = vdwg.mxu0
        %v1892 = vrot.slane %v1722, 4
        %v1893 = vadd.f32 %v1722, %v1892
        %v1894 = vrot.slane %v1893, 2
        %v1895 = vadd.f32 %v1893, %v1894
        %v1896 = vrot.slane %v1895, 1
        %v1897 = vadd.f32 %v1895, %v1896
        %v1898 = vrot.slane %v1724, 4
        %v1899 = vadd.f32 %v1724, %v1898
        %v1900 = vrot.slane %v1899, 2
        %v1901 = vadd.f32 %v1899, %v1900
        %v1902 = vrot.slane %v1901, 1
        %v1903 = vadd.f32 %v1901, %v1902
        %v1904 = vrot.slane %v1886, 4
        %v1905 = vadd.f32 %v1886, %v1904
        %v1906 = vrot.slane %v1905, 2
        %v1907 = vadd.f32 %v1905, %v1906
        %v1908 = vrot.slane %v1907, 1
        %v1909 = vadd.f32 %v1907, %v1908
        %v1910 = vsel %vm1560, %v1888, 0.0
        %v1911 = vrot.slane %v1910, 4
        %v1912 = vadd.f32 %v1910, %v1911
        %v1913 = vrot.slane %v1912, 2
        %v1914 = vadd.f32 %v1912, %v1913
        %v1915 = vrot.slane %v1914, 1
        %v1916 = vadd.f32 %v1914, %v1915
        %v1917 = vrcp.pop 8.0
        %v1918 = vmul.f32 %v1897, %v1917
        %v1919 = vmul.f32 %v1903, %v1917
        %v1920 = vmul.f32 %v1909, %v1917
        %v1921 = vmul.f32 %v1916, %v1917
        %v1922 = vsub.f32 %v1722, %v1918
        %v1923 = vsub.f32 %v1724, %v1919
        %v1924 = vsub.f32 %v1886, %v1920
        %v1925 = vsub.f32 %v1888, %v1921
        %v1926 = vmul.f32 %v1922, %v1922
        %v1927 = vmul.f32 %v1923, %v1923
        %v1928 = vmul.f32 %v1924, %v1924
        %v1929 = vmul.f32 %v1925, %v1925
        %v1930 = vrot.slane %v1926, 4
        %v1931 = vadd.f32 %v1926, %v1930
        %v1932 = vrot.slane %v1931, 2
        %v1933 = vadd.f32 %v1931, %v1932
        %v1934 = vrot.slane %v1933, 1
        %v1935 = vadd.f32 %v1933, %v1934
        %v1936 = vrot.slane %v1927, 4
        %v1937 = vadd.f32 %v1927, %v1936
        %v1938 = vrot.slane %v1937, 2
        %v1939 = vadd.f32 %v1937, %v1938
        %v1940 = vrot.slane %v1939, 1
        %v1941 = vadd.f32 %v1939, %v1940
        %v1942 = vrot.slane %v1928, 4
        %v1943 = vadd.f32 %v1928, %v1942
        %v1944 = vrot.slane %v1943, 2
        %v1945 = vadd.f32 %v1943, %v1944
        %v1946 = vrot.slane %v1945, 1
        %v1947 = vadd.f32 %v1945, %v1946
        %v1948 = vsel %vm1560, %v1929, 0.0
        %v1949 = vrot.slane %v1948, 4
        %v1950 = vadd.f32 %v1948, %v1949
        %v1951 = vrot.slane %v1950, 2
        %v1952 = vadd.f32 %v1950, %v1951
        %v1953 = vrot.slane %v1952, 1
        %v1954 = vadd.f32 %v1952, %v1953
        %v1955 = vmul.f32 %v1935, %v1917
        %v1956 = vmul.f32 %v1941, %v1917
        %v1957 = vmul.f32 %v1947, %v1917
        %v1958 = vmul.f32 %v1954, %v1917
        %v1959 = vadd.f32 %v1955, 1e-05
        %v1960 = vadd.f32 %v1956, 1e-05
        %v1961 = vadd.f32 %v1957, 1e-05
        %v1962 = vadd.f32 %v1958, 1e-05
        %v1963 = vrsqrt.pop %v1959
        %v1964 = vrsqrt.pop %v1960
        %v1965 = vrsqrt.pop %v1961
        %v1966 = vrsqrt.pop %v1962
        %v1971 = vcombine.low %v1963, %v1964
        %v1972 = vcombine.low %v1965, %v1966
        %v1974 = vunpack.c.l.s4 1966171168
        %v1975 = vunpack.c.0.s8 %v1974
        %v1976 = vlaneseq
        %v1977 = vshrl.u32 %v1976, 7
        %v1978 = vsub.s32 %v1975, %v1977
        %v1979 = vrot.slane %v1971, %v1978
        %v1981 = vunpack.c.l.s4 1966171168
        %v1982 = vunpack.c.0.s8 %v1981
        %v1983 = vlaneseq
        %v1984 = vshrl.u32 %v1983, 7
        %v1985 = vsub.s32 %v1982, %v1984
        %v1986 = vrot.slane %v1972, %v1985
        %v1987 = vcombine.low %v1979, %v1986
        %v1989 = vunpack.c.l.s4 1966171168
        %v1990 = vunpack.c.0.s8 %v1989
        %v1991 = vlaneseq
        %v1992 = vshrl.u32 %v1991, 7
        %v1993 = vsub.s32 %v1990, %v1992
        %v1994 = vrot.slane %v1987, %v1993
        %v1996 = vmul.f32 %v335, %v1994
        %v1998 = vlaneseq
        %v1999 = vshrl.u32 %v1998, 7
        %v2000 = vsub.s32 0, %v1999
        %v2001 = vrot.slane %v1996, %v2000
        %v2002 = vlaneseq
        %v2003 = vshrl.u32 %v2002, 7
        %v2004 = vsub.s32 1, %v2003
        %v2005 = vrot.slane %v1996, %v2004
        %v2006 = vlaneseq
        %v2007 = vshrl.u32 %v2006, 7
        %v2008 = vsub.s32 2, %v2007
        %v2009 = vrot.slane %v1996, %v2008
        %v2010 = vlaneseq
        %v2011 = vshrl.u32 %v2010, 7
        %v2012 = vsub.s32 3, %v2011
        %v2013 = vrot.slane %v1996, %v2012
        %v2018 = vmul.f32 %v2001, %v1922
        %v2019 = vmul.f32 %v2005, %v1923
        %v2020 = vmul.f32 %v2009, %v1924
        %v2021 = vmul.f32 %v2013, %v1925
        %v2023 = vlaneseq
        %v2024 = vshrl.u32 %v2023, 7
        %v2025 = vsub.s32 0, %v2024
        %v2026 = vrot.slane %v337, %v2025
        %v2027 = vlaneseq
        %v2028 = vshrl.u32 %v2027, 7
        %v2029 = vsub.s32 1, %v2028
        %v2030 = vrot.slane %v337, %v2029
        %v2031 = vlaneseq
        %v2032 = vshrl.u32 %v2031, 7
        %v2033 = vsub.s32 2, %v2032
        %v2034 = vrot.slane %v337, %v2033
        %v2035 = vlaneseq
        %v2036 = vshrl.u32 %v2035, 7
        %v2037 = vsub.s32 3, %v2036
        %v2038 = vrot.slane %v337, %v2037
        %v2043 = vadd.f32 %v2018, %v2026
        %v2044 = vadd.f32 %v2019, %v2030
        %v2045 = vadd.f32 %v2020, %v2034
        %v2046 = vadd.f32 %v2021, %v2038
        %v2047 = vmax.f32 %v2043, 0.0
        %v2048 = vmax.f32 %v2044, 0.0
        %v2049 = vmax.f32 %v2045, 0.0
        %v2050 = vmax.f32 %v2046, 0.0
        %v2051 = vpack.c.bf16 %v2047, %v2047
        %v2052 = vpack.c.bf16 %v2048, %v2048
        %v2053 = vpack.c.bf16 %v2049, %v2049
        %v2054 = vpack.c.bf16 %v2050, %v2050
        %v2055 = vld [vmem:[%s3] sm:$0xf]
        %v2056 = vld [vmem:[%s3 + $0x4] sm:$0xf]
        %v2057 = vld [vmem:[%s3 + $0x8] sm:$0xf]
        %v2058 = vld [vmem:[%s3 + $0xc] sm:$0xf]
        %v2059 = vld [vmem:[%s3 + $0x10] sm:$0xf]
        %v2060 = vld [vmem:[%s3 + $0x14] sm:$0xf]
        %v2061 = vld [vmem:[%s3 + $0x18] sm:$0xf]
        %v2062 = vld [vmem:[%s3 + $0x1c] sm:$0xf]
        %v2063 = vld [vmem:[%s3 + $0x20] sm:$0xf]
        %v2064 = vld [vmem:[%s3 + $0x24] sm:$0xf]
        %v2065 = vld [vmem:[%s3 + $0x28] sm:$0xf]
        %v2066 = vld [vmem:[%s3 + $0x2c] sm:$0xf]
        %v2067 = vld [vmem:[%s3 + $0x30] sm:$0xf]
        %v2068 = vld [vmem:[%s3 + $0x34] sm:$0xf]
        %v2069 = vld [vmem:[%s3 + $0x38] sm:$0xf]
        %v2070 = vld [vmem:[%s3 + $0x3c] sm:$0xf]
        %v2071 = vld [vmem:[%s3 + $0x40] sm:$0xf]
        %v2072 = vld [vmem:[%s3 + $0x44] sm:$0xf]
        %v2073 = vld [vmem:[%s3 + $0x48] sm:$0xf]
        %v2074 = vld [vmem:[%s3 + $0x4c] sm:$0xf]
        %v2075 = vld [vmem:[%s3 + $0x50] sm:$0xf]
        %v2076 = vld [vmem:[%s3 + $0x54] sm:$0xf]
        %v2077 = vld [vmem:[%s3 + $0x58] sm:$0xf]
        %v2078 = vld [vmem:[%s3 + $0x5c] sm:$0xf]
        %v2079 = vld [vmem:[%s3 + $0x60] sm:$0xf]
        %v2080 = vld [vmem:[%s3 + $0x64] sm:$0xf]
        %v2081 = vld [vmem:[%s3 + $0x68] sm:$0xf]
        %v2082 = vld [vmem:[%s3 + $0x6c] sm:$0xf]
        %v2083 = vld [vmem:[%s3 + $0x70] sm:$0xf]
        %v2084 = vld [vmem:[%s3 + $0x74] sm:$0xf]
        %v2085 = vld [vmem:[%s3 + $0x78] sm:$0xf]
        %v2086 = vld [vmem:[%s3 + $0x7c] sm:$0xf]
        %v2087 = vld [vmem:[%s3 + $0x80] sm:$0xf]
        %v2088 = vld [vmem:[%s3 + $0x84] sm:$0xf]
        %v2089 = vld [vmem:[%s3 + $0x88] sm:$0xf]
        %v2090 = vld [vmem:[%s3 + $0x8c] sm:$0xf]
        %v2091 = vld [vmem:[%s3 + $0x90] sm:$0xf]
        %v2092 = vld [vmem:[%s3 + $0x94] sm:$0xf]
        %v2093 = vld [vmem:[%s3 + $0x98] sm:$0xf]
        %v2094 = vld [vmem:[%s3 + $0x9c] sm:$0xf]
        %v2095 = vld [vmem:[%s3 + $0xa0] sm:$0xf]
        %v2096 = vld [vmem:[%s3 + $0xa4] sm:$0xf]
        %v2097 = vld [vmem:[%s3 + $0xa8] sm:$0xf]
        %v2098 = vld [vmem:[%s3 + $0xac] sm:$0xf]
        %v2099 = vld [vmem:[%s3 + $0xb0] sm:$0xf]
        %v2100 = vld [vmem:[%s3 + $0xb4] sm:$0xf]
        %v2101 = vld [vmem:[%s3 + $0xb8] sm:$0xf]
        %v2102 = vld [vmem:[%s3 + $0xbc] sm:$0xf]
        %v2103 = vld [vmem:[%s3 + $0xc0] sm:$0xf]
        %v2104 = vld [vmem:[%s3 + $0xc4] sm:$0xf]
        %v2155 = vunpack.c.l.b16 %v2055
        %v2156 = vunpack.c.l.b16 %v2056
        %v2157 = vunpack.c.l.b16 %v2057
        %v2158 = vunpack.c.l.b16 %v2058
        %v2159 = vunpack.c.l.b16 %v2059
        %v2160 = vunpack.c.l.b16 %v2060
        %v2161 = vunpack.c.l.b16 %v2061
        %v2162 = vunpack.c.l.b16 %v2062
        %v2163 = vunpack.c.l.b16 %v2063
        %v2164 = vunpack.c.l.b16 %v2064
        %v2165 = vunpack.c.l.b16 %v2065
        %v2166 = vunpack.c.l.b16 %v2066
        %v2167 = vunpack.c.l.b16 %v2067
        %v2168 = vunpack.c.l.b16 %v2068
        %v2169 = vunpack.c.l.b16 %v2069
        %v2170 = vunpack.c.l.b16 %v2070
        %v2171 = vunpack.c.l.b16 %v2071
        %v2172 = vunpack.c.l.b16 %v2072
        %v2173 = vunpack.c.l.b16 %v2073
        %v2174 = vunpack.c.l.b16 %v2074
        %v2175 = vunpack.c.l.b16 %v2075
        %v2176 = vunpack.c.l.b16 %v2076
        %v2177 = vunpack.c.l.b16 %v2077
        %v2178 = vunpack.c.l.b16 %v2078
        %v2179 = vunpack.c.l.b16 %v2079
        %v2180 = vunpack.c.l.b16 %v2080
        %v2181 = vunpack.c.l.b16 %v2081
        %v2182 = vunpack.c.l.b16 %v2082
        %v2183 = vunpack.c.l.b16 %v2083
        %v2184 = vunpack.c.l.b16 %v2084
        %v2185 = vunpack.c.l.b16 %v2085
        %v2186 = vunpack.c.l.b16 %v2086
        %v2187 = vunpack.c.l.b16 %v2087
        %v2188 = vunpack.c.l.b16 %v2088
        %v2189 = vunpack.c.l.b16 %v2089
        %v2190 = vunpack.c.l.b16 %v2090
        %v2191 = vunpack.c.l.b16 %v2091
        %v2192 = vunpack.c.l.b16 %v2092
        %v2193 = vunpack.c.l.b16 %v2093
        %v2194 = vunpack.c.l.b16 %v2094
        %v2195 = vunpack.c.l.b16 %v2095
        %v2196 = vunpack.c.l.b16 %v2096
        %v2197 = vunpack.c.l.b16 %v2097
        %v2198 = vunpack.c.l.b16 %v2098
        %v2199 = vunpack.c.l.b16 %v2099
        %v2200 = vunpack.c.l.b16 %v2100
        %v2201 = vunpack.c.l.b16 %v2101
        %v2202 = vunpack.c.l.b16 %v2102
        %v2203 = vunpack.c.l.b16 %v2103
        %v2204 = vunpack.c.l.b16 %v2104
        %v2205 = vpack.c.b16 %v2156, %v2155
        %v2206 = vpack.c.b16 %v2158, %v2157
        %v2207 = vpack.c.b16 %v2160, %v2159
        %v2208 = vpack.c.b16 %v2162, %v2161
        %v2209 = vpack.c.b16 %v2164, %v2163
        %v2210 = vpack.c.b16 %v2166, %v2165
        %v2211 = vpack.c.b16 %v2168, %v2167
        %v2212 = vpack.c.b16 %v2170, %v2169
        %v2213 = vpack.c.b16 %v2172, %v2171
        %v2214 = vpack.c.b16 %v2174, %v2173
        %v2215 = vpack.c.b16 %v2176, %v2175
        %v2216 = vpack.c.b16 %v2178, %v2177
        %v2217 = vpack.c.b16 %v2180, %v2179
        %v2218 = vpack.c.b16 %v2182, %v2181
        %v2219 = vpack.c.b16 %v2184, %v2183
        %v2220 = vpack.c.b16 %v2186, %v2185
        %v2221 = vpack.c.b16 %v2188, %v2187
        %v2222 = vpack.c.b16 %v2190, %v2189
        %v2223 = vpack.c.b16 %v2192, %v2191
        %v2224 = vpack.c.b16 %v2194, %v2193
        %v2225 = vpack.c.b16 %v2196, %v2195
        %v2226 = vpack.c.b16 %v2198, %v2197
        %v2227 = vpack.c.b16 %v2200, %v2199
        %v2228 = vpack.c.b16 %v2202, %v2201
        %v2229 = vpack.c.b16 %v2204, %v2203
        %v2256 = vsel %vm1560, %v2054, 0
        %2258 = vmatprep.subr.bf16.mxu0 0
        %2259 = vmatpush1.bf16.msra.mxu0 %v2212
        %2260 = vmatprep.subr.bf16.mxu0 0
        %2261 = vmatpush1.bf16.msra.mxu0 %v2211
        %2262 = vmatprep.subr.bf16.mxu0 0
        %2263 = vmatpush1.bf16.msra.mxu0 %v2210
        %2264 = vmatprep.subr.bf16.mxu0 0
        %2265 = vmatpush1.bf16.msra.mxu0 %v2209
        %2266 = vmatprep.subr.bf16.mxu0 0
        %2267 = vmatpush1.bf16.msra.mxu0 %v2208
        %2268 = vmatprep.subr.bf16.mxu0 0
        %2269 = vmatpush1.bf16.msra.mxu0 %v2207
        %2270 = vmatprep.subr.bf16.mxu0 0
        %2271 = vmatpush1.bf16.msra.mxu0 %v2206
        %2272 = vmatprep.subr.bf16.mxu0 0
        %2273 = vmatpush1.bf16.msra.mxu0 %v2205
        %2274 = vmatprep.subr.bf16.mxu0 0
        %2275 = vmatpush2.bf16.msra.mxu0 %v2220
        %2276 = vmatprep.subr.bf16.mxu0 0
        %2277 = vmatpush2.bf16.msra.mxu0 %v2219
        %2278 = vmatprep.subr.bf16.mxu0 0
        %2279 = vmatpush2.bf16.msra.mxu0 %v2218
        %2280 = vmatprep.subr.bf16.mxu0 0
        %2281 = vmatpush2.bf16.msra.mxu0 %v2217
        %2282 = vmatprep.subr.bf16.mxu0 0
        %2283 = vmatpush2.bf16.msra.mxu0 %v2216
        %2284 = vmatprep.subr.bf16.mxu0 0
        %2285 = vmatpush2.bf16.msra.mxu0 %v2215
        %2286 = vmatprep.subr.bf16.mxu0 0
        %2287 = vmatpush2.bf16.msra.mxu0 %v2214
        %2288 = vmatprep.subr.bf16.mxu0 0
        %2289 = vmatpush2.bf16.msra.mxu0 %v2213
        %2290 = vmatprep.mubr.bf16.mxu0 %v2052
        %2291 = vmatmul.mubr.bf16.gmra.mxu0 %v2051
        %v2292 = vpop.f32.mrf.mxu0
        %v2293 = vadd.f32 %v348, %v2292
        %v2294 = vpop.f32.mrf.mxu0
        %v2295 = vpop.f32.mrf.mxu0
        %v2296 = vpop.f32.mrf.mxu0
        %2297 = vdwg.mxu0
        %2298 = vmatprep.subr.bf16.mxu0 0
        %2299 = vmatpush1.bf16.msra.mxu0 %v2228
        %2300 = vmatprep.subr.bf16.mxu0 0
        %2301 = vmatpush1.bf16.msra.mxu0 %v2227
        %2302 = vmatprep.subr.bf16.mxu0 0
        %2303 = vmatpush1.bf16.msra.mxu0 %v2226
        %2304 = vmatprep.subr.bf16.mxu0 0
        %2305 = vmatpush1.bf16.msra.mxu0 %v2225
        %2306 = vmatprep.subr.bf16.mxu0 0
        %2307 = vmatpush1.bf16.msra.mxu0 %v2224
        %2308 = vmatprep.subr.bf16.mxu0 0
        %2309 = vmatpush1.bf16.msra.mxu0 %v2223
        %2310 = vmatprep.subr.bf16.mxu0 0
        %2311 = vmatpush1.bf16.msra.mxu0 %v2222
        %2312 = vmatprep.subr.bf16.mxu0 0
        %2313 = vmatpush1.bf16.msra.mxu0 %v2221
        %2314 = vmatprep.subr.bf16.mxu0 0
        %2315 = vmatpush2.bf16.msra.mxu0 0
        %2316 = vmatprep.subr.bf16.mxu0 0
        %2317 = vmatpush2.bf16.msra.mxu0 0
        %2318 = vmatprep.subr.bf16.mxu0 0
        %2319 = vmatpush2.bf16.msra.mxu0 0
        %2320 = vmatprep.subr.bf16.mxu0 0
        %2321 = vmatpush2.bf16.msra.mxu0 0
        %2322 = vmatprep.subr.bf16.mxu0 0
        %2323 = vmatpush2.bf16.msra.mxu0 0
        %2324 = vmatprep.subr.bf16.mxu0 0
        %2325 = vmatpush2.bf16.msra.mxu0 0
        %2326 = vmatprep.subr.bf16.mxu0 0
        %2327 = vmatpush2.bf16.msra.mxu0 0
        %2328 = vmatprep.subr.bf16.mxu0 0
        %2329 = vmatpush2.bf16.msra.mxu0 %v2229
        %2330 = vmatprep.mubr.bf16.mxu0 %v2256
        %2331 = vmatmul.mubr.bf16.gmra.mxu0 %v2053
        %v2332 = vpop.f32.mrf.mxu0
        %v2333 = vadd.f32 %v2293, %v2332
        %v2334 = vpop.f32.mrf.mxu0
        %v2335 = vpop.f32.mrf.mxu0
        %v2336 = vpop.f32.mrf.mxu0
        %2337 = vdwg.mxu0
        %v2338 = vld [vmem:[%s327] sm:$0xff]
        %v2339 = vmul.f32 %v2333, 0.5
        %v2340 = vmul.f32 %v2339, 1.442695
        %v2341 = vpow.pop %v2340
        %2343 = vrot.lane.b32.xlu0 %v2341, 126
        %v2344 = vpop.permute.xlu0 %2343
        %v2346 = vmul.f32 %v2338, %v2344
        %v2347 = vadd.f32 %v2333, %v2346
        %v2348 = vld [vmem:[%s4] ss:$2 sm:$0xf]
        %2350 = vset.pattern.permute.xlu0 0
        %2351 = vperm.xlu0 %2350, %v2347
        %v2352 = vpop.permute.xlu0 %2351
        %v2355 = vlaneseq
        %v2356 = vshrl.u32 %v2355, 7
        %v2357 = vsub.s32 0, %v2356
        %v2358 = vrot.slane %v2348, %v2357
        %v2359 = vlaneseq
        %v2360 = vshrl.u32 %v2359, 7
        %v2361 = vsub.s32 1, %v2360
        %v2362 = vrot.slane %v2348, %v2361
        %v2363 = vlaneseq
        %v2364 = vshrl.u32 %v2363, 7
        %v2365 = vsub.s32 2, %v2364
        %v2366 = vrot.slane %v2348, %v2365
        %v2367 = vlaneseq
        %v2368 = vshrl.u32 %v2367, 7
        %v2369 = vsub.s32 3, %v2368
        %v2370 = vrot.slane %v2348, %v2369
        %v2375 = vmul.f32 %v2352, %v2358
        %v2376 = vmul.f32 %v2352, %v2362
        %v2377 = vmul.f32 %v2352, %v2366
        %v2378 = vmul.f32 %v2352, %v2370
        %s2379 = scalar_lea.vmem %s4, 1
        %v2380 = vld [vmem:[%s2379] ss:$2 sm:$0xf]
        %2381 = vset.pattern.permute.xlu0 1
        %2382 = vperm.xlu0 %2381, %v2347
        %v2383 = vpop.permute.xlu0 %2382
        %v2386 = vlaneseq
        %v2387 = vshrl.u32 %v2386, 7
        %v2388 = vsub.s32 0, %v2387
        %v2389 = vrot.slane %v2380, %v2388
        %v2390 = vlaneseq
        %v2391 = vshrl.u32 %v2390, 7
        %v2392 = vsub.s32 1, %v2391
        %v2393 = vrot.slane %v2380, %v2392
        %v2394 = vlaneseq
        %v2395 = vshrl.u32 %v2394, 7
        %v2396 = vsub.s32 2, %v2395
        %v2397 = vrot.slane %v2380, %v2396
        %v2398 = vlaneseq
        %v2399 = vshrl.u32 %v2398, 7
        %v2400 = vsub.s32 3, %v2399
        %v2401 = vrot.slane %v2380, %v2400
        %v2406 = vmul.f32 %v2383, %v2389
        %v2407 = vmul.f32 %v2383, %v2393
        %v2408 = vmul.f32 %v2383, %v2397
        %v2409 = vmul.f32 %v2383, %v2401
        %v2410 = vadd.f32 %v2375, %v2406
        %v2411 = vadd.f32 %v2376, %v2407
        %v2412 = vadd.f32 %v2377, %v2408
        %v2413 = vadd.f32 %v2378, %v2409
        %v2415 = vlaneseq
        %v2416 = vshrl.u32 %v2415, 7
        %v2417 = vsub.s32 0, %v2416
        %v2418 = vrot.slane %v339, %v2417
        %v2419 = vlaneseq
        %v2420 = vshrl.u32 %v2419, 7
        %v2421 = vsub.s32 1, %v2420
        %v2422 = vrot.slane %v339, %v2421
        %v2423 = vlaneseq
        %v2424 = vshrl.u32 %v2423, 7
        %v2425 = vsub.s32 2, %v2424
        %v2426 = vrot.slane %v339, %v2425
        %v2427 = vlaneseq
        %v2428 = vshrl.u32 %v2427, 7
        %v2429 = vsub.s32 3, %v2428
        %v2430 = vrot.slane %v339, %v2429
        %v2435 = vadd.f32 %v2410, %v2418
        %v2436 = vadd.f32 %v2411, %v2422
        %v2437 = vadd.f32 %v2412, %v2426
        %v2438 = vadd.f32 %v2413, %v2430
        %v2439 = vrot.slane %v2435, 4
        %v2440 = vadd.f32 %v2435, %v2439
        %v2441 = vrot.slane %v2440, 2
        %v2442 = vadd.f32 %v2440, %v2441
        %v2443 = vrot.slane %v2442, 1
        %v2444 = vadd.f32 %v2442, %v2443
        %v2445 = vrot.slane %v2436, 4
        %v2446 = vadd.f32 %v2436, %v2445
        %v2447 = vrot.slane %v2446, 2
        %v2448 = vadd.f32 %v2446, %v2447
        %v2449 = vrot.slane %v2448, 1
        %v2450 = vadd.f32 %v2448, %v2449
        %v2451 = vrot.slane %v2437, 4
        %v2452 = vadd.f32 %v2437, %v2451
        %v2453 = vrot.slane %v2452, 2
        %v2454 = vadd.f32 %v2452, %v2453
        %v2455 = vrot.slane %v2454, 1
        %v2456 = vadd.f32 %v2454, %v2455
        %v2457 = vsel %vm1560, %v2438, 0.0
        %v2458 = vrot.slane %v2457, 4
        %v2459 = vadd.f32 %v2457, %v2458
        %v2460 = vrot.slane %v2459, 2
        %v2461 = vadd.f32 %v2459, %v2460
        %v2462 = vrot.slane %v2461, 1
        %v2463 = vadd.f32 %v2461, %v2462
        %v2464 = vmul.f32 %v2444, %v1917
        %v2465 = vmul.f32 %v2450, %v1917
        %v2466 = vmul.f32 %v2456, %v1917
        %v2467 = vmul.f32 %v2463, %v1917
        %v2468 = vsub.f32 %v2435, %v2464
        %v2469 = vsub.f32 %v2436, %v2465
        %v2470 = vsub.f32 %v2437, %v2466
        %v2471 = vsub.f32 %v2438, %v2467
        %v2472 = vmul.f32 %v2468, %v2468
        %v2473 = vmul.f32 %v2469, %v2469
        %v2474 = vmul.f32 %v2470, %v2470
        %v2475 = vmul.f32 %v2471, %v2471
        %v2476 = vrot.slane %v2472, 4
        %v2477 = vadd.f32 %v2472, %v2476
        %v2478 = vrot.slane %v2477, 2
        %v2479 = vadd.f32 %v2477, %v2478
        %v2480 = vrot.slane %v2479, 1
        %v2481 = vadd.f32 %v2479, %v2480
        %v2482 = vrot.slane %v2473, 4
        %v2483 = vadd.f32 %v2473, %v2482
        %v2484 = vrot.slane %v2483, 2
        %v2485 = vadd.f32 %v2483, %v2484
        %v2486 = vrot.slane %v2485, 1
        %v2487 = vadd.f32 %v2485, %v2486
        %v2488 = vrot.slane %v2474, 4
        %v2489 = vadd.f32 %v2474, %v2488
        %v2490 = vrot.slane %v2489, 2
        %v2491 = vadd.f32 %v2489, %v2490
        %v2492 = vrot.slane %v2491, 1
        %v2493 = vadd.f32 %v2491, %v2492
        %v2494 = vsel %vm1560, %v2475, 0.0
        %v2495 = vrot.slane %v2494, 4
        %v2496 = vadd.f32 %v2494, %v2495
        %v2497 = vrot.slane %v2496, 2
        %v2498 = vadd.f32 %v2496, %v2497
        %v2499 = vrot.slane %v2498, 1
        %v2500 = vadd.f32 %v2498, %v2499
        %v2501 = vmul.f32 %v2481, %v1917
        %v2502 = vmul.f32 %v2487, %v1917
        %v2503 = vmul.f32 %v2493, %v1917
        %v2504 = vmul.f32 %v2500, %v1917
        %v2505 = vadd.f32 %v2501, 1e-05
        %v2506 = vadd.f32 %v2502, 1e-05
        %v2507 = vadd.f32 %v2503, 1e-05
        %v2508 = vadd.f32 %v2504, 1e-05
        %v2509 = vrsqrt.pop %v2505
        %v2510 = vrsqrt.pop %v2506
        %v2511 = vrsqrt.pop %v2507
        %v2512 = vrsqrt.pop %v2508
        %v2517 = vcombine.low %v2509, %v2510
        %v2518 = vcombine.low %v2511, %v2512
        %v2520 = vunpack.c.l.s4 1966171168
        %v2521 = vunpack.c.0.s8 %v2520
        %v2522 = vlaneseq
        %v2523 = vshrl.u32 %v2522, 7
        %v2524 = vsub.s32 %v2521, %v2523
        %v2525 = vrot.slane %v2517, %v2524
        %v2527 = vunpack.c.l.s4 1966171168
        %v2528 = vunpack.c.0.s8 %v2527
        %v2529 = vlaneseq
        %v2530 = vshrl.u32 %v2529, 7
        %v2531 = vsub.s32 %v2528, %v2530
        %v2532 = vrot.slane %v2518, %v2531
        %v2533 = vcombine.low %v2525, %v2532
        %v2535 = vunpack.c.l.s4 1966171168
        %v2536 = vunpack.c.0.s8 %v2535
        %v2537 = vlaneseq
        %v2538 = vshrl.u32 %v2537, 7
        %v2539 = vsub.s32 %v2536, %v2538
        %v2540 = vrot.slane %v2533, %v2539
        %v2542 = vmul.f32 %v341, %v2540
        %v2544 = vlaneseq
        %v2545 = vshrl.u32 %v2544, 7
        %v2546 = vsub.s32 0, %v2545
        %v2547 = vrot.slane %v2542, %v2546
        %v2548 = vlaneseq
        %v2549 = vshrl.u32 %v2548, 7
        %v2550 = vsub.s32 1, %v2549
        %v2551 = vrot.slane %v2542, %v2550
        %v2552 = vlaneseq
        %v2553 = vshrl.u32 %v2552, 7
        %v2554 = vsub.s32 2, %v2553
        %v2555 = vrot.slane %v2542, %v2554
        %v2556 = vlaneseq
        %v2557 = vshrl.u32 %v2556, 7
        %v2558 = vsub.s32 3, %v2557
        %v2559 = vrot.slane %v2542, %v2558
        %v2564 = vmul.f32 %v2547, %v2468
        %v2565 = vmul.f32 %v2551, %v2469
        %v2566 = vmul.f32 %v2555, %v2470
        %v2567 = vmul.f32 %v2559, %v2471
        %v2569 = vlaneseq
        %v2570 = vshrl.u32 %v2569, 7
        %v2571 = vsub.s32 0, %v2570
        %v2572 = vrot.slane %v343, %v2571
        %v2573 = vlaneseq
        %v2574 = vshrl.u32 %v2573, 7
        %v2575 = vsub.s32 1, %v2574
        %v2576 = vrot.slane %v343, %v2575
        %v2577 = vlaneseq
        %v2578 = vshrl.u32 %v2577, 7
        %v2579 = vsub.s32 2, %v2578
        %v2580 = vrot.slane %v343, %v2579
        %v2581 = vlaneseq
        %v2582 = vshrl.u32 %v2581, 7
        %v2583 = vsub.s32 3, %v2582
        %v2584 = vrot.slane %v343, %v2583
        %v2589 = vadd.f32 %v2564, %v2572
        %v2590 = vadd.f32 %v2565, %v2576
        %v2591 = vadd.f32 %v2566, %v2580
        %v2592 = vadd.f32 %v2567, %v2584
        %v2593 = vmax.f32 %v2589, 0.0
        %v2594 = vmax.f32 %v2590, 0.0
        %v2595 = vmax.f32 %v2591, 0.0
        %v2596 = vmax.f32 %v2592, 0.0
        %v2597 = vpack.c.bf16 %v2593, %v2593
        %v2598 = vpack.c.bf16 %v2594, %v2594
        %v2599 = vpack.c.bf16 %v2595, %v2595
        %v2600 = vpack.c.bf16 %v2596, %v2596
        %v2601 = vld [vmem:[%s5] sm:$0xff]
        %v2602 = vld [vmem:[%s5 + $0x8] sm:$0xff]
        %v2603 = vld [vmem:[%s5 + $0x10] sm:$0xff]
        %v2604 = vld [vmem:[%s5 + $0x18] sm:$0xf]
        %v2605 = vld [vmem:[%s5 + $0x1c] sm:$0xff]
        %v2606 = vld [vmem:[%s5 + $0x24] sm:$0xff]
        %v2607 = vld [vmem:[%s5 + $0x2c] sm:$0xff]
        %v2608 = vld [vmem:[%s5 + $0x34] sm:$0xf]
        %v2609 = vld [vmem:[%s5 + $0x38] sm:$0xff]
        %v2610 = vld [vmem:[%s5 + $0x40] sm:$0xff]
        %v2611 = vld [vmem:[%s5 + $0x48] sm:$0xff]
        %v2612 = vld [vmem:[%s5 + $0x50] sm:$0xf]
        %v2613 = vld [vmem:[%s5 + $0x54] sm:$0xff]
        %v2614 = vld [vmem:[%s5 + $0x5c] sm:$0xff]
        %v2615 = vld [vmem:[%s5 + $0x64] sm:$0xff]
        %v2616 = vld [vmem:[%s5 + $0x6c] sm:$0xf]
        %v2617 = vld [vmem:[%s5 + $0x70] sm:$0xff]
        %v2618 = vld [vmem:[%s5 + $0x78] sm:$0xff]
        %v2619 = vld [vmem:[%s5 + $0x80] sm:$0xff]
        %v2620 = vld [vmem:[%s5 + $0x88] sm:$0xf]
        %v2621 = vld [vmem:[%s5 + $0x8c] sm:$0xff]
        %v2622 = vld [vmem:[%s5 + $0x94] sm:$0xff]
        %v2623 = vld [vmem:[%s5 + $0x9c] sm:$0xff]
        %v2624 = vld [vmem:[%s5 + $0xa4] sm:$0xf]
        %v2625 = vld [vmem:[%s5 + $0xa8] sm:$0xff]
        %v2626 = vld [vmem:[%s5 + $0xb0] sm:$0xff]
        %v2627 = vld [vmem:[%s5 + $0xb8] sm:$0xff]
        %v2628 = vld [vmem:[%s5 + $0xc0] sm:$0xf]
        %v2629 = vld [vmem:[%s5 + $0xc4] sm:$0xff]
        %v2630 = vld [vmem:[%s5 + $0xcc] sm:$0xff]
        %v2631 = vld [vmem:[%s5 + $0xd4] sm:$0xff]
        %v2632 = vld [vmem:[%s5 + $0xdc] sm:$0xf]
        %v2633 = vld [vmem:[%s5 + $0xe0] sm:$0xff]
        %v2634 = vld [vmem:[%s5 + $0xe8] sm:$0xff]
        %v2635 = vld [vmem:[%s5 + $0xf0] sm:$0xff]
        %v2636 = vld [vmem:[%s5 + $0xf8] sm:$0xf]
        %v2637 = vld [vmem:[%s5 + $0xfc] sm:$0xff]
        %v2638 = vld [vmem:[%s5 + $0x104] sm:$0xff]
        %v2639 = vld [vmem:[%s5 + $0x10c] sm:$0xff]
        %v2640 = vld [vmem:[%s5 + $0x114] sm:$0xf]
        %v2641 = vld [vmem:[%s5 + $0x118] sm:$0xff]
        %v2642 = vld [vmem:[%s5 + $0x120] sm:$0xff]
        %v2643 = vld [vmem:[%s5 + $0x128] sm:$0xff]
        %v2644 = vld [vmem:[%s5 + $0x130] sm:$0xf]
        %v2645 = vld [vmem:[%s5 + $0x134] sm:$0xff]
        %v2646 = vld [vmem:[%s5 + $0x13c] sm:$0xff]
        %v2647 = vld [vmem:[%s5 + $0x144] sm:$0xff]
        %v2648 = vld [vmem:[%s5 + $0x14c] sm:$0xf]
        %v2649 = vld [vmem:[%s5 + $0x150] sm:$0xff]
        %v2650 = vld [vmem:[%s5 + $0x158] sm:$0xff]
        %v2651 = vld [vmem:[%s5 + $0x160] sm:$0xff]
        %v2652 = vld [vmem:[%s5 + $0x168] sm:$0xf]
        %v2653 = vld [vmem:[%s5 + $0x16c] sm:$0xff]
        %v2654 = vld [vmem:[%s5 + $0x174] sm:$0xff]
        %v2655 = vld [vmem:[%s5 + $0x17c] sm:$0xff]
        %v2656 = vld [vmem:[%s5 + $0x184] sm:$0xf]
        %v2657 = vld [vmem:[%s5 + $0x188] sm:$0xff]
        %v2658 = vld [vmem:[%s5 + $0x190] sm:$0xff]
        %v2659 = vld [vmem:[%s5 + $0x198] sm:$0xff]
        %v2660 = vld [vmem:[%s5 + $0x1a0] sm:$0xf]
        %v2661 = vld [vmem:[%s5 + $0x1a4] sm:$0xff]
        %v2662 = vld [vmem:[%s5 + $0x1ac] sm:$0xff]
        %v2663 = vld [vmem:[%s5 + $0x1b4] sm:$0xff]
        %v2664 = vld [vmem:[%s5 + $0x1bc] sm:$0xf]
        %v2665 = vld [vmem:[%s5 + $0x1c0] sm:$0xff]
        %v2666 = vld [vmem:[%s5 + $0x1c8] sm:$0xff]
        %v2667 = vld [vmem:[%s5 + $0x1d0] sm:$0xff]
        %v2668 = vld [vmem:[%s5 + $0x1d8] sm:$0xf]
        %v2669 = vld [vmem:[%s5 + $0x1dc] sm:$0xff]
        %v2670 = vld [vmem:[%s5 + $0x1e4] sm:$0xff]
        %v2671 = vld [vmem:[%s5 + $0x1ec] sm:$0xff]
        %v2672 = vld [vmem:[%s5 + $0x1f4] sm:$0xf]
        %v2673 = vld [vmem:[%s5 + $0x1f8] sm:$0xff]
        %v2674 = vld [vmem:[%s5 + $0x200] sm:$0xff]
        %v2675 = vld [vmem:[%s5 + $0x208] sm:$0xff]
        %v2676 = vld [vmem:[%s5 + $0x210] sm:$0xf]
        %v2677 = vld [vmem:[%s5 + $0x214] sm:$0xff]
        %v2678 = vld [vmem:[%s5 + $0x21c] sm:$0xff]
        %v2679 = vld [vmem:[%s5 + $0x224] sm:$0xff]
        %v2680 = vld [vmem:[%s5 + $0x22c] sm:$0xf]
        %v2681 = vld [vmem:[%s5 + $0x230] sm:$0xff]
        %v2682 = vld [vmem:[%s5 + $0x238] sm:$0xff]
        %v2683 = vld [vmem:[%s5 + $0x240] sm:$0xff]
        %v2684 = vld [vmem:[%s5 + $0x248] sm:$0xf]
        %v2685 = vld [vmem:[%s5 + $0x24c] sm:$0xff]
        %v2686 = vld [vmem:[%s5 + $0x254] sm:$0xff]
        %v2687 = vld [vmem:[%s5 + $0x25c] sm:$0xff]
        %v2688 = vld [vmem:[%s5 + $0x264] sm:$0xf]
        %v2689 = vld [vmem:[%s5 + $0x268] sm:$0xff]
        %v2690 = vld [vmem:[%s5 + $0x270] sm:$0xff]
        %v2691 = vld [vmem:[%s5 + $0x278] sm:$0xff]
        %v2692 = vld [vmem:[%s5 + $0x280] sm:$0xf]
        %v2693 = vld [vmem:[%s5 + $0x284] sm:$0xff]
        %v2694 = vld [vmem:[%s5 + $0x28c] sm:$0xff]
        %v2695 = vld [vmem:[%s5 + $0x294] sm:$0xff]
        %v2696 = vld [vmem:[%s5 + $0x29c] sm:$0xf]
        %v2697 = vld [vmem:[%s5 + $0x2a0] sm:$0xff]
        %v2698 = vld [vmem:[%s5 + $0x2a8] sm:$0xff]
        %v2699 = vld [vmem:[%s5 + $0x2b0] sm:$0xff]
        %v2700 = vld [vmem:[%s5 + $0x2b8] sm:$0xf]
        %v2701 = vld [vmem:[%s5 + $0x2bc] sm:$0xff]
        %v2702 = vld [vmem:[%s5 + $0x2c4] sm:$0xff]
        %v2703 = vld [vmem:[%s5 + $0x2cc] sm:$0xff]
        %v2704 = vld [vmem:[%s5 + $0x2d4] sm:$0xf]
        %v2705 = vld [vmem:[%s5 + $0x2d8] sm:$0xff]
        %v2706 = vld [vmem:[%s5 + $0x2e0] sm:$0xff]
        %v2707 = vld [vmem:[%s5 + $0x2e8] sm:$0xff]
        %v2708 = vld [vmem:[%s5 + $0x2f0] sm:$0xf]
        %v2709 = vld [vmem:[%s5 + $0x2f4] sm:$0xff]
        %v2710 = vld [vmem:[%s5 + $0x2fc] sm:$0xff]
        %v2711 = vld [vmem:[%s5 + $0x304] sm:$0xff]
        %v2712 = vld [vmem:[%s5 + $0x30c] sm:$0xf]
        %v2713 = vld [vmem:[%s5 + $0x310] sm:$0xff]
        %v2714 = vld [vmem:[%s5 + $0x318] sm:$0xff]
        %v2715 = vld [vmem:[%s5 + $0x320] sm:$0xff]
        %v2716 = vld [vmem:[%s5 + $0x328] sm:$0xf]
        %v2717 = vld [vmem:[%s5 + $0x32c] sm:$0xff]
        %v2718 = vld [vmem:[%s5 + $0x334] sm:$0xff]
        %v2719 = vld [vmem:[%s5 + $0x33c] sm:$0xff]
        %v2720 = vld [vmem:[%s5 + $0x344] sm:$0xf]
        %v2721 = vld [vmem:[%s5 + $0x348] sm:$0xff]
        %v2722 = vld [vmem:[%s5 + $0x350] sm:$0xff]
        %v2723 = vld [vmem:[%s5 + $0x358] sm:$0xff]
        %v2724 = vld [vmem:[%s5 + $0x360] sm:$0xf]
        %v2725 = vld [vmem:[%s5 + $0x364] sm:$0xff]
        %v2726 = vld [vmem:[%s5 + $0x36c] sm:$0xff]
        %v2727 = vld [vmem:[%s5 + $0x374] sm:$0xff]
        %v2728 = vld [vmem:[%s5 + $0x37c] sm:$0xf]
        %v2729 = vld [vmem:[%s5 + $0x380] sm:$0xff]
        %v2730 = vld [vmem:[%s5 + $0x388] sm:$0xff]
        %v2731 = vld [vmem:[%s5 + $0x390] sm:$0xff]
        %v2732 = vld [vmem:[%s5 + $0x398] sm:$0xf]
        %v2733 = vld [vmem:[%s5 + $0x39c] sm:$0xff]
        %v2734 = vld [vmem:[%s5 + $0x3a4] sm:$0xff]
        %v2735 = vld [vmem:[%s5 + $0x3ac] sm:$0xff]
        %v2736 = vld [vmem:[%s5 + $0x3b4] sm:$0xf]
        %v2737 = vld [vmem:[%s5 + $0x3b8] sm:$0xff]
        %v2738 = vld [vmem:[%s5 + $0x3c0] sm:$0xff]
        %v2739 = vld [vmem:[%s5 + $0x3c8] sm:$0xff]
        %v2740 = vld [vmem:[%s5 + $0x3d0] sm:$0xf]
        %v2741 = vld [vmem:[%s5 + $0x3d4] sm:$0xff]
        %v2742 = vld [vmem:[%s5 + $0x3dc] sm:$0xff]
        %v2743 = vld [vmem:[%s5 + $0x3e4] sm:$0xff]
        %v2744 = vld [vmem:[%s5 + $0x3ec] sm:$0xf]
        %v2745 = vld [vmem:[%s5 + $0x3f0] sm:$0xff]
        %v2746 = vld [vmem:[%s5 + $0x3f8] sm:$0xff]
        %v2747 = vld [vmem:[%s5 + $0x400] sm:$0xff]
        %v2748 = vld [vmem:[%s5 + $0x408] sm:$0xf]
        %v2749 = vld [vmem:[%s5 + $0x40c] sm:$0xff]
        %v2750 = vld [vmem:[%s5 + $0x414] sm:$0xff]
        %v2751 = vld [vmem:[%s5 + $0x41c] sm:$0xff]
        %v2752 = vld [vmem:[%s5 + $0x424] sm:$0xf]
        %v2753 = vld [vmem:[%s5 + $0x428] sm:$0xff]
        %v2754 = vld [vmem:[%s5 + $0x430] sm:$0xff]
        %v2755 = vld [vmem:[%s5 + $0x438] sm:$0xff]
        %v2756 = vld [vmem:[%s5 + $0x440] sm:$0xf]
        %v2757 = vld [vmem:[%s5 + $0x444] sm:$0xff]
        %v2758 = vld [vmem:[%s5 + $0x44c] sm:$0xff]
        %v2759 = vld [vmem:[%s5 + $0x454] sm:$0xff]
        %v2760 = vld [vmem:[%s5 + $0x45c] sm:$0xf]
        %v2761 = vld [vmem:[%s5 + $0x460] sm:$0xff]
        %v2762 = vld [vmem:[%s5 + $0x468] sm:$0xff]
        %v2763 = vld [vmem:[%s5 + $0x470] sm:$0xff]
        %v2764 = vld [vmem:[%s5 + $0x478] sm:$0xf]
        %v2765 = vld [vmem:[%s5 + $0x47c] sm:$0xff]
        %v2766 = vld [vmem:[%s5 + $0x484] sm:$0xff]
        %v2767 = vld [vmem:[%s5 + $0x48c] sm:$0xff]
        %v2768 = vld [vmem:[%s5 + $0x494] sm:$0xf]
        %v2769 = vld [vmem:[%s5 + $0x498] sm:$0xff]
        %v2770 = vld [vmem:[%s5 + $0x4a0] sm:$0xff]
        %v2771 = vld [vmem:[%s5 + $0x4a8] sm:$0xff]
        %v2772 = vld [vmem:[%s5 + $0x4b0] sm:$0xf]
        %v2773 = vld [vmem:[%s5 + $0x4b4] sm:$0xff]
        %v2774 = vld [vmem:[%s5 + $0x4bc] sm:$0xff]
        %v2775 = vld [vmem:[%s5 + $0x4c4] sm:$0xff]
        %v2776 = vld [vmem:[%s5 + $0x4cc] sm:$0xf]
        %v2777 = vld [vmem:[%s5 + $0x4d0] sm:$0xff]
        %v2778 = vld [vmem:[%s5 + $0x4d8] sm:$0xff]
        %v2779 = vld [vmem:[%s5 + $0x4e0] sm:$0xff]
        %v2780 = vld [vmem:[%s5 + $0x4e8] sm:$0xf]
        %v2781 = vld [vmem:[%s5 + $0x4ec] sm:$0xff]
        %v2782 = vld [vmem:[%s5 + $0x4f4] sm:$0xff]
        %v2783 = vld [vmem:[%s5 + $0x4fc] sm:$0xff]
        %v2784 = vld [vmem:[%s5 + $0x504] sm:$0xf]
        %v2785 = vld [vmem:[%s5 + $0x508] sm:$0xff]
        %v2786 = vld [vmem:[%s5 + $0x510] sm:$0xff]
        %v2787 = vld [vmem:[%s5 + $0x518] sm:$0xff]
        %v2788 = vld [vmem:[%s5 + $0x520] sm:$0xf]
        %v2789 = vld [vmem:[%s5 + $0x524] sm:$0xff]
        %v2790 = vld [vmem:[%s5 + $0x52c] sm:$0xff]
        %v2791 = vld [vmem:[%s5 + $0x534] sm:$0xff]
        %v2792 = vld [vmem:[%s5 + $0x53c] sm:$0xf]
        %v2793 = vld [vmem:[%s5 + $0x540] sm:$0xff]
        %v2794 = vld [vmem:[%s5 + $0x548] sm:$0xff]
        %v2795 = vld [vmem:[%s5 + $0x550] sm:$0xff]
        %v2796 = vld [vmem:[%s5 + $0x558] sm:$0xf]
        %v2797 = vld [vmem:[%s5 + $0x55c] sm:$0xff]
        %v2798 = vld [vmem:[%s5 + $0x564] sm:$0xff]
        %v2799 = vld [vmem:[%s5 + $0x56c] sm:$0xff]
        %v2800 = vld [vmem:[%s5 + $0x574] sm:$0xf]
        %v2802 = vlaneseq
        %v2803 = vshrl.u32 %v2802, 7
        %v2804 = vsub.s32 0, %v2803
        %v2805 = vrot.slane %v347, %v2804
        %v2806 = vlaneseq
        %v2807 = vshrl.u32 %v2806, 7
        %v2808 = vsub.s32 1, %v2807
        %v2809 = vrot.slane %v347, %v2808
        %v2810 = vlaneseq
        %v2811 = vshrl.u32 %v2810, 7
        %v2812 = vsub.s32 2, %v2811
        %v2813 = vrot.slane %v347, %v2812
        %v2814 = vlaneseq
        %v2815 = vshrl.u32 %v2814, 7
        %v2816 = vsub.s32 3, %v2815
        %v2817 = vrot.slane %v347, %v2816
        %v2818 = vlaneseq
        %v2819 = vshrl.u32 %v2818, 7
        %v2820 = vsub.s32 4, %v2819
        %v2821 = vrot.slane %v347, %v2820
        %v2822 = vlaneseq
        %v2823 = vshrl.u32 %v2822, 7
        %v2824 = vsub.s32 5, %v2823
        %v2825 = vrot.slane %v347, %v2824
        %v2826 = vlaneseq
        %v2827 = vshrl.u32 %v2826, 7
        %v2828 = vsub.s32 6, %v2827
        %v2829 = vrot.slane %v347, %v2828
        %v3037 = vunpack.c.l.b16 %v2601
        %v3038 = vunpack.c.h.b16 %v2601
        %v3039 = vunpack.c.l.b16 %v2602
        %v3040 = vunpack.c.h.b16 %v2602
        %v3041 = vunpack.c.l.b16 %v2603
        %v3042 = vunpack.c.h.b16 %v2603
        %v3043 = vunpack.c.l.b16 %v2604
        %v3044 = vunpack.c.l.b16 %v2605
        %v3045 = vunpack.c.h.b16 %v2605
        %v3046 = vunpack.c.l.b16 %v2606
        %v3047 = vunpack.c.h.b16 %v2606
        %v3048 = vunpack.c.l.b16 %v2607
        %v3049 = vunpack.c.h.b16 %v2607
        %v3050 = vunpack.c.l.b16 %v2608
        %v3051 = vunpack.c.l.b16 %v2609
        %v3052 = vunpack.c.h.b16 %v2609
        %v3053 = vunpack.c.l.b16 %v2610
        %v3054 = vunpack.c.h.b16 %v2610
        %v3055 = vunpack.c.l.b16 %v2611
        %v3056 = vunpack.c.h.b16 %v2611
        %v3057 = vunpack.c.l.b16 %v2612
        %v3058 = vunpack.c.l.b16 %v2613
        %v3059 = vunpack.c.h.b16 %v2613
        %v3060 = vunpack.c.l.b16 %v2614
        %v3061 = vunpack.c.h.b16 %v2614
        %v3062 = vunpack.c.l.b16 %v2615
        %v3063 = vunpack.c.h.b16 %v2615
        %v3064 = vunpack.c.l.b16 %v2616
        %v3065 = vunpack.c.l.b16 %v2617
        %v3066 = vunpack.c.h.b16 %v2617
        %v3067 = vunpack.c.l.b16 %v2618
        %v3068 = vunpack.c.h.b16 %v2618
        %v3069 = vunpack.c.l.b16 %v2619
        %v3070 = vunpack.c.h.b16 %v2619
        %v3071 = vunpack.c.l.b16 %v2620
        %v3072 = vunpack.c.l.b16 %v2621
        %v3073 = vunpack.c.h.b16 %v2621
        %v3074 = vunpack.c.l.b16 %v2622
        %v3075 = vunpack.c.h.b16 %v2622
        %v3076 = vunpack.c.l.b16 %v2623
        %v3077 = vunpack.c.h.b16 %v2623
        %v3078 = vunpack.c.l.b16 %v2624
        %v3079 = vunpack.c.l.b16 %v2625
        %v3080 = vunpack.c.h.b16 %v2625
        %v3081 = vunpack.c.l.b16 %v2626
        %v3082 = vunpack.c.h.b16 %v2626
        %v3083 = vunpack.c.l.b16 %v2627
        %v3084 = vunpack.c.h.b16 %v2627
        %v3085 = vunpack.c.l.b16 %v2628
        %v3086 = vunpack.c.l.b16 %v2629
        %v3087 = vunpack.c.h.b16 %v2629
        %v3088 = vunpack.c.l.b16 %v2630
        %v3089 = vunpack.c.h.b16 %v2630
        %v3090 = vunpack.c.l.b16 %v2631
        %v3091 = vunpack.c.h.b16 %v2631
        %v3092 = vunpack.c.l.b16 %v2632
        %v3093 = vunpack.c.l.b16 %v2633
        %v3094 = vunpack.c.h.b16 %v2633
        %v3095 = vunpack.c.l.b16 %v2634
        %v3096 = vunpack.c.h.b16 %v2634
        %v3097 = vunpack.c.l.b16 %v2635
        %v3098 = vunpack.c.h.b16 %v2635
        %v3099 = vunpack.c.l.b16 %v2636
        %v3100 = vunpack.c.l.b16 %v2637
        %v3101 = vunpack.c.h.b16 %v2637
        %v3102 = vunpack.c.l.b16 %v2638
        %v3103 = vunpack.c.h.b16 %v2638
        %v3104 = vunpack.c.l.b16 %v2639
        %v3105 = vunpack.c.h.b16 %v2639
        %v3106 = vunpack.c.l.b16 %v2640
        %v3107 = vunpack.c.l.b16 %v2641
        %v3108 = vunpack.c.h.b16 %v2641
        %v3109 = vunpack.c.l.b16 %v2642
        %v3110 = vunpack.c.h.b16 %v2642
        %v3111 = vunpack.c.l.b16 %v2643
        %v3112 = vunpack.c.h.b16 %v2643
        %v3113 = vunpack.c.l.b16 %v2644
        %v3114 = vunpack.c.l.b16 %v2645
        %v3115 = vunpack.c.h.b16 %v2645
        %v3116 = vunpack.c.l.b16 %v2646
        %v3117 = vunpack.c.h.b16 %v2646
        %v3118 = vunpack.c.l.b16 %v2647
        %v3119 = vunpack.c.h.b16 %v2647
        %v3120 = vunpack.c.l.b16 %v2648
        %v3121 = vunpack.c.l.b16 %v2649
        %v3122 = vunpack.c.h.b16 %v2649
        %v3123 = vunpack.c.l.b16 %v2650
        %v3124 = vunpack.c.h.b16 %v2650
        %v3125 = vunpack.c.l.b16 %v2651
        %v3126 = vunpack.c.h.b16 %v2651
        %v3127 = vunpack.c.l.b16 %v2652
        %v3128 = vunpack.c.l.b16 %v2653
        %v3129 = vunpack.c.h.b16 %v2653
        %v3130 = vunpack.c.l.b16 %v2654
        %v3131 = vunpack.c.h.b16 %v2654
        %v3132 = vunpack.c.l.b16 %v2655
        %v3133 = vunpack.c.h.b16 %v2655
        %v3134 = vunpack.c.l.b16 %v2656
        %v3135 = vunpack.c.l.b16 %v2657
        %v3136 = vunpack.c.h.b16 %v2657
        %v3137 = vunpack.c.l.b16 %v2658
        %v3138 = vunpack.c.h.b16 %v2658
        %v3139 = vunpack.c.l.b16 %v2659
        %v3140 = vunpack.c.h.b16 %v2659
        %v3141 = vunpack.c.l.b16 %v2660
        %v3142 = vunpack.c.l.b16 %v2661
        %v3143 = vunpack.c.h.b16 %v2661
        %v3144 = vunpack.c.l.b16 %v2662
        %v3145 = vunpack.c.h.b16 %v2662
        %v3146 = vunpack.c.l.b16 %v2663
        %v3147 = vunpack.c.h.b16 %v2663
        %v3148 = vunpack.c.l.b16 %v2664
        %v3149 = vunpack.c.l.b16 %v2665
        %v3150 = vunpack.c.h.b16 %v2665
        %v3151 = vunpack.c.l.b16 %v2666
        %v3152 = vunpack.c.h.b16 %v2666
        %v3153 = vunpack.c.l.b16 %v2667
        %v3154 = vunpack.c.h.b16 %v2667
        %v3155 = vunpack.c.l.b16 %v2668
        %v3156 = vunpack.c.l.b16 %v2669
        %v3157 = vunpack.c.h.b16 %v2669
        %v3158 = vunpack.c.l.b16 %v2670
        %v3159 = vunpack.c.h.b16 %v2670
        %v3160 = vunpack.c.l.b16 %v2671
        %v3161 = vunpack.c.h.b16 %v2671
        %v3162 = vunpack.c.l.b16 %v2672
        %v3163 = vunpack.c.l.b16 %v2673
        %v3164 = vunpack.c.h.b16 %v2673
        %v3165 = vunpack.c.l.b16 %v2674
        %v3166 = vunpack.c.h.b16 %v2674
        %v3167 = vunpack.c.l.b16 %v2675
        %v3168 = vunpack.c.h.b16 %v2675
        %v3169 = vunpack.c.l.b16 %v2676
        %v3170 = vunpack.c.l.b16 %v2677
        %v3171 = vunpack.c.h.b16 %v2677
        %v3172 = vunpack.c.l.b16 %v2678
        %v3173 = vunpack.c.h.b16 %v2678
        %v3174 = vunpack.c.l.b16 %v2679
        %v3175 = vunpack.c.h.b16 %v2679
        %v3176 = vunpack.c.l.b16 %v2680
        %v3177 = vunpack.c.l.b16 %v2681
        %v3178 = vunpack.c.h.b16 %v2681
        %v3179 = vunpack.c.l.b16 %v2682
        %v3180 = vunpack.c.h.b16 %v2682
        %v3181 = vunpack.c.l.b16 %v2683
        %v3182 = vunpack.c.h.b16 %v2683
        %v3183 = vunpack.c.l.b16 %v2684
        %v3184 = vunpack.c.l.b16 %v2685
        %v3185 = vunpack.c.h.b16 %v2685
        %v3186 = vunpack.c.l.b16 %v2686
        %v3187 = vunpack.c.h.b16 %v2686
        %v3188 = vunpack.c.l.b16 %v2687
        %v3189 = vunpack.c.h.b16 %v2687
        %v3190 = vunpack.c.l.b16 %v2688
        %v3191 = vunpack.c.l.b16 %v2689
        %v3192 = vunpack.c.h.b16 %v2689
        %v3193 = vunpack.c.l.b16 %v2690
        %v3194 = vunpack.c.h.b16 %v2690
        %v3195 = vunpack.c.l.b16 %v2691
        %v3196 = vunpack.c.h.b16 %v2691
        %v3197 = vunpack.c.l.b16 %v2692
        %v3198 = vunpack.c.l.b16 %v2693
        %v3199 = vunpack.c.h.b16 %v2693
        %v3200 = vunpack.c.l.b16 %v2694
        %v3201 = vunpack.c.h.b16 %v2694
        %v3202 = vunpack.c.l.b16 %v2695
        %v3203 = vunpack.c.h.b16 %v2695
        %v3204 = vunpack.c.l.b16 %v2696
        %v3205 = vunpack.c.l.b16 %v2697
        %v3206 = vunpack.c.h.b16 %v2697
        %v3207 = vunpack.c.l.b16 %v2698
        %v3208 = vunpack.c.h.b16 %v2698
        %v3209 = vunpack.c.l.b16 %v2699
        %v3210 = vunpack.c.h.b16 %v2699
        %v3211 = vunpack.c.l.b16 %v2700
        %v3212 = vunpack.c.l.b16 %v2701
        %v3213 = vunpack.c.h.b16 %v2701
        %v3214 = vunpack.c.l.b16 %v2702
        %v3215 = vunpack.c.h.b16 %v2702
        %v3216 = vunpack.c.l.b16 %v2703
        %v3217 = vunpack.c.h.b16 %v2703
        %v3218 = vunpack.c.l.b16 %v2704
        %v3219 = vunpack.c.l.b16 %v2705
        %v3220 = vunpack.c.h.b16 %v2705
        %v3221 = vunpack.c.l.b16 %v2706
        %v3222 = vunpack.c.h.b16 %v2706
        %v3223 = vunpack.c.l.b16 %v2707
        %v3224 = vunpack.c.h.b16 %v2707
        %v3225 = vunpack.c.l.b16 %v2708
        %v3226 = vunpack.c.l.b16 %v2709
        %v3227 = vunpack.c.h.b16 %v2709
        %v3228 = vunpack.c.l.b16 %v2710
        %v3229 = vunpack.c.h.b16 %v2710
        %v3230 = vunpack.c.l.b16 %v2711
        %v3231 = vunpack.c.h.b16 %v2711
        %v3232 = vunpack.c.l.b16 %v2712
        %v3233 = vunpack.c.l.b16 %v2713
        %v3234 = vunpack.c.h.b16 %v2713
        %v3235 = vunpack.c.l.b16 %v2714
        %v3236 = vunpack.c.h.b16 %v2714
        %v3237 = vunpack.c.l.b16 %v2715
        %v3238 = vunpack.c.h.b16 %v2715
        %v3239 = vunpack.c.l.b16 %v2716
        %v3240 = vunpack.c.l.b16 %v2717
        %v3241 = vunpack.c.h.b16 %v2717
        %v3242 = vunpack.c.l.b16 %v2718
        %v3243 = vunpack.c.h.b16 %v2718
        %v3244 = vunpack.c.l.b16 %v2719
        %v3245 = vunpack.c.h.b16 %v2719
        %v3246 = vunpack.c.l.b16 %v2720
        %v3247 = vunpack.c.l.b16 %v2721
        %v3248 = vunpack.c.h.b16 %v2721
        %v3249 = vunpack.c.l.b16 %v2722
        %v3250 = vunpack.c.h.b16 %v2722
        %v3251 = vunpack.c.l.b16 %v2723
        %v3252 = vunpack.c.h.b16 %v2723
        %v3253 = vunpack.c.l.b16 %v2724
        %v3254 = vunpack.c.l.b16 %v2725
        %v3255 = vunpack.c.h.b16 %v2725
        %v3256 = vunpack.c.l.b16 %v2726
        %v3257 = vunpack.c.h.b16 %v2726
        %v3258 = vunpack.c.l.b16 %v2727
        %v3259 = vunpack.c.h.b16 %v2727
        %v3260 = vunpack.c.l.b16 %v2728
        %v3261 = vunpack.c.l.b16 %v2729
        %v3262 = vunpack.c.h.b16 %v2729
        %v3263 = vunpack.c.l.b16 %v2730
        %v3264 = vunpack.c.h.b16 %v2730
        %v3265 = vunpack.c.l.b16 %v2731
        %v3266 = vunpack.c.h.b16 %v2731
        %v3267 = vunpack.c.l.b16 %v2732
        %v3268 = vunpack.c.l.b16 %v2733
        %v3269 = vunpack.c.h.b16 %v2733
        %v3270 = vunpack.c.l.b16 %v2734
        %v3271 = vunpack.c.h.b16 %v2734
        %v3272 = vunpack.c.l.b16 %v2735
        %v3273 = vunpack.c.h.b16 %v2735
        %v3274 = vunpack.c.l.b16 %v2736
        %v3275 = vunpack.c.l.b16 %v2737
        %v3276 = vunpack.c.h.b16 %v2737
        %v3277 = vunpack.c.l.b16 %v2738
        %v3278 = vunpack.c.h.b16 %v2738
        %v3279 = vunpack.c.l.b16 %v2739
        %v3280 = vunpack.c.h.b16 %v2739
        %v3281 = vunpack.c.l.b16 %v2740
        %v3282 = vunpack.c.l.b16 %v2741
        %v3283 = vunpack.c.h.b16 %v2741
        %v3284 = vunpack.c.l.b16 %v2742
        %v3285 = vunpack.c.h.b16 %v2742
        %v3286 = vunpack.c.l.b16 %v2743
        %v3287 = vunpack.c.h.b16 %v2743
        %v3288 = vunpack.c.l.b16 %v2744
        %v3289 = vunpack.c.l.b16 %v2745
        %v3290 = vunpack.c.h.b16 %v2745
        %v3291 = vunpack.c.l.b16 %v2746
        %v3292 = vunpack.c.h.b16 %v2746
        %v3293 = vunpack.c.l.b16 %v2747
        %v3294 = vunpack.c.h.b16 %v2747
        %v3295 = vunpack.c.l.b16 %v2748
        %v3296 = vunpack.c.l.b16 %v2749
        %v3297 = vunpack.c.h.b16 %v2749
        %v3298 = vunpack.c.l.b16 %v2750
        %v3299 = vunpack.c.h.b16 %v2750
        %v3300 = vunpack.c.l.b16 %v2751
        %v3301 = vunpack.c.h.b16 %v2751
        %v3302 = vunpack.c.l.b16 %v2752
        %v3303 = vunpack.c.l.b16 %v2753
        %v3304 = vunpack.c.h.b16 %v2753
        %v3305 = vunpack.c.l.b16 %v2754
        %v3306 = vunpack.c.h.b16 %v2754
        %v3307 = vunpack.c.l.b16 %v2755
        %v3308 = vunpack.c.h.b16 %v2755
        %v3309 = vunpack.c.l.b16 %v2756
        %v3310 = vunpack.c.l.b16 %v2757
        %v3311 = vunpack.c.h.b16 %v2757
        %v3312 = vunpack.c.l.b16 %v2758
        %v3313 = vunpack.c.h.b16 %v2758
        %v3314 = vunpack.c.l.b16 %v2759
        %v3315 = vunpack.c.h.b16 %v2759
        %v3316 = vunpack.c.l.b16 %v2760
        %v3317 = vunpack.c.l.b16 %v2761
        %v3318 = vunpack.c.h.b16 %v2761
        %v3319 = vunpack.c.l.b16 %v2762
        %v3320 = vunpack.c.h.b16 %v2762
        %v3321 = vunpack.c.l.b16 %v2763
        %v3322 = vunpack.c.h.b16 %v2763
        %v3323 = vunpack.c.l.b16 %v2764
        %v3324 = vunpack.c.l.b16 %v2765
        %v3325 = vunpack.c.h.b16 %v2765
        %v3326 = vunpack.c.l.b16 %v2766
        %v3327 = vunpack.c.h.b16 %v2766
        %v3328 = vunpack.c.l.b16 %v2767
        %v3329 = vunpack.c.h.b16 %v2767
        %v3330 = vunpack.c.l.b16 %v2768
        %v3331 = vunpack.c.l.b16 %v2769
        %v3332 = vunpack.c.h.b16 %v2769
        %v3333 = vunpack.c.l.b16 %v2770
        %v3334 = vunpack.c.h.b16 %v2770
        %v3335 = vunpack.c.l.b16 %v2771
        %v3336 = vunpack.c.h.b16 %v2771
        %v3337 = vunpack.c.l.b16 %v2772
        %v3338 = vunpack.c.l.b16 %v2773
        %v3339 = vunpack.c.h.b16 %v2773
        %v3340 = vunpack.c.l.b16 %v2774
        %v3341 = vunpack.c.h.b16 %v2774
        %v3342 = vunpack.c.l.b16 %v2775
        %v3343 = vunpack.c.h.b16 %v2775
        %v3344 = vunpack.c.l.b16 %v2776
        %v3345 = vunpack.c.l.b16 %v2777
        %v3346 = vunpack.c.h.b16 %v2777
        %v3347 = vunpack.c.l.b16 %v2778
        %v3348 = vunpack.c.h.b16 %v2778
        %v3349 = vunpack.c.l.b16 %v2779
        %v3350 = vunpack.c.h.b16 %v2779
        %v3351 = vunpack.c.l.b16 %v2780
        %v3352 = vunpack.c.l.b16 %v2781
        %v3353 = vunpack.c.h.b16 %v2781
        %v3354 = vunpack.c.l.b16 %v2782
        %v3355 = vunpack.c.h.b16 %v2782
        %v3356 = vunpack.c.l.b16 %v2783
        %v3357 = vunpack.c.h.b16 %v2783
        %v3358 = vunpack.c.l.b16 %v2784
        %v3359 = vunpack.c.l.b16 %v2785
        %v3360 = vunpack.c.h.b16 %v2785
        %v3361 = vunpack.c.l.b16 %v2786
        %v3362 = vunpack.c.h.b16 %v2786
        %v3363 = vunpack.c.l.b16 %v2787
        %v3364 = vunpack.c.h.b16 %v2787
        %v3365 = vunpack.c.l.b16 %v2788
        %v3366 = vunpack.c.l.b16 %v2789
        %v3367 = vunpack.c.h.b16 %v2789
        %v3368 = vunpack.c.l.b16 %v2790
        %v3369 = vunpack.c.h.b16 %v2790
        %v3370 = vunpack.c.l.b16 %v2791
        %v3371 = vunpack.c.h.b16 %v2791
        %v3372 = vunpack.c.l.b16 %v2792
        %v3373 = vunpack.c.l.b16 %v2793
        %v3374 = vunpack.c.h.b16 %v2793
        %v3375 = vunpack.c.l.b16 %v2794
        %v3376 = vunpack.c.h.b16 %v2794
        %v3377 = vunpack.c.l.b16 %v2795
        %v3378 = vunpack.c.h.b16 %v2795
        %v3379 = vunpack.c.l.b16 %v2796
        %v3380 = vunpack.c.l.b16 %v2797
        %v3381 = vunpack.c.h.b16 %v2797
        %v3382 = vunpack.c.l.b16 %v2798
        %v3383 = vunpack.c.h.b16 %v2798
        %v3384 = vunpack.c.l.b16 %v2799
        %v3385 = vunpack.c.h.b16 %v2799
        %v3386 = vunpack.c.l.b16 %v2800
        %v3387 = vpack.c.b16 %v3044, %v3037
        %v3388 = vpack.c.b16 %v3045, %v3038
        %v3389 = vpack.c.b16 %v3046, %v3039
        %v3390 = vpack.c.b16 %v3047, %v3040
        %v3391 = vpack.c.b16 %v3048, %v3041
        %v3392 = vpack.c.b16 %v3049, %v3042
        %v3393 = vpack.c.b16 %v3050, %v3043
        %v3394 = vpack.c.b16 %v3058, %v3051
        %v3395 = vpack.c.b16 %v3059, %v3052
        %v3396 = vpack.c.b16 %v3060, %v3053
        %v3397 = vpack.c.b16 %v3061, %v3054
        %v3398 = vpack.c.b16 %v3062, %v3055
        %v3399 = vpack.c.b16 %v3063, %v3056
        %v3400 = vpack.c.b16 %v3064, %v3057
        %v3401 = vpack.c.b16 %v3072, %v3065
        %v3402 = vpack.c.b16 %v3073, %v3066
        %v3403 = vpack.c.b16 %v3074, %v3067
        %v3404 = vpack.c.b16 %v3075, %v3068
        %v3405 = vpack.c.b16 %v3076, %v3069
        %v3406 = vpack.c.b16 %v3077, %v3070
        %v3407 = vpack.c.b16 %v3078, %v3071
        %v3408 = vpack.c.b16 %v3086, %v3079
        %v3409 = vpack.c.b16 %v3087, %v3080
        %v3410 = vpack.c.b16 %v3088, %v3081
        %v3411 = vpack.c.b16 %v3089, %v3082
        %v3412 = vpack.c.b16 %v3090, %v3083
        %v3413 = vpack.c.b16 %v3091, %v3084
        %v3414 = vpack.c.b16 %v3092, %v3085
        %v3415 = vpack.c.b16 %v3100, %v3093
        %v3416 = vpack.c.b16 %v3101, %v3094
        %v3417 = vpack.c.b16 %v3102, %v3095
        %v3418 = vpack.c.b16 %v3103, %v3096
        %v3419 = vpack.c.b16 %v3104, %v3097
        %v3420 = vpack.c.b16 %v3105, %v3098
        %v3421 = vpack.c.b16 %v3106, %v3099
        %v3422 = vpack.c.b16 %v3114, %v3107
        %v3423 = vpack.c.b16 %v3115, %v3108
        %v3424 = vpack.c.b16 %v3116, %v3109
        %v3425 = vpack.c.b16 %v3117, %v3110
        %v3426 = vpack.c.b16 %v3118, %v3111
        %v3427 = vpack.c.b16 %v3119, %v3112
        %v3428 = vpack.c.b16 %v3120, %v3113
        %v3429 = vpack.c.b16 %v3128, %v3121
        %v3430 = vpack.c.b16 %v3129, %v3122
        %v3431 = vpack.c.b16 %v3130, %v3123
        %v3432 = vpack.c.b16 %v3131, %v3124
        %v3433 = vpack.c.b16 %v3132, %v3125
        %v3434 = vpack.c.b16 %v3133, %v3126
        %v3435 = vpack.c.b16 %v3134, %v3127
        %v3436 = vpack.c.b16 %v3142, %v3135
        %v3437 = vpack.c.b16 %v3143, %v3136
        %v3438 = vpack.c.b16 %v3144, %v3137
        %v3439 = vpack.c.b16 %v3145, %v3138
        %v3440 = vpack.c.b16 %v3146, %v3139
        %v3441 = vpack.c.b16 %v3147, %v3140
        %v3442 = vpack.c.b16 %v3148, %v3141
        %v3443 = vpack.c.b16 %v3156, %v3149
        %v3444 = vpack.c.b16 %v3157, %v3150
        %v3445 = vpack.c.b16 %v3158, %v3151
        %v3446 = vpack.c.b16 %v3159, %v3152
        %v3447 = vpack.c.b16 %v3160, %v3153
        %v3448 = vpack.c.b16 %v3161, %v3154
        %v3449 = vpack.c.b16 %v3162, %v3155
        %v3450 = vpack.c.b16 %v3170, %v3163
        %v3451 = vpack.c.b16 %v3171, %v3164
        %v3452 = vpack.c.b16 %v3172, %v3165
        %v3453 = vpack.c.b16 %v3173, %v3166
        %v3454 = vpack.c.b16 %v3174, %v3167
        %v3455 = vpack.c.b16 %v3175, %v3168
        %v3456 = vpack.c.b16 %v3176, %v3169
        %v3457 = vpack.c.b16 %v3184, %v3177
        %v3458 = vpack.c.b16 %v3185, %v3178
        %v3459 = vpack.c.b16 %v3186, %v3179
        %v3460 = vpack.c.b16 %v3187, %v3180
        %v3461 = vpack.c.b16 %v3188, %v3181
        %v3462 = vpack.c.b16 %v3189, %v3182
        %v3463 = vpack.c.b16 %v3190, %v3183
        %v3464 = vpack.c.b16 %v3198, %v3191
        %v3465 = vpack.c.b16 %v3199, %v3192
        %v3466 = vpack.c.b16 %v3200, %v3193
        %v3467 = vpack.c.b16 %v3201, %v3194
        %v3468 = vpack.c.b16 %v3202, %v3195
        %v3469 = vpack.c.b16 %v3203, %v3196
        %v3470 = vpack.c.b16 %v3204, %v3197
        %v3471 = vpack.c.b16 %v3212, %v3205
        %v3472 = vpack.c.b16 %v3213, %v3206
        %v3473 = vpack.c.b16 %v3214, %v3207
        %v3474 = vpack.c.b16 %v3215, %v3208
        %v3475 = vpack.c.b16 %v3216, %v3209
        %v3476 = vpack.c.b16 %v3217, %v3210
        %v3477 = vpack.c.b16 %v3218, %v3211
        %v3478 = vpack.c.b16 %v3226, %v3219
        %v3479 = vpack.c.b16 %v3227, %v3220
        %v3480 = vpack.c.b16 %v3228, %v3221
        %v3481 = vpack.c.b16 %v3229, %v3222
        %v3482 = vpack.c.b16 %v3230, %v3223
        %v3483 = vpack.c.b16 %v3231, %v3224
        %v3484 = vpack.c.b16 %v3232, %v3225
        %v3485 = vpack.c.b16 %v3240, %v3233
        %v3486 = vpack.c.b16 %v3241, %v3234
        %v3487 = vpack.c.b16 %v3242, %v3235
        %v3488 = vpack.c.b16 %v3243, %v3236
        %v3489 = vpack.c.b16 %v3244, %v3237
        %v3490 = vpack.c.b16 %v3245, %v3238
        %v3491 = vpack.c.b16 %v3246, %v3239
        %v3492 = vpack.c.b16 %v3254, %v3247
        %v3493 = vpack.c.b16 %v3255, %v3248
        %v3494 = vpack.c.b16 %v3256, %v3249
        %v3495 = vpack.c.b16 %v3257, %v3250
        %v3496 = vpack.c.b16 %v3258, %v3251
        %v3497 = vpack.c.b16 %v3259, %v3252
        %v3498 = vpack.c.b16 %v3260, %v3253
        %v3499 = vpack.c.b16 %v3268, %v3261
        %v3500 = vpack.c.b16 %v3269, %v3262
        %v3501 = vpack.c.b16 %v3270, %v3263
        %v3502 = vpack.c.b16 %v3271, %v3264
        %v3503 = vpack.c.b16 %v3272, %v3265
        %v3504 = vpack.c.b16 %v3273, %v3266
        %v3505 = vpack.c.b16 %v3274, %v3267
        %v3506 = vpack.c.b16 %v3282, %v3275
        %v3507 = vpack.c.b16 %v3283, %v3276
        %v3508 = vpack.c.b16 %v3284, %v3277
        %v3509 = vpack.c.b16 %v3285, %v3278
        %v3510 = vpack.c.b16 %v3286, %v3279
        %v3511 = vpack.c.b16 %v3287, %v3280
        %v3512 = vpack.c.b16 %v3288, %v3281
        %v3513 = vpack.c.b16 %v3296, %v3289
        %v3514 = vpack.c.b16 %v3297, %v3290
        %v3515 = vpack.c.b16 %v3298, %v3291
        %v3516 = vpack.c.b16 %v3299, %v3292
        %v3517 = vpack.c.b16 %v3300, %v3293
        %v3518 = vpack.c.b16 %v3301, %v3294
        %v3519 = vpack.c.b16 %v3302, %v3295
        %v3520 = vpack.c.b16 %v3310, %v3303
        %v3521 = vpack.c.b16 %v3311, %v3304
        %v3522 = vpack.c.b16 %v3312, %v3305
        %v3523 = vpack.c.b16 %v3313, %v3306
        %v3524 = vpack.c.b16 %v3314, %v3307
        %v3525 = vpack.c.b16 %v3315, %v3308
        %v3526 = vpack.c.b16 %v3316, %v3309
        %v3527 = vpack.c.b16 %v3324, %v3317
        %v3528 = vpack.c.b16 %v3325, %v3318
        %v3529 = vpack.c.b16 %v3326, %v3319
        %v3530 = vpack.c.b16 %v3327, %v3320
        %v3531 = vpack.c.b16 %v3328, %v3321
        %v3532 = vpack.c.b16 %v3329, %v3322
        %v3533 = vpack.c.b16 %v3330, %v3323
        %v3534 = vpack.c.b16 %v3338, %v3331
        %v3535 = vpack.c.b16 %v3339, %v3332
        %v3536 = vpack.c.b16 %v3340, %v3333
        %v3537 = vpack.c.b16 %v3341, %v3334
        %v3538 = vpack.c.b16 %v3342, %v3335
        %v3539 = vpack.c.b16 %v3343, %v3336
        %v3540 = vpack.c.b16 %v3344, %v3337
        %v3541 = vpack.c.b16 %v3352, %v3345
        %v3542 = vpack.c.b16 %v3353, %v3346
        %v3543 = vpack.c.b16 %v3354, %v3347
        %v3544 = vpack.c.b16 %v3355, %v3348
        %v3545 = vpack.c.b16 %v3356, %v3349
        %v3546 = vpack.c.b16 %v3357, %v3350
        %v3547 = vpack.c.b16 %v3358, %v3351
        %v3548 = vpack.c.b16 %v3366, %v3359
        %v3549 = vpack.c.b16 %v3367, %v3360
        %v3550 = vpack.c.b16 %v3368, %v3361
        %v3551 = vpack.c.b16 %v3369, %v3362
        %v3552 = vpack.c.b16 %v3370, %v3363
        %v3553 = vpack.c.b16 %v3371, %v3364
        %v3554 = vpack.c.b16 %v3372, %v3365
        %v3555 = vpack.c.b16 %v3380, %v3373
        %v3556 = vpack.c.b16 %v3381, %v3374
        %v3557 = vpack.c.b16 %v3382, %v3375
        %v3558 = vpack.c.b16 %v3383, %v3376
        %v3559 = vpack.c.b16 %v3384, %v3377
        %v3560 = vpack.c.b16 %v3385, %v3378
        %v3561 = vpack.c.b16 %v3386, %v3379
        %v3738 = vsel %vm1560, %v2600, 0
        %3740 = vmatprep.subr.bf16.mxu0 %v3437
        %3741 = vmatpush1.bf16.msra.mxu0 %v3436
        %3742 = vmatprep.subr.bf16.mxu0 %v3430
        %3743 = vmatpush1.bf16.msra.mxu0 %v3429
        %3744 = vmatprep.subr.bf16.mxu0 %v3423
        %3745 = vmatpush1.bf16.msra.mxu0 %v3422
        %3746 = vmatprep.subr.bf16.mxu0 %v3416
        %3747 = vmatpush1.bf16.msra.mxu0 %v3415
        %3748 = vmatprep.subr.bf16.mxu0 %v3409
        %3749 = vmatpush1.bf16.msra.mxu0 %v3408
        %3750 = vmatprep.subr.bf16.mxu0 %v3402
        %3751 = vmatpush1.bf16.msra.mxu0 %v3401
        %3752 = vmatprep.subr.bf16.mxu0 %v3395
        %3753 = vmatpush1.bf16.msra.mxu0 %v3394
        %3754 = vmatprep.subr.bf16.mxu0 %v3388
        %3755 = vmatpush1.bf16.msra.mxu0 %v3387
        %3756 = vmatprep.subr.bf16.mxu0 %v3493
        %3757 = vmatpush2.bf16.msra.mxu0 %v3492
        %3758 = vmatprep.subr.bf16.mxu0 %v3486
        %3759 = vmatpush2.bf16.msra.mxu0 %v3485
        %3760 = vmatprep.subr.bf16.mxu0 %v3479
        %3761 = vmatpush2.bf16.msra.mxu0 %v3478
        %3762 = vmatprep.subr.bf16.mxu0 %v3472
        %3763 = vmatpush2.bf16.msra.mxu0 %v3471
        %3764 = vmatprep.subr.bf16.mxu0 %v3465
        %3765 = vmatpush2.bf16.msra.mxu0 %v3464
        %3766 = vmatprep.subr.bf16.mxu0 %v3458
        %3767 = vmatpush2.bf16.msra.mxu0 %v3457
        %3768 = vmatprep.subr.bf16.mxu0 %v3451
        %3769 = vmatpush2.bf16.msra.mxu0 %v3450
        %3770 = vmatprep.subr.bf16.mxu0 %v3444
        %3771 = vmatpush2.bf16.msra.mxu0 %v3443
        %3772 = vmatprep.mubr.bf16.mxu0 %v2598
        %3773 = vmatmul.mubr.bf16.gmra.mxu0 %v2597
        %v3774 = vpop.f32.mrf.mxu0
        %v3775 = vadd.f32 %v2805, %v3774
        %v3776 = vpop.f32.mrf.mxu0
        %v3777 = vadd.f32 %v2809, %v3776
        %v3778 = vpop.f32.mrf.mxu0
        %v3779 = vpop.f32.mrf.mxu0
        %3780 = vdwg.mxu0
        %3781 = vmatprep.subr.bf16.mxu0 %v3549
        %3782 = vmatpush1.bf16.msra.mxu0 %v3548
        %3783 = vmatprep.subr.bf16.mxu0 %v3542
        %3784 = vmatpush1.bf16.msra.mxu0 %v3541
        %3785 = vmatprep.subr.bf16.mxu0 %v3535
        %3786 = vmatpush1.bf16.msra.mxu0 %v3534
        %3787 = vmatprep.subr.bf16.mxu0 %v3528
        %3788 = vmatpush1.bf16.msra.mxu0 %v3527
        %3789 = vmatprep.subr.bf16.mxu0 %v3521
        %3790 = vmatpush1.bf16.msra.mxu0 %v3520
        %3791 = vmatprep.subr.bf16.mxu0 %v3514
        %3792 = vmatpush1.bf16.msra.mxu0 %v3513
        %3793 = vmatprep.subr.bf16.mxu0 %v3507
        %3794 = vmatpush1.bf16.msra.mxu0 %v3506
        %3795 = vmatprep.subr.bf16.mxu0 %v3500
        %3796 = vmatpush1.bf16.msra.mxu0 %v3499
        %3797 = vmatprep.subr.bf16.mxu0 0
        %3798 = vmatpush2.bf16.msra.mxu0 0
        %3799 = vmatprep.subr.bf16.mxu0 0
        %3800 = vmatpush2.bf16.msra.mxu0 0
        %3801 = vmatprep.subr.bf16.mxu0 0
        %3802 = vmatpush2.bf16.msra.mxu0 0
        %3803 = vmatprep.subr.bf16.mxu0 0
        %3804 = vmatpush2.bf16.msra.mxu0 0
        %3805 = vmatprep.subr.bf16.mxu0 0
        %3806 = vmatpush2.bf16.msra.mxu0 0
        %3807 = vmatprep.subr.bf16.mxu0 0
        %3808 = vmatpush2.bf16.msra.mxu0 0
        %3809 = vmatprep.subr.bf16.mxu0 0
        %3810 = vmatpush2.bf16.msra.mxu0 0
        %3811 = vmatprep.subr.bf16.mxu0 %v3556
        %3812 = vmatpush2.bf16.msra.mxu0 %v3555
        %3813 = vmatprep.mubr.bf16.mxu0 %v3738
        %3814 = vmatmul.mubr.bf16.gmra.mxu0 %v2599
        %v3815 = vpop.f32.mrf.mxu0
        %v3816 = vadd.f32 %v3775, %v3815
        %v3817 = vpop.f32.mrf.mxu0
        %v3818 = vadd.f32 %v3777, %v3817
        %v3819 = vpop.f32.mrf.mxu0
        %v3820 = vpop.f32.mrf.mxu0
        %3821 = vdwg.mxu0
        %3822 = vmatprep.subr.bf16.mxu0 %v3439
        %3823 = vmatpush1.bf16.msra.mxu0 %v3438
        %3824 = vmatprep.subr.bf16.mxu0 %v3432
        %3825 = vmatpush1.bf16.msra.mxu0 %v3431
        %3826 = vmatprep.subr.bf16.mxu0 %v3425
        %3827 = vmatpush1.bf16.msra.mxu0 %v3424
        %3828 = vmatprep.subr.bf16.mxu0 %v3418
        %3829 = vmatpush1.bf16.msra.mxu0 %v3417
        %3830 = vmatprep.subr.bf16.mxu0 %v3411
        %3831 = vmatpush1.bf16.msra.mxu0 %v3410
        %3832 = vmatprep.subr.bf16.mxu0 %v3404
        %3833 = vmatpush1.bf16.msra.mxu0 %v3403
        %3834 = vmatprep.subr.bf16.mxu0 %v3397
        %3835 = vmatpush1.bf16.msra.mxu0 %v3396
        %3836 = vmatprep.subr.bf16.mxu0 %v3390
        %3837 = vmatpush1.bf16.msra.mxu0 %v3389
        %3838 = vmatprep.subr.bf16.mxu0 %v3495
        %3839 = vmatpush2.bf16.msra.mxu0 %v3494
        %3840 = vmatprep.subr.bf16.mxu0 %v3488
        %3841 = vmatpush2.bf16.msra.mxu0 %v3487
        %3842 = vmatprep.subr.bf16.mxu0 %v3481
        %3843 = vmatpush2.bf16.msra.mxu0 %v3480
        %3844 = vmatprep.subr.bf16.mxu0 %v3474
        %3845 = vmatpush2.bf16.msra.mxu0 %v3473
        %3846 = vmatprep.subr.bf16.mxu0 %v3467
        %3847 = vmatpush2.bf16.msra.mxu0 %v3466
        %3848 = vmatprep.subr.bf16.mxu0 %v3460
        %3849 = vmatpush2.bf16.msra.mxu0 %v3459
        %3850 = vmatprep.subr.bf16.mxu0 %v3453
        %3851 = vmatpush2.bf16.msra.mxu0 %v3452
        %3852 = vmatprep.subr.bf16.mxu0 %v3446
        %3853 = vmatpush2.bf16.msra.mxu0 %v3445
        %3854 = vmatprep.mubr.bf16.mxu0 %v2598
        %3855 = vmatmul.mubr.bf16.gmra.mxu0 %v2597
        %v3856 = vpop.f32.mrf.mxu0
        %v3857 = vadd.f32 %v2813, %v3856
        %v3858 = vpop.f32.mrf.mxu0
        %v3859 = vadd.f32 %v2817, %v3858
        %v3860 = vpop.f32.mrf.mxu0
        %v3861 = vpop.f32.mrf.mxu0
        %3862 = vdwg.mxu0
        %3863 = vmatprep.subr.bf16.mxu0 %v3551
        %3864 = vmatpush1.bf16.msra.mxu0 %v3550
        %3865 = vmatprep.subr.bf16.mxu0 %v3544
        %3866 = vmatpush1.bf16.msra.mxu0 %v3543
        %3867 = vmatprep.subr.bf16.mxu0 %v3537
        %3868 = vmatpush1.bf16.msra.mxu0 %v3536
        %3869 = vmatprep.subr.bf16.mxu0 %v3530
        %3870 = vmatpush1.bf16.msra.mxu0 %v3529
        %3871 = vmatprep.subr.bf16.mxu0 %v3523
        %3872 = vmatpush1.bf16.msra.mxu0 %v3522
        %3873 = vmatprep.subr.bf16.mxu0 %v3516
        %3874 = vmatpush1.bf16.msra.mxu0 %v3515
        %3875 = vmatprep.subr.bf16.mxu0 %v3509
        %3876 = vmatpush1.bf16.msra.mxu0 %v3508
        %3877 = vmatprep.subr.bf16.mxu0 %v3502
        %3878 = vmatpush1.bf16.msra.mxu0 %v3501
        %3879 = vmatprep.subr.bf16.mxu0 0
        %3880 = vmatpush2.bf16.msra.mxu0 0
        %3881 = vmatprep.subr.bf16.mxu0 0
        %3882 = vmatpush2.bf16.msra.mxu0 0
        %3883 = vmatprep.subr.bf16.mxu0 0
        %3884 = vmatpush2.bf16.msra.mxu0 0
        %3885 = vmatprep.subr.bf16.mxu0 0
        %3886 = vmatpush2.bf16.msra.mxu0 0
        %3887 = vmatprep.subr.bf16.mxu0 0
        %3888 = vmatpush2.bf16.msra.mxu0 0
        %3889 = vmatprep.subr.bf16.mxu0 0
        %3890 = vmatpush2.bf16.msra.mxu0 0
        %3891 = vmatprep.subr.bf16.mxu0 0
        %3892 = vmatpush2.bf16.msra.mxu0 0
        %3893 = vmatprep.subr.bf16.mxu0 %v3558
        %3894 = vmatpush2.bf16.msra.mxu0 %v3557
        %3895 = vmatprep.mubr.bf16.mxu0 %v3738
        %3896 = vmatmul.mubr.bf16.gmra.mxu0 %v2599
        %v3897 = vpop.f32.mrf.mxu0
        %v3898 = vadd.f32 %v3857, %v3897
        %v3899 = vpop.f32.mrf.mxu0
        %v3900 = vadd.f32 %v3859, %v3899
        %v3901 = vpop.f32.mrf.mxu0
        %v3902 = vpop.f32.mrf.mxu0
        %3903 = vdwg.mxu0
        %3904 = vmatprep.subr.bf16.mxu0 %v3441
        %3905 = vmatpush1.bf16.msra.mxu0 %v3440
        %3906 = vmatprep.subr.bf16.mxu0 %v3434
        %3907 = vmatpush1.bf16.msra.mxu0 %v3433
        %3908 = vmatprep.subr.bf16.mxu0 %v3427
        %3909 = vmatpush1.bf16.msra.mxu0 %v3426
        %3910 = vmatprep.subr.bf16.mxu0 %v3420
        %3911 = vmatpush1.bf16.msra.mxu0 %v3419
        %3912 = vmatprep.subr.bf16.mxu0 %v3413
        %3913 = vmatpush1.bf16.msra.mxu0 %v3412
        %3914 = vmatprep.subr.bf16.mxu0 %v3406
        %3915 = vmatpush1.bf16.msra.mxu0 %v3405
        %3916 = vmatprep.subr.bf16.mxu0 %v3399
        %3917 = vmatpush1.bf16.msra.mxu0 %v3398
        %3918 = vmatprep.subr.bf16.mxu0 %v3392
        %3919 = vmatpush1.bf16.msra.mxu0 %v3391
        %3920 = vmatprep.subr.bf16.mxu0 %v3497
        %3921 = vmatpush2.bf16.msra.mxu0 %v3496
        %3922 = vmatprep.subr.bf16.mxu0 %v3490
        %3923 = vmatpush2.bf16.msra.mxu0 %v3489
        %3924 = vmatprep.subr.bf16.mxu0 %v3483
        %3925 = vmatpush2.bf16.msra.mxu0 %v3482
        %3926 = vmatprep.subr.bf16.mxu0 %v3476
        %3927 = vmatpush2.bf16.msra.mxu0 %v3475
        %3928 = vmatprep.subr.bf16.mxu0 %v3469
        %3929 = vmatpush2.bf16.msra.mxu0 %v3468
        %3930 = vmatprep.subr.bf16.mxu0 %v3462
        %3931 = vmatpush2.bf16.msra.mxu0 %v3461
        %3932 = vmatprep.subr.bf16.mxu0 %v3455
        %3933 = vmatpush2.bf16.msra.mxu0 %v3454
        %3934 = vmatprep.subr.bf16.mxu0 %v3448
        %3935 = vmatpush2.bf16.msra.mxu0 %v3447
        %3936 = vmatprep.mubr.bf16.mxu0 %v2598
        %3937 = vmatmul.mubr.bf16.gmra.mxu0 %v2597
        %v3938 = vpop.f32.mrf.mxu0
        %v3939 = vadd.f32 %v2821, %v3938
        %v3940 = vpop.f32.mrf.mxu0
        %v3941 = vadd.f32 %v2825, %v3940
        %v3942 = vpop.f32.mrf.mxu0
        %v3943 = vpop.f32.mrf.mxu0
        %3944 = vdwg.mxu0
        %3945 = vmatprep.subr.bf16.mxu0 %v3553
        %3946 = vmatpush1.bf16.msra.mxu0 %v3552
        %3947 = vmatprep.subr.bf16.mxu0 %v3546
        %3948 = vmatpush1.bf16.msra.mxu0 %v3545
        %3949 = vmatprep.subr.bf16.mxu0 %v3539
        %3950 = vmatpush1.bf16.msra.mxu0 %v3538
        %3951 = vmatprep.subr.bf16.mxu0 %v3532
        %3952 = vmatpush1.bf16.msra.mxu0 %v3531
        %3953 = vmatprep.subr.bf16.mxu0 %v3525
        %3954 = vmatpush1.bf16.msra.mxu0 %v3524
        %3955 = vmatprep.subr.bf16.mxu0 %v3518
        %3956 = vmatpush1.bf16.msra.mxu0 %v3517
        %3957 = vmatprep.subr.bf16.mxu0 %v3511
        %3958 = vmatpush1.bf16.msra.mxu0 %v3510
        %3959 = vmatprep.subr.bf16.mxu0 %v3504
        %3960 = vmatpush1.bf16.msra.mxu0 %v3503
        %3961 = vmatprep.subr.bf16.mxu0 0
        %3962 = vmatpush2.bf16.msra.mxu0 0
        %3963 = vmatprep.subr.bf16.mxu0 0
        %3964 = vmatpush2.bf16.msra.mxu0 0
        %3965 = vmatprep.subr.bf16.mxu0 0
        %3966 = vmatpush2.bf16.msra.mxu0 0
        %3967 = vmatprep.subr.bf16.mxu0 0
        %3968 = vmatpush2.bf16.msra.mxu0 0
        %3969 = vmatprep.subr.bf16.mxu0 0
        %3970 = vmatpush2.bf16.msra.mxu0 0
        %3971 = vmatprep.subr.bf16.mxu0 0
        %3972 = vmatpush2.bf16.msra.mxu0 0
        %3973 = vmatprep.subr.bf16.mxu0 0
        %3974 = vmatpush2.bf16.msra.mxu0 0
        %3975 = vmatprep.subr.bf16.mxu0 %v3560
        %3976 = vmatpush2.bf16.msra.mxu0 %v3559
        %3977 = vmatprep.mubr.bf16.mxu0 %v3738
        %3978 = vmatmul.mubr.bf16.gmra.mxu0 %v2599
        %v3979 = vpop.f32.mrf.mxu0
        %v3980 = vadd.f32 %v3939, %v3979
        %v3981 = vpop.f32.mrf.mxu0
        %v3982 = vadd.f32 %v3941, %v3981
        %v3983 = vpop.f32.mrf.mxu0
        %v3984 = vpop.f32.mrf.mxu0
        %3985 = vdwg.mxu0
        %3986 = vmatprep.subr.bf16.mxu0 0
        %3987 = vmatpush1.bf16.msra.mxu0 %v3442
        %3988 = vmatprep.subr.bf16.mxu0 0
        %3989 = vmatpush1.bf16.msra.mxu0 %v3435
        %3990 = vmatprep.subr.bf16.mxu0 0
        %3991 = vmatpush1.bf16.msra.mxu0 %v3428
        %3992 = vmatprep.subr.bf16.mxu0 0
        %3993 = vmatpush1.bf16.msra.mxu0 %v3421
        %3994 = vmatprep.subr.bf16.mxu0 0
        %3995 = vmatpush1.bf16.msra.mxu0 %v3414
        %3996 = vmatprep.subr.bf16.mxu0 0
        %3997 = vmatpush1.bf16.msra.mxu0 %v3407
        %3998 = vmatprep.subr.bf16.mxu0 0
        %3999 = vmatpush1.bf16.msra.mxu0 %v3400
        %4000 = vmatprep.subr.bf16.mxu0 0
        %4001 = vmatpush1.bf16.msra.mxu0 %v3393
        %4002 = vmatprep.subr.bf16.mxu0 0
        %4003 = vmatpush2.bf16.msra.mxu0 %v3498
        %4004 = vmatprep.subr.bf16.mxu0 0
        %4005 = vmatpush2.bf16.msra.mxu0 %v3491
        %4006 = vmatprep.subr.bf16.mxu0 0
        %4007 = vmatpush2.bf16.msra.mxu0 %v3484
        %4008 = vmatprep.subr.bf16.mxu0 0
        %4009 = vmatpush2.bf16.msra.mxu0 %v3477
        %4010 = vmatprep.subr.bf16.mxu0 0
        %4011 = vmatpush2.bf16.msra.mxu0 %v3470
        %4012 = vmatprep.subr.bf16.mxu0 0
        %4013 = vmatpush2.bf16.msra.mxu0 %v3463
        %4014 = vmatprep.subr.bf16.mxu0 0
        %4015 = vmatpush2.bf16.msra.mxu0 %v3456
        %4016 = vmatprep.subr.bf16.mxu0 0
        %4017 = vmatpush2.bf16.msra.mxu0 %v3449
        %4018 = vmatprep.mubr.bf16.mxu0 %v2598
        %4019 = vmatmul.mubr.bf16.gmra.mxu0 %v2597
        %v4020 = vpop.f32.mrf.mxu0
        %v4021 = vadd.f32 %v2829, %v4020
        %v4022 = vpop.f32.mrf.mxu0
        %v4023 = vpop.f32.mrf.mxu0
        %v4024 = vpop.f32.mrf.mxu0
        %4025 = vdwg.mxu0
        %4026 = vmatprep.subr.bf16.mxu0 0
        %4027 = vmatpush1.bf16.msra.mxu0 %v3554
        %4028 = vmatprep.subr.bf16.mxu0 0
        %4029 = vmatpush1.bf16.msra.mxu0 %v3547
        %4030 = vmatprep.subr.bf16.mxu0 0
        %4031 = vmatpush1.bf16.msra.mxu0 %v3540
        %4032 = vmatprep.subr.bf16.mxu0 0
        %4033 = vmatpush1.bf16.msra.mxu0 %v3533
        %4034 = vmatprep.subr.bf16.mxu0 0
        %4035 = vmatpush1.bf16.msra.mxu0 %v3526
        %4036 = vmatprep.subr.bf16.mxu0 0
        %4037 = vmatpush1.bf16.msra.mxu0 %v3519
        %4038 = vmatprep.subr.bf16.mxu0 0
        %4039 = vmatpush1.bf16.msra.mxu0 %v3512
        %4040 = vmatprep.subr.bf16.mxu0 0
        %4041 = vmatpush1.bf16.msra.mxu0 %v3505
        %4042 = vmatprep.subr.bf16.mxu0 0
        %4043 = vmatpush2.bf16.msra.mxu0 0
        %4044 = vmatprep.subr.bf16.mxu0 0
        %4045 = vmatpush2.bf16.msra.mxu0 0
        %4046 = vmatprep.subr.bf16.mxu0 0
        %4047 = vmatpush2.bf16.msra.mxu0 0
        %4048 = vmatprep.subr.bf16.mxu0 0
        %4049 = vmatpush2.bf16.msra.mxu0 0
        %4050 = vmatprep.subr.bf16.mxu0 0
        %4051 = vmatpush2.bf16.msra.mxu0 0
        %4052 = vmatprep.subr.bf16.mxu0 0
        %4053 = vmatpush2.bf16.msra.mxu0 0
        %4054 = vmatprep.subr.bf16.mxu0 0
        %4055 = vmatpush2.bf16.msra.mxu0 0
        %4056 = vmatprep.subr.bf16.mxu0 0
        %4057 = vmatpush2.bf16.msra.mxu0 %v3561
        %4058 = vmatprep.mubr.bf16.mxu0 %v3738
        %4059 = vmatmul.mubr.bf16.gmra.mxu0 %v2599
        %v4060 = vpop.f32.mrf.mxu0
        %v4061 = vadd.f32 %v4021, %v4060
        %v4062 = vpop.f32.mrf.mxu0
        %v4063 = vpop.f32.mrf.mxu0
        %v4064 = vpop.f32.mrf.mxu0
        %4065 = vdwg.mxu0
        %v4066 = vsub.f32 0.0, %v3816
        %v4067 = vsub.f32 0.0, %v3818
        %v4068 = vsub.f32 0.0, %v3898
        %v4069 = vsub.f32 0.0, %v3900
        %v4070 = vsub.f32 0.0, %v3980
        %v4071 = vsub.f32 0.0, %v3982
        %v4072 = vsub.f32 0.0, %v4061
        %v4073 = vmul.f32 %v4066, 1.442695
        %v4074 = vpow.pop %v4073
        %v4075 = vmul.f32 %v4067, 1.442695
        %v4076 = vpow.pop %v4075
        %v4077 = vmul.f32 %v4068, 1.442695
        %v4078 = vpow.pop %v4077
        %v4079 = vmul.f32 %v4069, 1.442695
        %v4080 = vpow.pop %v4079
        %v4081 = vmul.f32 %v4070, 1.442695
        %v4082 = vpow.pop %v4081
        %v4083 = vmul.f32 %v4071, 1.442695
        %v4084 = vpow.pop %v4083
        %v4085 = vmul.f32 %v4072, 1.442695
        %v4086 = vpow.pop %v4085
        %v4087 = vadd.f32 %v4074, 1.0
        %v4088 = vadd.f32 %v4076, 1.0
        %v4089 = vadd.f32 %v4078, 1.0
        %v4090 = vadd.f32 %v4080, 1.0
        %v4091 = vadd.f32 %v4082, 1.0
        %v4092 = vadd.f32 %v4084, 1.0
        %v4093 = vadd.f32 %v4086, 1.0
        %v4094 = vrcp.pop %v4087
        %v4095 = vmul.f32 1.0, %v4094
        %v4096 = vrcp.pop %v4088
        %v4097 = vmul.f32 1.0, %v4096
        %v4098 = vrcp.pop %v4089
        %v4099 = vmul.f32 1.0, %v4098
        %v4100 = vrcp.pop %v4090
        %v4101 = vmul.f32 1.0, %v4100
        %v4102 = vrcp.pop %v4091
        %v4103 = vmul.f32 1.0, %v4102
        %v4104 = vrcp.pop %v4092
        %v4105 = vmul.f32 1.0, %v4104
        %v4106 = vrcp.pop %v4093
        %v4107 = vmul.f32 1.0, %v4106
        %4108 = vst [vmem:[%s312] sm:$0xff] %v4095
        %4109 = vst [vmem:[%s312 + $0x8] sm:$0xff] %v4097
        %4110 = vst [vmem:[%s312 + $0x10] sm:$0xff] %v4099
        %4111 = vst [vmem:[%s312 + $0x18] sm:$0xff] %v4101
        %4112 = vst [vmem:[%s312 + $0x20] sm:$0xff] %v4103
        %4113 = vst [vmem:[%s312 + $0x28] sm:$0xff] %v4105
        %4114 = vst.msk [vmem:[%s312 + $0x30] sm:$0xff] %vm1560, %v4107
        %vm4115 = vcmask 31744
        %4116 = vst.msk [vmem:[%s331] sm:$0xff] %vm4115, %v2333
        %s4117 = sand.u32 %s188, 1
        %s4118 = scalar_lea.sflag [#allocation3], %s4117
        %s4119 = sand.u32 %s188, 1
        %s4120 = smul.addr %s4119, 56
        %s4121 = scalar_lea.vmem [#allocation2], %s4120
        %p4122 = scmp.lt.s32.totalorder %s23, 3
        %s4123 = scalar_select %p4122, %s23, 3
        %s4124 = smul.addr %s4123, 8
        %s4125 = scalar_lea.vmem %s8, %s4124
        // Predicated region
        $region49: #{lora_vae_decoder_forward.1} parent=47 // pred_check
          %p4126 = pneg %p198
        $region50: #{lora_vae_decoder_forward.1} parent=47 // pred_check_branch
          %4128 = sbr.rel (%p4126) target = $region52
        $region51: #{lora_vae_decoder_forward.1} parent=47 // pred_region
          %s4130 = ssub.s32 896, 896
          %4131 = vsyncadd %s4118, %s4130
          %s4132 = smul.addr %s23, 7
          %s4133 = smul.addr %s4132, 128
          %s4134 = scalar_lea.hbm %s7, %s4133
          %s4136 = sshll.u32 %s4121, 4
          %s4137 = int_to_ptr.vmem [resolvable:$true] %s4136
          %4139 = dma.vmem_to_hbm [thread:$0]  %s4137, 896, %s4134, %s4118
        $region52: #{lora_vae_decoder_forward.1} parent=47 // pred_fallthru
          _
        // Predicated region
        $region53: #{lora_vae_decoder_forward.1} parent=47 // pred_check
          %p4140 = pneg %p224
        $region54: #{lora_vae_decoder_forward.1} parent=47 // pred_check_branch
          %4142 = sbr.rel (%p4140) target = $region56
        $region55: #{lora_vae_decoder_forward.1} parent=47 // pred_region
          _
        $region56: #{lora_vae_decoder_forward.1} parent=47 // pred_fallthru
          _
      $region48: #{lora_vae_decoder_forward.1} parent=5 // pred_fallthru
        _
      %p4143 = scmp.le.s32.totalorder 2, %s18
      // Predicated region
      $region57: #{lora_vae_decoder_forward.1} parent=5 // pred_check
        %p4144 = pneg %p4143
      $region58: #{lora_vae_decoder_forward.1} parent=5 // pred_check_branch
        %4146 = sbr.rel (%p4144) target = $region60
      $region59: #{lora_vae_decoder_forward.1} parent=5 // pred_region
        %s4147 = ssub.s32 %s18, 2
        // Predicated region
        $region61: #{lora_vae_decoder_forward.1} parent=59 // pred_check
          %p4148 = pneg %p204
        $region62: #{lora_vae_decoder_forward.1} parent=59 // pred_check_branch
          %4150 = sbr.rel (%p4148) target = $region64
        $region63: #{lora_vae_decoder_forward.1} parent=59 // pred_region
          %s4151 = sand.u32 %s189, 1
          %s4152 = scalar_lea.sflag [#allocation3], %s4151
          %s4153 = sand.u32 %s189, 1
          %s4154 = smul.addr %s4153, 56
          %s4155 = scalar_lea.vmem [#allocation2], %s4154
          %4156 = dma.done %s4152, 896
        $region64: #{lora_vae_decoder_forward.1} parent=59 // pred_fallthru
          _
        // Predicated region
        $region65: #{lora_vae_decoder_forward.1} parent=59 // pred_check
          %p4157 = pneg %p230
        $region66: #{lora_vae_decoder_forward.1} parent=59 // pred_check_branch
          %4159 = sbr.rel (%p4157) target = $region68
        $region67: #{lora_vae_decoder_forward.1} parent=59 // pred_region
          %p4160 = scmp.lt.s32.totalorder %s24, 3
          %s4161 = scalar_select %p4160, %s24, 3
          %s4162 = smul.addr %s4161, 8
          %s4163 = scalar_lea.vmem %s8, %s4162
        $region68: #{lora_vae_decoder_forward.1} parent=59 // pred_fallthru
          _
      $region60: #{lora_vae_decoder_forward.1} parent=5 // pred_fallthru
        _
    $region6: #{lora_vae_decoder_forward.1} parent=1 // loop_footer
      %s22 = sadd.s32 1, %s18
    $region7: #{lora_vae_decoder_forward.1} parent=1 // loop_footer_branch
      %17 = sbr.rel target = $region3
    $region8: #{lora_vae_decoder_forward.1} parent=1 // loop_exit
      _
    %4164 = vsyncpa [#allocation3], 1
    %s4165 = scalar_lea.sflag [#allocation3], 1
    %4166 = vsyncpa %s4165, 1

</llo_original>
